<compile_context>
chip_gen: v6e
topology: v6e:2x2x1
jax: 0.10.0
libtpu: 0.0.40
codegen_flags: <defaults>
</compile_context>

<pallas_src>
import numpy as np
import jax
import jax.numpy as jnp
from jax.experimental import pallas as pl
from jax.experimental.pallas import tpu as pltpu

# ---- model hyper-parameters (from MV_LSTM.__init__) ----
N_FEATURES = 5
SEQ_LEN = 8
N_HIDDEN = 30
N_LAYERS = 4
OUT_DIM = 100
BATCH = 8          # perf review: B=8 fills the f32 sublanes and is essentially free

# ---- padded (lane-aligned) sizes used inside the kernel ----
HP = 32                    # hidden padded 30 -> 32
LHP = N_LAYERS * HP        # 128: one f32 vreg row holds all 4 layers' h (or c)
G4 = 4 * LHP               # 512 gate lanes: [i(128) | f(128) | g(128) | o(128)]
FP = 8                     # input features padded 5 -> 8
OUTP = 128                 # linear output padded 100 -> 128

# TODO(synk): nn.Dropout(0.1) is declared in __init__ but never applied in forward(); omitted.


def mv_lstm_kernel(x_ref, wx_ref, wh_ref, b_ref, wlin_ref, blin_ref, out_ref, gx_ref):
    # x_ref:    (T*B, FP)       t-major rows (row = t*B + b), features zero-padded, f32
    # wx_ref:   (FP, G4)        layer-0 input->gates weights in gate-major layout, bf16
    # wh_ref:   (LHP, G4)       combined recurrent weights: rows 32l:32l+30 carry W_hh[l]
    #                           (-> layer-l gate cols) AND W_ih[l+1] (-> layer-(l+1) cols), bf16
    # b_ref:    (1, G4)         b_ih + b_hh for every (gate, layer) column block, f32
    # wlin_ref: (T, LHP, OUTP)  final Linear; nonzero only in rows 96:126 (last layer's lanes), bf16
    # blin_ref: (1, OUTP)       Linear bias (zero-padded), f32
    # out_ref:  (B, OUTP)       sigmoid(logits); real outputs in lanes [:100]
    # gx_ref:   (T*B, G4)       VMEM scratch: precomputed layer-0 gate terms (+ bias)
    T, L = SEQ_LEN, N_LAYERS
    B = out_ref.shape[0]

    # Hoisted: layer-0 input->gate projection for ALL timesteps in one matmul, bias folded,
    # stored to scratch so per-step reads are plain static leading-dim slices.
    gx_ref[...] = jnp.dot(x_ref[...].astype(jnp.bfloat16), wx_ref[...],
                          preferred_element_type=jnp.float32) + b_ref[...]

    wh = wh_ref[...]                                              # (128, 512) bf16
    h = jnp.zeros((B, LHP), jnp.float32)                          # lanes 32l:32(l+1) = layer l
    c = jnp.zeros((B, LHP), jnp.float32)
    acc = jnp.zeros((B, OUTP), jnp.float32) + blin_ref[...]       # Linear bias folded in
    lane = jax.lax.broadcasted_iota(jnp.int32, (1, LHP), 1)       # hoisted constant

    # Wavefront over anti-diagonals: dependent chain = T + L - 1 = 11 fused cells.
    for w in range(T + L - 1):
        tw = min(w, T - 1)   # for w >= T layer 0 is retired; gx[T-1] still carries the biases
        z = gx_ref[tw * B:(tw + 1) * B, :] + jnp.dot(
            h.astype(jnp.bfloat16), wh, preferred_element_type=jnp.float32)   # (B, 512) f32

        # Gate-major layout => each slice is a whole 128-lane-aligned vreg (no XLU slicing).
        i_g = jax.nn.sigmoid(z[:, 0 * LHP:1 * LHP])
        f_g = jax.nn.sigmoid(z[:, 1 * LHP:2 * LHP])
        g_g = jnp.tanh(z[:, 2 * LHP:3 * LHP])
        o_g = jax.nn.sigmoid(z[:, 3 * LHP:4 * LHP])
        c_new = f_g * c + i_g * g_g
        h_new = o_g * jnp.tanh(c_new)

        if w < L - 1:
            # Ramp-up: layers l > w have not started; keep their (zero) state untouched.
            live = lane < (w + 1) * HP                            # static constant mask
            c = jnp.where(live, c_new, c)
            h = jnp.where(live, h_new, h)
        else:
            # All further writes are safe: retired layers' garbage is never read downstream.
            c, h = c_new, h_new
            # Last layer just produced h^{L-1}_{w-(L-1)}: fuse the final Linear under the
            # recurrence. wlin rows outside the last layer's 32 lanes are zero, so the other
            # layers' lanes contribute nothing.
            acc = acc + jnp.dot(h_new.astype(jnp.bfloat16), wlin_ref[w - (L - 1)],
                                preferred_element_type=jnp.float32)

    out_ref[...] = jax.nn.sigmoid(acc)


@jax.jit
def mv_lstm_forward(x_btf, kp):
    """x_btf: (B, T, F) batch-first float32, like the PyTorch module. Returns (B, 100)."""
    B, T, F = x_btf.shape
    # XLA-side prep (tiny, free): t-major flatten + feature pad 5 -> 8 so the kernel's hoisted
    # layer-0 projection and its per-step slices need no in-kernel reshape/relayout.
    x_flat = jnp.transpose(x_btf, (1, 0, 2)).reshape(T * B, F)
    x_flat = jnp.pad(x_flat, ((0, 0), (0, FP - F)))

    vmem = pltpu.MemorySpace.VMEM
    out_padded = pl.pallas_call(
        mv_lstm_kernel,
        out_shape=jax.ShapeDtypeStruct((B, OUTP), jnp.float32),
        in_specs=[pl.BlockSpec(memory_space=vmem)] * 6,
        out_specs=pl.BlockSpec(memory_space=vmem),
        scratch_shapes=[pltpu.VMEM((T * B, G4), jnp.float32)],
    )(x_flat, kp["wx"], kp["wh"], kp["b"], kp["wlin"], kp["blin"])
    return out_padded[:, :OUT_DIM]


def init_params(key):
    """Deterministic PyTorch-shaped parameters (stored pre-transposed, unpadded, f32)."""
    ks = jax.random.split(key, 2 * N_LAYERS * 2 + 2)
    bound = 1.0 / np.sqrt(N_HIDDEN)
    u = lambda k, shape: jax.random.uniform(k, shape, jnp.float32, -bound, bound)

    wih0 = u(ks[0], (N_FEATURES, 4 * N_HIDDEN))                 # W_ih_l0.T
    wih = jnp.stack([u(ks[1 + l], (N_HIDDEN, 4 * N_HIDDEN))     # W_ih_l{1..}.T
                     for l in range(N_LAYERS - 1)])
    whh = jnp.stack([u(ks[4 + l], (N_HIDDEN, 4 * N_HIDDEN))     # W_hh_l{l}.T
                     for l in range(N_LAYERS)])
    b = jnp.stack([u(ks[8 + l], (4 * N_HIDDEN,)) + u(ks[12 + l], (4 * N_HIDDEN,))
                   for l in range(N_LAYERS)])                   # b_ih + b_hh
    lin_bound = 1.0 / np.sqrt(N_HIDDEN * SEQ_LEN)
    wlin_t = jax.random.uniform(ks[16], (N_HIDDEN * SEQ_LEN, OUT_DIM),
                                jnp.float32, -lin_bound, lin_bound)  # Linear.weight.T
    blin = jax.random.uniform(ks[17], (1, OUT_DIM), jnp.float32,
                              -lin_bound, lin_bound)
    wlin = wlin_t.reshape(SEQ_LEN, N_HIDDEN, OUT_DIM)           # (T, H, OUT)
    return dict(wih0=wih0, wih=wih, whh=whh, b=b, wlin=wlin, blin=blin)


def _col(gate, layer):
    """First output column of (gate, layer) in the gate-major / per-layer-slot layout."""
    return gate * LHP + layer * HP


def pad_params(params):
    """Build the kernel-side padded / layout-transformed weights.

    Zero padding keeps semantics exact: padded hidden lanes see z = 0 every step, so their
    c/h stay exactly 0 through the whole recurrence.
    """
    wih0 = np.asarray(params["wih0"], np.float32)       # (5, 120)
    wih = np.asarray(params["wih"], np.float32)         # (3, 30, 120)
    whh = np.asarray(params["whh"], np.float32)         # (4, 30, 120)
    b = np.asarray(params["b"], np.float32)             # (4, 120)
    wlin_src = np.asarray(params["wlin"], np.float32)   # (8, 30, 100)
    blin_src = np.asarray(params["blin"], np.float32)   # (1, 100)

    wx = np.zeros((FP, G4), np.float32)
    wh = np.zeros((LHP, G4), np.float32)
    bb = np.zeros((1, G4), np.float32)
    for g in range(4):
        src = slice(g * N_HIDDEN, (g + 1) * N_HIDDEN)
        for l in range(N_LAYERS):
            dst = slice(_col(g, l), _col(g, l) + N_HIDDEN)
            bb[0, dst] = b[l, src]
            # Recurrent weights of layer l read h^l (state lanes 32l : 32l+30).
            wh[l * HP:l * HP + N_HIDDEN, dst] = whh[l][:, src]
            if l == 0:
                wx[:N_FEATURES, dst] = wih0[:, src]
            else:
                # Input weights of layer l read h^{l-1} (state lanes 32(l-1) : 32(l-1)+30).
                wh[(l - 1) * HP:(l - 1) * HP + N_HIDDEN, dst] = wih[l - 1][:, src]

    wlin = np.zeros((SEQ_LEN, LHP, OUTP), np.float32)
    wlin[:, (N_LAYERS - 1) * HP:(N_LAYERS - 1) * HP + N_HIDDEN, :OUT_DIM] = wlin_src
    blin = np.zeros((1, OUTP), np.float32)
    blin[:, :OUT_DIM] = blin_src

    # Padded-lane invariant guard (review correctness concern): padded hidden rows/cols of
    # every weight/bias block must be exactly zero.
    for l in range(N_LAYERS):
        assert not wh[l * HP + N_HIDDEN:(l + 1) * HP, :].any()
        for g in range(4):
            assert not wh[:, _col(g, l) + N_HIDDEN:_col(g, l) + HP].any()
            assert not wx[:, _col(g, l) + N_HIDDEN:_col(g, l) + HP].any()
            assert not bb[0, _col(g, l) + N_HIDDEN:_col(g, l) + HP].any()

    return dict(
        wx=jnp.asarray(wx, jnp.bfloat16),
        wh=jnp.asarray(wh, jnp.bfloat16),
        b=jnp.asarray(bb, jnp.float32),
        wlin=jnp.asarray(wlin, jnp.bfloat16),
        blin=jnp.asarray(blin, jnp.float32),
    )


def reference_forward(x_btf, params):
    """Pure numpy f32 reference of the PyTorch forward (zero initial hidden/cell)."""
    p = {k: np.asarray(v, np.float32) for k, v in params.items()}
    B, T, F = x_btf.shape
    seq = np.asarray(x_btf, np.float32)                         # (B, T, in)
    for layer in range(N_LAYERS):
        w_ih = p["wih0"] if layer == 0 else p["wih"][layer - 1]
        w_hh = p["whh"][layer]
        bias = p["b"][layer]
        h = np.zeros((B, N_HIDDEN), np.float32)
        c = np.zeros((B, N_HIDDEN), np.float32)
        outs = []
        for t in range(T):
            gates = seq[:, t, :] @ w_ih + h @ w_hh + bias
            i = 1.0 / (1.0 + np.exp(-gates[:, 0:N_HIDDEN]))
            f = 1.0 / (1.0 + np.exp(-gates[:, N_HIDDEN:2 * N_HIDDEN]))
            g = np.tanh(gates[:, 2 * N_HIDDEN:3 * N_HIDDEN])
            o = 1.0 / (1.0 + np.exp(-gates[:, 3 * N_HIDDEN:4 * N_HIDDEN]))
            c = f * c + i * g
            h = o * np.tanh(c)
            outs.append(h)
        seq = np.stack(outs, axis=1)                            # (B, T, H)
    flat = seq.reshape(B, T * N_HIDDEN)
    logits = flat @ p["wlin"].reshape(T * N_HIDDEN, OUT_DIM) + p["blin"][0]
    return 1.0 / (1.0 + np.exp(-logits))


if __name__ == "__main__":
    key = jax.random.PRNGKey(0)
    k_x, k_p = jax.random.split(key)
    x = jax.random.normal(k_x, (BATCH, SEQ_LEN, N_FEATURES), jnp.float32)
    params = init_params(k_p)
    kparams = pad_params(params)

    out = mv_lstm_forward(x, kparams)
    out = jax.block_until_ready(out)

    ref = reference_forward(x, params)
    assert out.shape == (BATCH, OUT_DIM)
    assert np.all(np.isfinite(np.asarray(out)))
    np.testing.assert_allclose(np.asarray(out), ref, atol=2e-2, rtol=0)
    print("KERNEL_OK")
</pallas_src>

<mosaic_0001>
module attributes {stable_mosaic.version = 11 : i64} {
  func.func @mv_lstm_kernel(%arg0: memref<64x8xf32, #tpu.memory_space<vmem>>, %arg1: memref<8x512xbf16, #tpu.memory_space<vmem>>, %arg2: memref<128x512xbf16, #tpu.memory_space<vmem>>, %arg3: memref<1x512xf32, #tpu.memory_space<vmem>>, %arg4: memref<8x128x128xbf16, #tpu.memory_space<vmem>>, %arg5: memref<1x128xf32, #tpu.memory_space<vmem>>, %arg6: memref<8x128xf32, #tpu.memory_space<vmem>>, %arg7: memref<64x512xf32, #tpu.memory_space<vmem>>) attributes {dimension_semantics = [], scalar_prefetch = 0 : i64, scratch_operands = 1 : i64, tpu.core_type = #tpu.core_type<tc>} {
    %c0 = arith.constant 0 : index
    %c0_0 = arith.constant 0 : index
    %0 = vector.load %arg0[%c0, %c0_0] : memref<64x8xf32, #tpu.memory_space<vmem>>, vector<64x8xf32>
    %1 = arith.truncf %0 : vector<64x8xf32> to vector<64x8xbf16>
    %c0_1 = arith.constant 0 : index
    %c0_2 = arith.constant 0 : index
    %2 = vector.load %arg1[%c0_1, %c0_2] : memref<8x512xbf16, #tpu.memory_space<vmem>>, vector<8x512xbf16>
    %cst = arith.constant dense<0.000000e+00> : vector<64x512xf32>
    %3 = tpu.matmul %1, %2, %cst {dimension_numbers = #tpu.dot_dimension_numbers<[1], [0], [0], [1], [0, 0, 1, 1], [], []>} : vector<64x8xbf16>, vector<8x512xbf16>, vector<64x512xf32> -> vector<64x512xf32>
    %c0_3 = arith.constant 0 : index
    %c0_4 = arith.constant 0 : index
    %4 = vector.load %arg3[%c0_3, %c0_4] : memref<1x512xf32, #tpu.memory_space<vmem>>, vector<1x512xf32>
    %5 = vector.broadcast %4 : vector<1x512xf32> to vector<64x512xf32>
    %6 = arith.addf %3, %5 : vector<64x512xf32>
    %c0_5 = arith.constant 0 : index
    %c0_6 = arith.constant 0 : index
    %7 = vector.load %arg7[%c0_5, %c0_6] : memref<64x512xf32, #tpu.memory_space<vmem>>, vector<64x512xf32>
    tpu.vector_store %arg7[%c0_5, %c0_6], %6 {strides = array<i32>} : memref<64x512xf32, #tpu.memory_space<vmem>>, vector<64x512xf32>,
    %c0_7 = arith.constant 0 : index
    %c0_8 = arith.constant 0 : index
    %8 = vector.load %arg2[%c0_7, %c0_8] : memref<128x512xbf16, #tpu.memory_space<vmem>>, vector<128x512xbf16>
    %cst_9 = arith.constant 0.000000e+00 : f32
    %9 = vector.broadcast %cst_9 : f32 to vector<8x128xf32>
    %cst_10 = arith.constant 0.000000e+00 : f32
    %10 = vector.broadcast %cst_10 : f32 to vector<8x128xf32>
    %cst_11 = arith.constant 0.000000e+00 : f32
    %11 = vector.broadcast %cst_11 : f32 to vector<8x128xf32>
    %c0_12 = arith.constant 0 : index
    %c0_13 = arith.constant 0 : index
    %12 = vector.load %arg5[%c0_12, %c0_13] : memref<1x128xf32, #tpu.memory_space<vmem>>, vector<1x128xf32>
    %13 = vector.broadcast %12 : vector<1x128xf32> to vector<8x128xf32>
    %14 = arith.addf %11, %13 : vector<8x128xf32>
    %15 = tpu.iota {dimensions = array<i32: 1>} : vector<1x128xi32>
    %c0_14 = arith.constant 0 : index
    %c0_15 = arith.constant 0 : index
    %16 = vector.load %arg7[%c0_14, %c0_15] : memref<64x512xf32, #tpu.memory_space<vmem>>, vector<8x512xf32>
    %17 = arith.truncf %9 : vector<8x128xf32> to vector<8x128xbf16>
    %cst_16 = arith.constant dense<0.000000e+00> : vector<8x512xf32>
    %18 = tpu.matmul %17, %8, %cst_16 {dimension_numbers = #tpu.dot_dimension_numbers<[1], [0], [0], [1], [0, 0, 1, 1], [], []>} : vector<8x128xbf16>, vector<128x512xbf16>, vector<8x512xf32> -> vector<8x512xf32>
    %19 = arith.addf %16, %18 : vector<8x512xf32>
    %20 = vector.extract_strided_slice %19 {offsets = [0, 0], sizes = [8, 128], strides = [1, 1]} : vector<8x512xf32> to vector<8x128xf32>
    %21 = arith.negf %20 : vector<8x128xf32>
    %22 = math.exp %21 : vector<8x128xf32>
    %cst_17 = arith.constant 1.000000e+00 : f32
    %23 = vector.broadcast %cst_17 : f32 to vector<8x128xf32>
    %24 = arith.addf %23, %22 : vector<8x128xf32>
    %25 = arith.divf %23, %24 : vector<8x128xf32>
    %26 = vector.extract_strided_slice %19 {offsets = [0, 128], sizes = [8, 128], strides = [1, 1]} : vector<8x512xf32> to vector<8x128xf32>
    %27 = arith.negf %26 : vector<8x128xf32>
    %28 = math.exp %27 : vector<8x128xf32>
    %cst_18 = arith.constant 1.000000e+00 : f32
    %29 = vector.broadcast %cst_18 : f32 to vector<8x128xf32>
    %30 = arith.addf %29, %28 : vector<8x128xf32>
    %31 = arith.divf %29, %30 : vector<8x128xf32>
    %32 = vector.extract_strided_slice %19 {offsets = [0, 256], sizes = [8, 128], strides = [1, 1]} : vector<8x512xf32> to vector<8x128xf32>
    %33 = math.tanh %32 : vector<8x128xf32>
    %34 = vector.extract_strided_slice %19 {offsets = [0, 384], sizes = [8, 128], strides = [1, 1]} : vector<8x512xf32> to vector<8x128xf32>
    %35 = arith.negf %34 : vector<8x128xf32>
    %36 = math.exp %35 : vector<8x128xf32>
    %cst_19 = arith.constant 1.000000e+00 : f32
    %37 = vector.broadcast %cst_19 : f32 to vector<8x128xf32>
    %38 = arith.addf %37, %36 : vector<8x128xf32>
    %39 = arith.divf %37, %38 : vector<8x128xf32>
    %40 = arith.mulf %31, %10 : vector<8x128xf32>
    %41 = arith.mulf %25, %33 : vector<8x128xf32>
    %42 = arith.addf %40, %41 : vector<8x128xf32>
    %43 = math.tanh %42 : vector<8x128xf32>
    %44 = arith.mulf %39, %43 : vector<8x128xf32>
    %c32_i32 = arith.constant 32 : i32
    %45 = vector.broadcast %c32_i32 : i32 to vector<1x128xi32>
    %46 = arith.cmpi slt, %15, %45 : vector<1x128xi32>
    %47 = vector.shape_cast %46 : vector<1x128xi1> to vector<1x128xi1>
    %48 = vector.broadcast %47 : vector<1x128xi1> to vector<8x128xi1>
    %49 = arith.select %48, %42, %10 : vector<8x128xi1>, vector<8x128xf32>
    %50 = vector.shape_cast %46 : vector<1x128xi1> to vector<1x128xi1>
    %51 = vector.broadcast %50 : vector<1x128xi1> to vector<8x128xi1>
    %52 = arith.select %51, %44, %9 : vector<8x128xi1>, vector<8x128xf32>
    %c8 = arith.constant 8 : index
    %c0_20 = arith.constant 0 : index
    %53 = vector.load %arg7[%c8, %c0_20] : memref<64x512xf32, #tpu.memory_space<vmem>>, vector<8x512xf32>
    %54 = arith.truncf %52 : vector<8x128xf32> to vector<8x128xbf16>
    %cst_21 = arith.constant dense<0.000000e+00> : vector<8x512xf32>
    %55 = tpu.matmul %54, %8, %cst_21 {dimension_numbers = #tpu.dot_dimension_numbers<[1], [0], [0], [1], [0, 0, 1, 1], [], []>} : vector<8x128xbf16>, vector<128x512xbf16>, vector<8x512xf32> -> vector<8x512xf32>
    %56 = arith.addf %53, %55 : vector<8x512xf32>
    %57 = vector.extract_strided_slice %56 {offsets = [0, 0], sizes = [8, 128], strides = [1, 1]} : vector<8x512xf32> to vector<8x128xf32>
    %58 = arith.negf %57 : vector<8x128xf32>
    %59 = math.exp %58 : vector<8x128xf32>
    %cst_22 = arith.constant 1.000000e+00 : f32
    %60 = vector.broadcast %cst_22 : f32 to vector<8x128xf32>
    %61 = arith.addf %60, %59 : vector<8x128xf32>
    %62 = arith.divf %60, %61 : vector<8x128xf32>
    %63 = vector.extract_strided_slice %56 {offsets = [0, 128], sizes = [8, 128], strides = [1, 1]} : vector<8x512xf32> to vector<8x128xf32>
    %64 = arith.negf %63 : vector<8x128xf32>
    %65 = math.exp %64 : vector<8x128xf32>
    %cst_23 = arith.constant 1.000000e+00 : f32
    %66 = vector.broadcast %cst_23 : f32 to vector<8x128xf32>
    %67 = arith.addf %66, %65 : vector<8x128xf32>
    %68 = arith.divf %66, %67 : vector<8x128xf32>
    %69 = vector.extract_strided_slice %56 {offsets = [0, 256], sizes = [8, 128], strides = [1, 1]} : vector<8x512xf32> to vector<8x128xf32>
    %70 = math.tanh %69 : vector<8x128xf32>
    %71 = vector.extract_strided_slice %56 {offsets = [0, 384], sizes = [8, 128], strides = [1, 1]} : vector<8x512xf32> to vector<8x128xf32>
    %72 = arith.negf %71 : vector<8x128xf32>
    %73 = math.exp %72 : vector<8x128xf32>
    %cst_24 = arith.constant 1.000000e+00 : f32
    %74 = vector.broadcast %cst_24 : f32 to vector<8x128xf32>
    %75 = arith.addf %74, %73 : vector<8x128xf32>
    %76 = arith.divf %74, %75 : vector<8x128xf32>
    %77 = arith.mulf %68, %49 : vector<8x128xf32>
    %78 = arith.mulf %62, %70 : vector<8x128xf32>
    %79 = arith.addf %77, %78 : vector<8x128xf32>
    %80 = math.tanh %79 : vector<8x128xf32>
    %81 = arith.mulf %76, %80 : vector<8x128xf32>
    %c64_i32 = arith.constant 64 : i32
    %82 = vector.broadcast %c64_i32 : i32 to vector<1x128xi32>
    %83 = arith.cmpi slt, %15, %82 : vector<1x128xi32>
    %84 = vector.shape_cast %83 : vector<1x128xi1> to vector<1x128xi1>
    %85 = vector.broadcast %84 : vector<1x128xi1> to vector<8x128xi1>
    %86 = arith.select %85, %79, %49 : vector<8x128xi1>, vector<8x128xf32>
    %87 = vector.shape_cast %83 : vector<1x128xi1> to vector<1x128xi1>
    %88 = vector.broadcast %87 : vector<1x128xi1> to vector<8x128xi1>
    %89 = arith.select %88, %81, %52 : vector<8x128xi1>, vector<8x128xf32>
    %c16 = arith.constant 16 : index
    %c0_25 = arith.constant 0 : index
    %90 = vector.load %arg7[%c16, %c0_25] : memref<64x512xf32, #tpu.memory_space<vmem>>, vector<8x512xf32>
    %91 = arith.truncf %89 : vector<8x128xf32> to vector<8x128xbf16>
    %cst_26 = arith.constant dense<0.000000e+00> : vector<8x512xf32>
    %92 = tpu.matmul %91, %8, %cst_26 {dimension_numbers = #tpu.dot_dimension_numbers<[1], [0], [0], [1], [0, 0, 1, 1], [], []>} : vector<8x128xbf16>, vector<128x512xbf16>, vector<8x512xf32> -> vector<8x512xf32>
    %93 = arith.addf %90, %92 : vector<8x512xf32>
    %94 = vector.extract_strided_slice %93 {offsets = [0, 0], sizes = [8, 128], strides = [1, 1]} : vector<8x512xf32> to vector<8x128xf32>
    %95 = arith.negf %94 : vector<8x128xf32>
    %96 = math.exp %95 : vector<8x128xf32>
    %cst_27 = arith.constant 1.000000e+00 : f32
    %97 = vector.broadcast %cst_27 : f32 to vector<8x128xf32>
    %98 = arith.addf %97, %96 : vector<8x128xf32>
    %99 = arith.divf %97, %98 : vector<8x128xf32>
    %100 = vector.extract_strided_slice %93 {offsets = [0, 128], sizes = [8, 128], strides = [1, 1]} : vector<8x512xf32> to vector<8x128xf32>
    %101 = arith.negf %100 : vector<8x128xf32>
    %102 = math.exp %101 : vector<8x128xf32>
    %cst_28 = arith.constant 1.000000e+00 : f32
    %103 = vector.broadcast %cst_28 : f32 to vector<8x128xf32>
    %104 = arith.addf %103, %102 : vector<8x128xf32>
    %105 = arith.divf %103, %104 : vector<8x128xf32>
    %106 = vector.extract_strided_slice %93 {offsets = [0, 256], sizes = [8, 128], strides = [1, 1]} : vector<8x512xf32> to vector<8x128xf32>
    %107 = math.tanh %106 : vector<8x128xf32>
    %108 = vector.extract_strided_slice %93 {offsets = [0, 384], sizes = [8, 128], strides = [1, 1]} : vector<8x512xf32> to vector<8x128xf32>
    %109 = arith.negf %108 : vector<8x128xf32>
    %110 = math.exp %109 : vector<8x128xf32>
    %cst_29 = arith.constant 1.000000e+00 : f32
    %111 = vector.broadcast %cst_29 : f32 to vector<8x128xf32>
    %112 = arith.addf %111, %110 : vector<8x128xf32>
    %113 = arith.divf %111, %112 : vector<8x128xf32>
    %114 = arith.mulf %105, %86 : vector<8x128xf32>
    %115 = arith.mulf %99, %107 : vector<8x128xf32>
    %116 = arith.addf %114, %115 : vector<8x128xf32>
    %117 = math.tanh %116 : vector<8x128xf32>
    %118 = arith.mulf %113, %117 : vector<8x128xf32>
    %c96_i32 = arith.constant 96 : i32
    %119 = vector.broadcast %c96_i32 : i32 to vector<1x128xi32>
    %120 = arith.cmpi slt, %15, %119 : vector<1x128xi32>
    %121 = vector.shape_cast %120 : vector<1x128xi1> to vector<1x128xi1>
    %122 = vector.broadcast %121 : vector<1x128xi1> to vector<8x128xi1>
    %123 = arith.select %122, %116, %86 : vector<8x128xi1>, vector<8x128xf32>
    %124 = vector.shape_cast %120 : vector<1x128xi1> to vector<1x128xi1>
    %125 = vector.broadcast %124 : vector<1x128xi1> to vector<8x128xi1>
    %126 = arith.select %125, %118, %89 : vector<8x128xi1>, vector<8x128xf32>
    %c24 = arith.constant 24 : index
    %c0_30 = arith.constant 0 : index
    %127 = vector.load %arg7[%c24, %c0_30] : memref<64x512xf32, #tpu.memory_space<vmem>>, vector<8x512xf32>
    %128 = arith.truncf %126 : vector<8x128xf32> to vector<8x128xbf16>
    %cst_31 = arith.constant dense<0.000000e+00> : vector<8x512xf32>
    %129 = tpu.matmul %128, %8, %cst_31 {dimension_numbers = #tpu.dot_dimension_numbers<[1], [0], [0], [1], [0, 0, 1, 1], [], []>} : vector<8x128xbf16>, vector<128x512xbf16>, vector<8x512xf32> -> vector<8x512xf32>
    %130 = arith.addf %127, %129 : vector<8x512xf32>
    %131 = vector.extract_strided_slice %130 {offsets = [0, 0], sizes = [8, 128], strides = [1, 1]} : vector<8x512xf32> to vector<8x128xf32>
    %132 = arith.negf %131 : vector<8x128xf32>
    %133 = math.exp %132 : vector<8x128xf32>
    %cst_32 = arith.constant 1.000000e+00 : f32
    %134 = vector.broadcast %cst_32 : f32 to vector<8x128xf32>
    %135 = arith.addf %134, %133 : vector<8x128xf32>
    %136 = arith.divf %134, %135 : vector<8x128xf32>
    %137 = vector.extract_strided_slice %130 {offsets = [0, 128], sizes = [8, 128], strides = [1, 1]} : vector<8x512xf32> to vector<8x128xf32>
    %138 = arith.negf %137 : vector<8x128xf32>
    %139 = math.exp %138 : vector<8x128xf32>
    %cst_33 = arith.constant 1.000000e+00 : f32
    %140 = vector.broadcast %cst_33 : f32 to vector<8x128xf32>
    %141 = arith.addf %140, %139 : vector<8x128xf32>
    %142 = arith.divf %140, %141 : vector<8x128xf32>
    %143 = vector.extract_strided_slice %130 {offsets = [0, 256], sizes = [8, 128], strides = [1, 1]} : vector<8x512xf32> to vector<8x128xf32>
    %144 = math.tanh %143 : vector<8x128xf32>
    %145 = vector.extract_strided_slice %130 {offsets = [0, 384], sizes = [8, 128], strides = [1, 1]} : vector<8x512xf32> to vector<8x128xf32>
    %146 = arith.negf %145 : vector<8x128xf32>
    %147 = math.exp %146 : vector<8x128xf32>
    %cst_34 = arith.constant 1.000000e+00 : f32
    %148 = vector.broadcast %cst_34 : f32 to vector<8x128xf32>
    %149 = arith.addf %148, %147 : vector<8x128xf32>
    %150 = arith.divf %148, %149 : vector<8x128xf32>
    %151 = arith.mulf %142, %123 : vector<8x128xf32>
    %152 = arith.mulf %136, %144 : vector<8x128xf32>
    %153 = arith.addf %151, %152 : vector<8x128xf32>
    %154 = math.tanh %153 : vector<8x128xf32>
    %155 = arith.mulf %150, %154 : vector<8x128xf32>
    %156 = arith.truncf %155 : vector<8x128xf32> to vector<8x128xbf16>
    %c0_35 = arith.constant 0 : index
    %c0_36 = arith.constant 0 : index
    %c0_37 = arith.constant 0 : index
    %157 = vector.load %arg4[%c0_35, %c0_36, %c0_37] : memref<8x128x128xbf16, #tpu.memory_space<vmem>>, vector<1x128x128xbf16>
    %158 = vector.shape_cast %157 : vector<1x128x128xbf16> to vector<128x128xbf16>
    %cst_38 = arith.constant dense<0.000000e+00> : vector<8x128xf32>
    %159 = tpu.matmul %156, %158, %cst_38 {dimension_numbers = #tpu.dot_dimension_numbers<[1], [0], [0], [1], [0, 0, 1, 1], [], []>} : vector<8x128xbf16>, vector<128x128xbf16>, vector<8x128xf32> -> vector<8x128xf32>
    %160 = arith.addf %14, %159 : vector<8x128xf32>
    %c32 = arith.constant 32 : index
    %c0_39 = arith.constant 0 : index
    %161 = vector.load %arg7[%c32, %c0_39] : memref<64x512xf32, #tpu.memory_space<vmem>>, vector<8x512xf32>
    %162 = arith.truncf %155 : vector<8x128xf32> to vector<8x128xbf16>
    %cst_40 = arith.constant dense<0.000000e+00> : vector<8x512xf32>
    %163 = tpu.matmul %162, %8, %cst_40 {dimension_numbers = #tpu.dot_dimension_numbers<[1], [0], [0], [1], [0, 0, 1, 1], [], []>} : vector<8x128xbf16>, vector<128x512xbf16>, vector<8x512xf32> -> vector<8x512xf32>
    %164 = arith.addf %161, %163 : vector<8x512xf32>
    %165 = vector.extract_strided_slice %164 {offsets = [0, 0], sizes = [8, 128], strides = [1, 1]} : vector<8x512xf32> to vector<8x128xf32>
    %166 = arith.negf %165 : vector<8x128xf32>
    %167 = math.exp %166 : vector<8x128xf32>
    %cst_41 = arith.constant 1.000000e+00 : f32
    %168 = vector.broadcast %cst_41 : f32 to vector<8x128xf32>
    %169 = arith.addf %168, %167 : vector<8x128xf32>
    %170 = arith.divf %168, %169 : vector<8x128xf32>
    %171 = vector.extract_strided_slice %164 {offsets = [0, 128], sizes = [8, 128], strides = [1, 1]} : vector<8x512xf32> to vector<8x128xf32>
    %172 = arith.negf %171 : vector<8x128xf32>
    %173 = math.exp %172 : vector<8x128xf32>
    %cst_42 = arith.constant 1.000000e+00 : f32
    %174 = vector.broadcast %cst_42 : f32 to vector<8x128xf32>
    %175 = arith.addf %174, %173 : vector<8x128xf32>
    %176 = arith.divf %174, %175 : vector<8x128xf32>
    %177 = vector.extract_strided_slice %164 {offsets = [0, 256], sizes = [8, 128], strides = [1, 1]} : vector<8x512xf32> to vector<8x128xf32>
    %178 = math.tanh %177 : vector<8x128xf32>
    %179 = vector.extract_strided_slice %164 {offsets = [0, 384], sizes = [8, 128], strides = [1, 1]} : vector<8x512xf32> to vector<8x128xf32>
    %180 = arith.negf %179 : vector<8x128xf32>
    %181 = math.exp %180 : vector<8x128xf32>
    %cst_43 = arith.constant 1.000000e+00 : f32
    %182 = vector.broadcast %cst_43 : f32 to vector<8x128xf32>
    %183 = arith.addf %182, %181 : vector<8x128xf32>
    %184 = arith.divf %182, %183 : vector<8x128xf32>
    %185 = arith.mulf %176, %153 : vector<8x128xf32>
    %186 = arith.mulf %170, %178 : vector<8x128xf32>
    %187 = arith.addf %185, %186 : vector<8x128xf32>
    %188 = math.tanh %187 : vector<8x128xf32>
    %189 = arith.mulf %184, %188 : vector<8x128xf32>
    %190 = arith.truncf %189 : vector<8x128xf32> to vector<8x128xbf16>
    %c1 = arith.constant 1 : index
    %c0_44 = arith.constant 0 : index
    %c0_45 = arith.constant 0 : index
    %191 = vector.load %arg4[%c1, %c0_44, %c0_45] : memref<8x128x128xbf16, #tpu.memory_space<vmem>>, vector<1x128x128xbf16>
    %192 = vector.shape_cast %191 : vector<1x128x128xbf16> to vector<128x128xbf16>
    %cst_46 = arith.constant dense<0.000000e+00> : vector<8x128xf32>
    %193 = tpu.matmul %190, %192, %cst_46 {dimension_numbers = #tpu.dot_dimension_numbers<[1], [0], [0], [1], [0, 0, 1, 1], [], []>} : vector<8x128xbf16>, vector<128x128xbf16>, vector<8x128xf32> -> vector<8x128xf32>
    %194 = arith.addf %160, %193 : vector<8x128xf32>
    %c40 = arith.constant 40 : index
    %c0_47 = arith.constant 0 : index
    %195 = vector.load %arg7[%c40, %c0_47] : memref<64x512xf32, #tpu.memory_space<vmem>>, vector<8x512xf32>
    %196 = arith.truncf %189 : vector<8x128xf32> to vector<8x128xbf16>
    %cst_48 = arith.constant dense<0.000000e+00> : vector<8x512xf32>
    %197 = tpu.matmul %196, %8, %cst_48 {dimension_numbers = #tpu.dot_dimension_numbers<[1], [0], [0], [1], [0, 0, 1, 1], [], []>} : vector<8x128xbf16>, vector<128x512xbf16>, vector<8x512xf32> -> vector<8x512xf32>
    %198 = arith.addf %195, %197 : vector<8x512xf32>
    %199 = vector.extract_strided_slice %198 {offsets = [0, 0], sizes = [8, 128], strides = [1, 1]} : vector<8x512xf32> to vector<8x128xf32>
    %200 = arith.negf %199 : vector<8x128xf32>
    %201 = math.exp %200 : vector<8x128xf32>
    %cst_49 = arith.constant 1.000000e+00 : f32
    %202 = vector.broadcast %cst_49 : f32 to vector<8x128xf32>
    %203 = arith.addf %202, %201 : vector<8x128xf32>
    %204 = arith.divf %202, %203 : vector<8x128xf32>
    %205 = vector.extract_strided_slice %198 {offsets = [0, 128], sizes = [8, 128], strides = [1, 1]} : vector<8x512xf32> to vector<8x128xf32>
    %206 = arith.negf %205 : vector<8x128xf32>
    %207 = math.exp %206 : vector<8x128xf32>
    %cst_50 = arith.constant 1.000000e+00 : f32
    %208 = vector.broadcast %cst_50 : f32 to vector<8x128xf32>
    %209 = arith.addf %208, %207 : vector<8x128xf32>
    %210 = arith.divf %208, %209 : vector<8x128xf32>
    %211 = vector.extract_strided_slice %198 {offsets = [0, 256], sizes = [8, 128], strides = [1, 1]} : vector<8x512xf32> to vector<8x128xf32>
    %212 = math.tanh %211 : vector<8x128xf32>
    %213 = vector.extract_strided_slice %198 {offsets = [0, 384], sizes = [8, 128], strides = [1, 1]} : vector<8x512xf32> to vector<8x128xf32>
    %214 = arith.negf %213 : vector<8x128xf32>
    %215 = math.exp %214 : vector<8x128xf32>
    %cst_51 = arith.constant 1.000000e+00 : f32
    %216 = vector.broadcast %cst_51 : f32 to vector<8x128xf32>
    %217 = arith.addf %216, %215 : vector<8x128xf32>
    %218 = arith.divf %216, %217 : vector<8x128xf32>
    %219 = arith.mulf %210, %187 : vector<8x128xf32>
    %220 = arith.mulf %204, %212 : vector<8x128xf32>
    %221 = arith.addf %219, %220 : vector<8x128xf32>
    %222 = math.tanh %221 : vector<8x128xf32>
    %223 = arith.mulf %218, %222 : vector<8x128xf32>
    %224 = arith.truncf %223 : vector<8x128xf32> to vector<8x128xbf16>
    %c2 = arith.constant 2 : index
    %c0_52 = arith.constant 0 : index
    %c0_53 = arith.constant 0 : index
    %225 = vector.load %arg4[%c2, %c0_52, %c0_53] : memref<8x128x128xbf16, #tpu.memory_space<vmem>>, vector<1x128x128xbf16>
    %226 = vector.shape_cast %225 : vector<1x128x128xbf16> to vector<128x128xbf16>
    %cst_54 = arith.constant dense<0.000000e+00> : vector<8x128xf32>
    %227 = tpu.matmul %224, %226, %cst_54 {dimension_numbers = #tpu.dot_dimension_numbers<[1], [0], [0], [1], [0, 0, 1, 1], [], []>} : vector<8x128xbf16>, vector<128x128xbf16>, vector<8x128xf32> -> vector<8x128xf32>
    %228 = arith.addf %194, %227 : vector<8x128xf32>
    %c48 = arith.constant 48 : index
    %c0_55 = arith.constant 0 : index
    %229 = vector.load %arg7[%c48, %c0_55] : memref<64x512xf32, #tpu.memory_space<vmem>>, vector<8x512xf32>
    %230 = arith.truncf %223 : vector<8x128xf32> to vector<8x128xbf16>
    %cst_56 = arith.constant dense<0.000000e+00> : vector<8x512xf32>
    %231 = tpu.matmul %230, %8, %cst_56 {dimension_numbers = #tpu.dot_dimension_numbers<[1], [0], [0], [1], [0, 0, 1, 1], [], []>} : vector<8x128xbf16>, vector<128x512xbf16>, vector<8x512xf32> -> vector<8x512xf32>
    %232 = arith.addf %229, %231 : vector<8x512xf32>
    %233 = vector.extract_strided_slice %232 {offsets = [0, 0], sizes = [8, 128], strides = [1, 1]} : vector<8x512xf32> to vector<8x128xf32>
    %234 = arith.negf %233 : vector<8x128xf32>
    %235 = math.exp %234 : vector<8x128xf32>
    %cst_57 = arith.constant 1.000000e+00 : f32
    %236 = vector.broadcast %cst_57 : f32 to vector<8x128xf32>
    %237 = arith.addf %236, %235 : vector<8x128xf32>
    %238 = arith.divf %236, %237 : vector<8x128xf32>
    %239 = vector.extract_strided_slice %232 {offsets = [0, 128], sizes = [8, 128], strides = [1, 1]} : vector<8x512xf32> to vector<8x128xf32>
    %240 = arith.negf %239 : vector<8x128xf32>
    %241 = math.exp %240 : vector<8x128xf32>
    %cst_58 = arith.constant 1.000000e+00 : f32
    %242 = vector.broadcast %cst_58 : f32 to vector<8x128xf32>
    %243 = arith.addf %242, %241 : vector<8x128xf32>
    %244 = arith.divf %242, %243 : vector<8x128xf32>
    %245 = vector.extract_strided_slice %232 {offsets = [0, 256], sizes = [8, 128], strides = [1, 1]} : vector<8x512xf32> to vector<8x128xf32>
    %246 = math.tanh %245 : vector<8x128xf32>
    %247 = vector.extract_strided_slice %232 {offsets = [0, 384], sizes = [8, 128], strides = [1, 1]} : vector<8x512xf32> to vector<8x128xf32>
    %248 = arith.negf %247 : vector<8x128xf32>
    %249 = math.exp %248 : vector<8x128xf32>
    %cst_59 = arith.constant 1.000000e+00 : f32
    %250 = vector.broadcast %cst_59 : f32 to vector<8x128xf32>
    %251 = arith.addf %250, %249 : vector<8x128xf32>
    %252 = arith.divf %250, %251 : vector<8x128xf32>
    %253 = arith.mulf %244, %221 : vector<8x128xf32>
    %254 = arith.mulf %238, %246 : vector<8x128xf32>
    %255 = arith.addf %253, %254 : vector<8x128xf32>
    %256 = math.tanh %255 : vector<8x128xf32>
    %257 = arith.mulf %252, %256 : vector<8x128xf32>
    %258 = arith.truncf %257 : vector<8x128xf32> to vector<8x128xbf16>
    %c3 = arith.constant 3 : index
    %c0_60 = arith.constant 0 : index
    %c0_61 = arith.constant 0 : index
    %259 = vector.load %arg4[%c3, %c0_60, %c0_61] : memref<8x128x128xbf16, #tpu.memory_space<vmem>>, vector<1x128x128xbf16>
    %260 = vector.shape_cast %259 : vector<1x128x128xbf16> to vector<128x128xbf16>
    %cst_62 = arith.constant dense<0.000000e+00> : vector<8x128xf32>
    %261 = tpu.matmul %258, %260, %cst_62 {dimension_numbers = #tpu.dot_dimension_numbers<[1], [0], [0], [1], [0, 0, 1, 1], [], []>} : vector<8x128xbf16>, vector<128x128xbf16>, vector<8x128xf32> -> vector<8x128xf32>
    %262 = arith.addf %228, %261 : vector<8x128xf32>
    %c56 = arith.constant 56 : index
    %c0_63 = arith.constant 0 : index
    %263 = vector.load %arg7[%c56, %c0_63] : memref<64x512xf32, #tpu.memory_space<vmem>>, vector<8x512xf32>
    %264 = arith.truncf %257 : vector<8x128xf32> to vector<8x128xbf16>
    %cst_64 = arith.constant dense<0.000000e+00> : vector<8x512xf32>
    %265 = tpu.matmul %264, %8, %cst_64 {dimension_numbers = #tpu.dot_dimension_numbers<[1], [0], [0], [1], [0, 0, 1, 1], [], []>} : vector<8x128xbf16>, vector<128x512xbf16>, vector<8x512xf32> -> vector<8x512xf32>
    %266 = arith.addf %263, %265 : vector<8x512xf32>
    %267 = vector.extract_strided_slice %266 {offsets = [0, 0], sizes = [8, 128], strides = [1, 1]} : vector<8x512xf32> to vector<8x128xf32>
    %268 = arith.negf %267 : vector<8x128xf32>
    %269 = math.exp %268 : vector<8x128xf32>
    %cst_65 = arith.constant 1.000000e+00 : f32
    %270 = vector.broadcast %cst_65 : f32 to vector<8x128xf32>
    %271 = arith.addf %270, %269 : vector<8x128xf32>
    %272 = arith.divf %270, %271 : vector<8x128xf32>
    %273 = vector.extract_strided_slice %266 {offsets = [0, 128], sizes = [8, 128], strides = [1, 1]} : vector<8x512xf32> to vector<8x128xf32>
    %274 = arith.negf %273 : vector<8x128xf32>
    %275 = math.exp %274 : vector<8x128xf32>
    %cst_66 = arith.constant 1.000000e+00 : f32
    %276 = vector.broadcast %cst_66 : f32 to vector<8x128xf32>
    %277 = arith.addf %276, %275 : vector<8x128xf32>
    %278 = arith.divf %276, %277 : vector<8x128xf32>
    %279 = vector.extract_strided_slice %266 {offsets = [0, 256], sizes = [8, 128], strides = [1, 1]} : vector<8x512xf32> to vector<8x128xf32>
    %280 = math.tanh %279 : vector<8x128xf32>
    %281 = vector.extract_strided_slice %266 {offsets = [0, 384], sizes = [8, 128], strides = [1, 1]} : vector<8x512xf32> to vector<8x128xf32>
    %282 = arith.negf %281 : vector<8x128xf32>
    %283 = math.exp %282 : vector<8x128xf32>
    %cst_67 = arith.constant 1.000000e+00 : f32
    %284 = vector.broadcast %cst_67 : f32 to vector<8x128xf32>
    %285 = arith.addf %284, %283 : vector<8x128xf32>
    %286 = arith.divf %284, %285 : vector<8x128xf32>
    %287 = arith.mulf %278, %255 : vector<8x128xf32>
    %288 = arith.mulf %272, %280 : vector<8x128xf32>
    %289 = arith.addf %287, %288 : vector<8x128xf32>
    %290 = math.tanh %289 : vector<8x128xf32>
    %291 = arith.mulf %286, %290 : vector<8x128xf32>
    %292 = arith.truncf %291 : vector<8x128xf32> to vector<8x128xbf16>
    %c4 = arith.constant 4 : index
    %c0_68 = arith.constant 0 : index
    %c0_69 = arith.constant 0 : index
    %293 = vector.load %arg4[%c4, %c0_68, %c0_69] : memref<8x128x128xbf16, #tpu.memory_space<vmem>>, vector<1x128x128xbf16>
    %294 = vector.shape_cast %293 : vector<1x128x128xbf16> to vector<128x128xbf16>
    %cst_70 = arith.constant dense<0.000000e+00> : vector<8x128xf32>
    %295 = tpu.matmul %292, %294, %cst_70 {dimension_numbers = #tpu.dot_dimension_numbers<[1], [0], [0], [1], [0, 0, 1, 1], [], []>} : vector<8x128xbf16>, vector<128x128xbf16>, vector<8x128xf32> -> vector<8x128xf32>
    %296 = arith.addf %262, %295 : vector<8x128xf32>
    %c56_71 = arith.constant 56 : index
    %c0_72 = arith.constant 0 : index
    %297 = vector.load %arg7[%c56_71, %c0_72] : memref<64x512xf32, #tpu.memory_space<vmem>>, vector<8x512xf32>
    %298 = arith.truncf %291 : vector<8x128xf32> to vector<8x128xbf16>
    %cst_73 = arith.constant dense<0.000000e+00> : vector<8x512xf32>
    %299 = tpu.matmul %298, %8, %cst_73 {dimension_numbers = #tpu.dot_dimension_numbers<[1], [0], [0], [1], [0, 0, 1, 1], [], []>} : vector<8x128xbf16>, vector<128x512xbf16>, vector<8x512xf32> -> vector<8x512xf32>
    %300 = arith.addf %297, %299 : vector<8x512xf32>
    %301 = vector.extract_strided_slice %300 {offsets = [0, 0], sizes = [8, 128], strides = [1, 1]} : vector<8x512xf32> to vector<8x128xf32>
    %302 = arith.negf %301 : vector<8x128xf32>
    %303 = math.exp %302 : vector<8x128xf32>
    %cst_74 = arith.constant 1.000000e+00 : f32
    %304 = vector.broadcast %cst_74 : f32 to vector<8x128xf32>
    %305 = arith.addf %304, %303 : vector<8x128xf32>
    %306 = arith.divf %304, %305 : vector<8x128xf32>
    %307 = vector.extract_strided_slice %300 {offsets = [0, 128], sizes = [8, 128], strides = [1, 1]} : vector<8x512xf32> to vector<8x128xf32>
    %308 = arith.negf %307 : vector<8x128xf32>
    %309 = math.exp %308 : vector<8x128xf32>
    %cst_75 = arith.constant 1.000000e+00 : f32
    %310 = vector.broadcast %cst_75 : f32 to vector<8x128xf32>
    %311 = arith.addf %310, %309 : vector<8x128xf32>
    %312 = arith.divf %310, %311 : vector<8x128xf32>
    %313 = vector.extract_strided_slice %300 {offsets = [0, 256], sizes = [8, 128], strides = [1, 1]} : vector<8x512xf32> to vector<8x128xf32>
    %314 = math.tanh %313 : vector<8x128xf32>
    %315 = vector.extract_strided_slice %300 {offsets = [0, 384], sizes = [8, 128], strides = [1, 1]} : vector<8x512xf32> to vector<8x128xf32>
    %316 = arith.negf %315 : vector<8x128xf32>
    %317 = math.exp %316 : vector<8x128xf32>
    %cst_76 = arith.constant 1.000000e+00 : f32
    %318 = vector.broadcast %cst_76 : f32 to vector<8x128xf32>
    %319 = arith.addf %318, %317 : vector<8x128xf32>
    %320 = arith.divf %318, %319 : vector<8x128xf32>
    %321 = arith.mulf %312, %289 : vector<8x128xf32>
    %322 = arith.mulf %306, %314 : vector<8x128xf32>
    %323 = arith.addf %321, %322 : vector<8x128xf32>
    %324 = math.tanh %323 : vector<8x128xf32>
    %325 = arith.mulf %320, %324 : vector<8x128xf32>
    %326 = arith.truncf %325 : vector<8x128xf32> to vector<8x128xbf16>
    %c5 = arith.constant 5 : index
    %c0_77 = arith.constant 0 : index
    %c0_78 = arith.constant 0 : index
    %327 = vector.load %arg4[%c5, %c0_77, %c0_78] : memref<8x128x128xbf16, #tpu.memory_space<vmem>>, vector<1x128x128xbf16>
    %328 = vector.shape_cast %327 : vector<1x128x128xbf16> to vector<128x128xbf16>
    %cst_79 = arith.constant dense<0.000000e+00> : vector<8x128xf32>
    %329 = tpu.matmul %326, %328, %cst_79 {dimension_numbers = #tpu.dot_dimension_numbers<[1], [0], [0], [1], [0, 0, 1, 1], [], []>} : vector<8x128xbf16>, vector<128x128xbf16>, vector<8x128xf32> -> vector<8x128xf32>
    %330 = arith.addf %296, %329 : vector<8x128xf32>
    %c56_80 = arith.constant 56 : index
    %c0_81 = arith.constant 0 : index
    %331 = vector.load %arg7[%c56_80, %c0_81] : memref<64x512xf32, #tpu.memory_space<vmem>>, vector<8x512xf32>
    %332 = arith.truncf %325 : vector<8x128xf32> to vector<8x128xbf16>
    %cst_82 = arith.constant dense<0.000000e+00> : vector<8x512xf32>
    %333 = tpu.matmul %332, %8, %cst_82 {dimension_numbers = #tpu.dot_dimension_numbers<[1], [0], [0], [1], [0, 0, 1, 1], [], []>} : vector<8x128xbf16>, vector<128x512xbf16>, vector<8x512xf32> -> vector<8x512xf32>
    %334 = arith.addf %331, %333 : vector<8x512xf32>
    %335 = vector.extract_strided_slice %334 {offsets = [0, 0], sizes = [8, 128], strides = [1, 1]} : vector<8x512xf32> to vector<8x128xf32>
    %336 = arith.negf %335 : vector<8x128xf32>
    %337 = math.exp %336 : vector<8x128xf32>
    %cst_83 = arith.constant 1.000000e+00 : f32
    %338 = vector.broadcast %cst_83 : f32 to vector<8x128xf32>
    %339 = arith.addf %338, %337 : vector<8x128xf32>
    %340 = arith.divf %338, %339 : vector<8x128xf32>
    %341 = vector.extract_strided_slice %334 {offsets = [0, 128], sizes = [8, 128], strides = [1, 1]} : vector<8x512xf32> to vector<8x128xf32>
    %342 = arith.negf %341 : vector<8x128xf32>
    %343 = math.exp %342 : vector<8x128xf32>
    %cst_84 = arith.constant 1.000000e+00 : f32
    %344 = vector.broadcast %cst_84 : f32 to vector<8x128xf32>
    %345 = arith.addf %344, %343 : vector<8x128xf32>
    %346 = arith.divf %344, %345 : vector<8x128xf32>
    %347 = vector.extract_strided_slice %334 {offsets = [0, 256], sizes = [8, 128], strides = [1, 1]} : vector<8x512xf32> to vector<8x128xf32>
    %348 = math.tanh %347 : vector<8x128xf32>
    %349 = vector.extract_strided_slice %334 {offsets = [0, 384], sizes = [8, 128], strides = [1, 1]} : vector<8x512xf32> to vector<8x128xf32>
    %350 = arith.negf %349 : vector<8x128xf32>
    %351 = math.exp %350 : vector<8x128xf32>
    %cst_85 = arith.constant 1.000000e+00 : f32
    %352 = vector.broadcast %cst_85 : f32 to vector<8x128xf32>
    %353 = arith.addf %352, %351 : vector<8x128xf32>
    %354 = arith.divf %352, %353 : vector<8x128xf32>
    %355 = arith.mulf %346, %323 : vector<8x128xf32>
    %356 = arith.mulf %340, %348 : vector<8x128xf32>
    %357 = arith.addf %355, %356 : vector<8x128xf32>
    %358 = math.tanh %357 : vector<8x128xf32>
    %359 = arith.mulf %354, %358 : vector<8x128xf32>
    %360 = arith.truncf %359 : vector<8x128xf32> to vector<8x128xbf16>
    %c6 = arith.constant 6 : index
    %c0_86 = arith.constant 0 : index
    %c0_87 = arith.constant 0 : index
    %361 = vector.load %arg4[%c6, %c0_86, %c0_87] : memref<8x128x128xbf16, #tpu.memory_space<vmem>>, vector<1x128x128xbf16>
    %362 = vector.shape_cast %361 : vector<1x128x128xbf16> to vector<128x128xbf16>
    %cst_88 = arith.constant dense<0.000000e+00> : vector<8x128xf32>
    %363 = tpu.matmul %360, %362, %cst_88 {dimension_numbers = #tpu.dot_dimension_numbers<[1], [0], [0], [1], [0, 0, 1, 1], [], []>} : vector<8x128xbf16>, vector<128x128xbf16>, vector<8x128xf32> -> vector<8x128xf32>
    %364 = arith.addf %330, %363 : vector<8x128xf32>
    %c56_89 = arith.constant 56 : index
    %c0_90 = arith.constant 0 : index
    %365 = vector.load %arg7[%c56_89, %c0_90] : memref<64x512xf32, #tpu.memory_space<vmem>>, vector<8x512xf32>
    %366 = arith.truncf %359 : vector<8x128xf32> to vector<8x128xbf16>
    %cst_91 = arith.constant dense<0.000000e+00> : vector<8x512xf32>
    %367 = tpu.matmul %366, %8, %cst_91 {dimension_numbers = #tpu.dot_dimension_numbers<[1], [0], [0], [1], [0, 0, 1, 1], [], []>} : vector<8x128xbf16>, vector<128x512xbf16>, vector<8x512xf32> -> vector<8x512xf32>
    %368 = arith.addf %365, %367 : vector<8x512xf32>
    %369 = vector.extract_strided_slice %368 {offsets = [0, 0], sizes = [8, 128], strides = [1, 1]} : vector<8x512xf32> to vector<8x128xf32>
    %370 = arith.negf %369 : vector<8x128xf32>
    %371 = math.exp %370 : vector<8x128xf32>
    %cst_92 = arith.constant 1.000000e+00 : f32
    %372 = vector.broadcast %cst_92 : f32 to vector<8x128xf32>
    %373 = arith.addf %372, %371 : vector<8x128xf32>
    %374 = arith.divf %372, %373 : vector<8x128xf32>
    %375 = vector.extract_strided_slice %368 {offsets = [0, 128], sizes = [8, 128], strides = [1, 1]} : vector<8x512xf32> to vector<8x128xf32>
    %376 = arith.negf %375 : vector<8x128xf32>
    %377 = math.exp %376 : vector<8x128xf32>
    %cst_93 = arith.constant 1.000000e+00 : f32
    %378 = vector.broadcast %cst_93 : f32 to vector<8x128xf32>
    %379 = arith.addf %378, %377 : vector<8x128xf32>
    %380 = arith.divf %378, %379 : vector<8x128xf32>
    %381 = vector.extract_strided_slice %368 {offsets = [0, 256], sizes = [8, 128], strides = [1, 1]} : vector<8x512xf32> to vector<8x128xf32>
    %382 = math.tanh %381 : vector<8x128xf32>
    %383 = vector.extract_strided_slice %368 {offsets = [0, 384], sizes = [8, 128], strides = [1, 1]} : vector<8x512xf32> to vector<8x128xf32>
    %384 = arith.negf %383 : vector<8x128xf32>
    %385 = math.exp %384 : vector<8x128xf32>
    %cst_94 = arith.constant 1.000000e+00 : f32
    %386 = vector.broadcast %cst_94 : f32 to vector<8x128xf32>
    %387 = arith.addf %386, %385 : vector<8x128xf32>
    %388 = arith.divf %386, %387 : vector<8x128xf32>
    %389 = arith.mulf %380, %357 : vector<8x128xf32>
    %390 = arith.mulf %374, %382 : vector<8x128xf32>
    %391 = arith.addf %389, %390 : vector<8x128xf32>
    %392 = math.tanh %391 : vector<8x128xf32>
    %393 = arith.mulf %388, %392 : vector<8x128xf32>
    %394 = arith.truncf %393 : vector<8x128xf32> to vector<8x128xbf16>
    %c7 = arith.constant 7 : index
    %c0_95 = arith.constant 0 : index
    %c0_96 = arith.constant 0 : index
    %395 = vector.load %arg4[%c7, %c0_95, %c0_96] : memref<8x128x128xbf16, #tpu.memory_space<vmem>>, vector<1x128x128xbf16>
    %396 = vector.shape_cast %395 : vector<1x128x128xbf16> to vector<128x128xbf16>
    %cst_97 = arith.constant dense<0.000000e+00> : vector<8x128xf32>
    %397 = tpu.matmul %394, %396, %cst_97 {dimension_numbers = #tpu.dot_dimension_numbers<[1], [0], [0], [1], [0, 0, 1, 1], [], []>} : vector<8x128xbf16>, vector<128x128xbf16>, vector<8x128xf32> -> vector<8x128xf32>
    %398 = arith.addf %364, %397 : vector<8x128xf32>
    %399 = arith.negf %398 : vector<8x128xf32>
    %400 = math.exp %399 : vector<8x128xf32>
    %cst_98 = arith.constant 1.000000e+00 : f32
    %401 = vector.broadcast %cst_98 : f32 to vector<8x128xf32>
    %402 = arith.addf %401, %400 : vector<8x128xf32>
    %403 = arith.divf %401, %402 : vector<8x128xf32>
    %c0_99 = arith.constant 0 : index
    %c0_100 = arith.constant 0 : index
    %404 = vector.load %arg6[%c0_99, %c0_100] : memref<8x128xf32, #tpu.memory_space<vmem>>, vector<8x128xf32>
    tpu.vector_store %arg6[%c0_99, %c0_100], %403 {strides = array<i32>} : memref<8x128xf32, #tpu.memory_space<vmem>>, vector<8x128xf32>,
    return
  }
}

</mosaic_0001>

<llo_original>
// kernel: mv_lstm_forward.1
$region0: #{mv_lstm_forward.1}
  #allocation0 [shape = 'u32[]', space=smem, size = 0x4, offset = 0x4, fixed_abs, tag = 'smem constant byte address 0x4 - core index']
  #allocation1 [shape = 'u32[144,128]{1,0:T(1,128)}', space=vmem, size = 0x12000, scoped, tag = 'internal scratch']
  #allocation2 [shape = 'f32[64,512]{1,0:T(8,128)}', space=vmem, size = 0x20000, scoped, tag = 'scratch operand']
  %s0 = inlined_call_operand.vmem [shape: f32[64,8], index: 0, kind: input, shape index: {}]
  %s1 = inlined_call_operand.vmem [shape: bf16[8,512], index: 1, kind: input, shape index: {}]
  %s2 = inlined_call_operand.hbm [shape: bf16[128,512], index: 2, kind: input, shape index: {}]
  %s3 = inlined_call_operand.vmem [shape: f32[1,512], index: 3, kind: input, shape index: {}]
  %s4 = inlined_call_operand.hbm [shape: bf16[8,128,128], index: 4, kind: input, shape index: {}]
  %s5 = inlined_call_operand.vmem [shape: f32[1,128], index: 5, kind: input, shape index: {}]
  %s6 = inlined_call_operand.hbm [shape: f32[8,128], index: 6, kind: output, shape index: {}]
  %s7 = sld [smem:[#allocation0]]
  $region42: #{mv_lstm_forward.1} parent=0
    _
  %s9 = ssub.s32 1, %s7
  %s10 = scalar_select 0, %s9, %s7
  $region1: #{mv_lstm_forward.1} parent=0
    #allocation3 [shape = 'u8[131072]{0}', space=vmem, size = 0x20000, scoped, tag = 'input window, operand 2, single buffered']
    #allocation4 [shape = 's32[1]{0}', space=sflag, size = 0x4, scoped, tag = 'scoped memory for mv_lstm_forward.1']
    #allocation5 [shape = 's32[1]{0}', space=sflag, size = 0x4, scoped, tag = 'scoped memory for mv_lstm_forward.1']
    #allocation6 [shape = 'u8[262144]{0}', space=vmem, size = 0x40000, scoped, tag = 'input window, operand 4, single buffered']
    #allocation7 [shape = 's32[1]{0}', space=sflag, size = 0x4, scoped, tag = 'scoped memory for mv_lstm_forward.1']
    #allocation8 [shape = 'u8[4096]{0}', space=vmem, size = 0x1000, scoped, tag = 'output window, operand 0, single buffered']
    %11 = vsyncpa [#allocation4], 0
    %12 = vsyncpa [#allocation7], 0
    %13 = vsyncpa [#allocation5], 0
    // Predicated region
    $region2: #{mv_lstm_forward.1} parent=1 // pred_check
      _
    $region3: #{mv_lstm_forward.1} parent=1 // pred_check_branch
      %15 = sbr.rel (0) target = $region5
    $region4: #{mv_lstm_forward.1} parent=1 // pred_region
      _
    $region5: #{mv_lstm_forward.1} parent=1 // pred_fallthru
      _
    // Predicated region
    $region6: #{mv_lstm_forward.1} parent=1 // pred_check
      _
    $region7: #{mv_lstm_forward.1} parent=1 // pred_check_branch
      %17 = sbr.rel (0) target = $region9
    $region8: #{mv_lstm_forward.1} parent=1 // pred_region
      _
    $region9: #{mv_lstm_forward.1} parent=1 // pred_fallthru
      _
    // Predicated region
    $region10: #{mv_lstm_forward.1} parent=1 // pred_check
      _
    $region11: #{mv_lstm_forward.1} parent=1 // pred_check_branch
      %19 = sbr.rel (0) target = $region13
    $region12: #{mv_lstm_forward.1} parent=1 // pred_region
      %s21 = ssub.s32 4096, 4096
      %22 = vsyncadd [#allocation4], %s21
      %s23 = sshll.u32 [#allocation3], 4
      %s24 = int_to_ptr.vmem [resolvable:$true] %s23
      %29 = dma.hbm_to_vmem [thread:$0]  %s2, 4096, %s24, [#allocation4], 256, 256, 16
    $region13: #{mv_lstm_forward.1} parent=1 // pred_fallthru
      _
    // Predicated region
    $region14: #{mv_lstm_forward.1} parent=1 // pred_check
      _
    $region15: #{mv_lstm_forward.1} parent=1 // pred_check_branch
      %31 = sbr.rel (0) target = $region17
    $region16: #{mv_lstm_forward.1} parent=1 // pred_region
      _
    $region17: #{mv_lstm_forward.1} parent=1 // pred_fallthru
      _
    // Predicated region
    $region18: #{mv_lstm_forward.1} parent=1 // pred_check
      _
    $region19: #{mv_lstm_forward.1} parent=1 // pred_check_branch
      %33 = sbr.rel (0) target = $region21
    $region20: #{mv_lstm_forward.1} parent=1 // pred_region
      %s35 = ssub.s32 8192, 8192
      %36 = vsyncadd [#allocation7], %s35
      %s37 = sshll.u32 [#allocation6], 4
      %s38 = int_to_ptr.vmem [resolvable:$true] %s37
      %43 = dma.hbm_to_vmem [thread:$0]  %s4, 8192, %s38, [#allocation7], 64, 64, 4
    $region21: #{mv_lstm_forward.1} parent=1 // pred_fallthru
      _
    // Predicated region
    $region22: #{mv_lstm_forward.1} parent=1 // pred_check
      _
    $region23: #{mv_lstm_forward.1} parent=1 // pred_check_branch
      %45 = sbr.rel (0) target = $region25
    $region24: #{mv_lstm_forward.1} parent=1 // pred_region
      _
    $region25: #{mv_lstm_forward.1} parent=1 // pred_fallthru
      _
    // Predicated region
    $region26: #{mv_lstm_forward.1} parent=1 // pred_check
      _
    $region27: #{mv_lstm_forward.1} parent=1 // pred_check_branch
      %47 = sbr.rel (0) target = $region29
    $region28: #{mv_lstm_forward.1} parent=1 // pred_region
      %48 = dma.done [#allocation4], 4096
    $region29: #{mv_lstm_forward.1} parent=1 // pred_fallthru
      _
    // Predicated region
    $region30: #{mv_lstm_forward.1} parent=1 // pred_check
      _
    $region31: #{mv_lstm_forward.1} parent=1 // pred_check_branch
      %50 = sbr.rel (0) target = $region33
    $region32: #{mv_lstm_forward.1} parent=1 // pred_region
      %51 = dma.done [#allocation7], 8192
    $region33: #{mv_lstm_forward.1} parent=1 // pred_fallthru
      _
    %v53 = vld [vmem:[%s0] sm:$0xff]
    %v54 = vld [vmem:[%s0 + $0x8] sm:$0xff]
    %v55 = vld [vmem:[%s0 + $0x10] sm:$0xff]
    %v56 = vld [vmem:[%s0 + $0x18] sm:$0xff]
    %v57 = vld [vmem:[%s0 + $0x20] sm:$0xff]
    %v58 = vld [vmem:[%s0 + $0x28] sm:$0xff]
    %v59 = vld [vmem:[%s0 + $0x30] sm:$0xff]
    %v60 = vld [vmem:[%s0 + $0x38] sm:$0xff]
    %v61 = vpack.c.bf16 %v54, %v53
    %v62 = vpack.c.bf16 %v56, %v55
    %v63 = vpack.c.bf16 %v58, %v57
    %v64 = vpack.c.bf16 %v60, %v59
    %v65 = vld [vmem:[%s1] sm:$0xff]
    %v66 = vld [vmem:[%s1 + $0x8] sm:$0xff]
    %v67 = vld [vmem:[%s3] sm:$0xf]
    %v69 = vlaneseq
    %v70 = vshrl.u32 %v69, 7
    %v71 = vsub.s32 0, %v70
    %v72 = vrot.slane %v67, %v71
    %v73 = vlaneseq
    %v74 = vshrl.u32 %v73, 7
    %v75 = vsub.s32 1, %v74
    %v76 = vrot.slane %v67, %v75
    %v77 = vlaneseq
    %v78 = vshrl.u32 %v77, 7
    %v79 = vsub.s32 2, %v78
    %v80 = vrot.slane %v67, %v79
    %v81 = vlaneseq
    %v82 = vshrl.u32 %v81, 7
    %v83 = vsub.s32 3, %v82
    %v84 = vrot.slane %v67, %v83
    %v91 = vunpack.c.l.b16 %v65
    %v92 = vunpack.c.h.b16 %v65
    %v93 = vunpack.c.l.b16 %v66
    %v94 = vunpack.c.h.b16 %v66
    %v95 = vpack.c.b16 %v91, %v91
    %v96 = vpack.c.b16 %v92, %v92
    %v97 = vpack.c.b16 %v93, %v93
    %v98 = vpack.c.b16 %v94, %v94
    %vm99 = vcmask 64512
    %v101 = vsel %vm99, %v61, 0
    %v104 = vsel %vm99, %v62, 0
    %v107 = vsel %vm99, %v63, 0
    %v110 = vsel %vm99, %v64, 0
    %vm112 = vcmask 1043456
    %v114 = vsel %vm112, %v95, 0
    %v117 = vsel %vm112, %v96, 0
    %v120 = vsel %vm112, %v97, 0
    %v123 = vsel %vm112, %v98, 0
    %125 = vmatprep.subr.bf16.mxu0 0
    %126 = vmatpush1.bf16.msra.mxu0 0
    %127 = vmatprep.subr.bf16.mxu0 0
    %128 = vmatpush1.bf16.msra.mxu0 0
    %129 = vmatprep.subr.bf16.mxu0 0
    %130 = vmatpush1.bf16.msra.mxu0 0
    %131 = vmatprep.subr.bf16.mxu0 0
    %132 = vmatpush1.bf16.msra.mxu0 0
    %133 = vmatprep.subr.bf16.mxu0 0
    %134 = vmatpush1.bf16.msra.mxu0 0
    %135 = vmatprep.subr.bf16.mxu0 0
    %136 = vmatpush1.bf16.msra.mxu0 0
    %137 = vmatprep.subr.bf16.mxu0 0
    %138 = vmatpush1.bf16.msra.mxu0 0
    %139 = vmatprep.subr.bf16.mxu0 %v117
    %140 = vmatpush1.bf16.msra.mxu0 %v114
    %141 = vmatprep.subr.bf16.mxu0 0
    %142 = vmatpush2.bf16.msra.mxu0 0
    %143 = vmatprep.subr.bf16.mxu0 0
    %144 = vmatpush2.bf16.msra.mxu0 0
    %145 = vmatprep.subr.bf16.mxu0 0
    %146 = vmatpush2.bf16.msra.mxu0 0
    %147 = vmatprep.subr.bf16.mxu0 0
    %148 = vmatpush2.bf16.msra.mxu0 0
    %149 = vmatprep.subr.bf16.mxu0 0
    %150 = vmatpush2.bf16.msra.mxu0 0
    %151 = vmatprep.subr.bf16.mxu0 0
    %152 = vmatpush2.bf16.msra.mxu0 0
    %153 = vmatprep.subr.bf16.mxu0 0
    %154 = vmatpush2.bf16.msra.mxu0 0
    %155 = vmatprep.subr.bf16.mxu0 0
    %156 = vmatpush2.bf16.msra.mxu0 0
    %157 = vmatprep.mubr.bf16.mxu0 0
    %158 = vmatmul.mubr.bf16.gmra.mxu0 %v101
    %v159 = vpop.f32.mrf.mxu0
    %v160 = vadd.f32 %v72, %v159
    %v161 = vpop.f32.mrf.mxu0
    %v162 = vadd.f32 %v76, %v161
    %v163 = vpop.f32.mrf.mxu0
    %v164 = vadd.f32 %v72, %v163
    %v165 = vpop.f32.mrf.mxu0
    %v166 = vadd.f32 %v76, %v165
    %167 = vmatprep.mubr.bf16.mxu0 0
    %168 = vmatmul.mubr.bf16.gmra.mxu0 %v104
    %v169 = vpop.f32.mrf.mxu0
    %v170 = vadd.f32 %v72, %v169
    %v171 = vpop.f32.mrf.mxu0
    %v172 = vadd.f32 %v76, %v171
    %v173 = vpop.f32.mrf.mxu0
    %v174 = vadd.f32 %v72, %v173
    %v175 = vpop.f32.mrf.mxu0
    %v176 = vadd.f32 %v76, %v175
    %177 = vmatprep.mubr.bf16.mxu0 0
    %178 = vmatmul.mubr.bf16.gmra.mxu0 %v107
    %v179 = vpop.f32.mrf.mxu0
    %v180 = vadd.f32 %v72, %v179
    %v181 = vpop.f32.mrf.mxu0
    %v182 = vadd.f32 %v76, %v181
    %v183 = vpop.f32.mrf.mxu0
    %v184 = vadd.f32 %v72, %v183
    %v185 = vpop.f32.mrf.mxu0
    %v186 = vadd.f32 %v76, %v185
    %187 = vmatprep.mubr.bf16.mxu0 0
    %188 = vmatmul.mubr.bf16.gmra.mxu0 %v110
    %v189 = vpop.f32.mrf.mxu0
    %v190 = vadd.f32 %v72, %v189
    %v191 = vpop.f32.mrf.mxu0
    %v192 = vadd.f32 %v76, %v191
    %v193 = vpop.f32.mrf.mxu0
    %v194 = vadd.f32 %v72, %v193
    %v195 = vpop.f32.mrf.mxu0
    %v196 = vadd.f32 %v76, %v195
    %197 = vdwg.mxu0
    %198 = vmatprep.subr.bf16.mxu0 0
    %199 = vmatpush1.bf16.msra.mxu0 0
    %200 = vmatprep.subr.bf16.mxu0 0
    %201 = vmatpush1.bf16.msra.mxu0 0
    %202 = vmatprep.subr.bf16.mxu0 0
    %203 = vmatpush1.bf16.msra.mxu0 0
    %204 = vmatprep.subr.bf16.mxu0 0
    %205 = vmatpush1.bf16.msra.mxu0 0
    %206 = vmatprep.subr.bf16.mxu0 0
    %207 = vmatpush1.bf16.msra.mxu0 0
    %208 = vmatprep.subr.bf16.mxu0 0
    %209 = vmatpush1.bf16.msra.mxu0 0
    %210 = vmatprep.subr.bf16.mxu0 0
    %211 = vmatpush1.bf16.msra.mxu0 0
    %212 = vmatprep.subr.bf16.mxu0 %v123
    %213 = vmatpush1.bf16.msra.mxu0 %v120
    %214 = vmatprep.subr.bf16.mxu0 0
    %215 = vmatpush2.bf16.msra.mxu0 0
    %216 = vmatprep.subr.bf16.mxu0 0
    %217 = vmatpush2.bf16.msra.mxu0 0
    %218 = vmatprep.subr.bf16.mxu0 0
    %219 = vmatpush2.bf16.msra.mxu0 0
    %220 = vmatprep.subr.bf16.mxu0 0
    %221 = vmatpush2.bf16.msra.mxu0 0
    %222 = vmatprep.subr.bf16.mxu0 0
    %223 = vmatpush2.bf16.msra.mxu0 0
    %224 = vmatprep.subr.bf16.mxu0 0
    %225 = vmatpush2.bf16.msra.mxu0 0
    %226 = vmatprep.subr.bf16.mxu0 0
    %227 = vmatpush2.bf16.msra.mxu0 0
    %228 = vmatprep.subr.bf16.mxu0 0
    %229 = vmatpush2.bf16.msra.mxu0 0
    %230 = vmatprep.mubr.bf16.mxu0 0
    %231 = vmatmul.mubr.bf16.gmra.mxu0 %v101
    %v232 = vpop.f32.mrf.mxu0
    %v233 = vadd.f32 %v80, %v232
    %v234 = vpop.f32.mrf.mxu0
    %v235 = vadd.f32 %v84, %v234
    %v236 = vpop.f32.mrf.mxu0
    %v237 = vadd.f32 %v80, %v236
    %v238 = vpop.f32.mrf.mxu0
    %v239 = vadd.f32 %v84, %v238
    %240 = vmatprep.mubr.bf16.mxu0 0
    %241 = vmatmul.mubr.bf16.gmra.mxu0 %v104
    %v242 = vpop.f32.mrf.mxu0
    %v243 = vadd.f32 %v80, %v242
    %v244 = vpop.f32.mrf.mxu0
    %v245 = vadd.f32 %v84, %v244
    %v246 = vpop.f32.mrf.mxu0
    %v247 = vadd.f32 %v80, %v246
    %v248 = vpop.f32.mrf.mxu0
    %v249 = vadd.f32 %v84, %v248
    %250 = vmatprep.mubr.bf16.mxu0 0
    %251 = vmatmul.mubr.bf16.gmra.mxu0 %v107
    %v252 = vpop.f32.mrf.mxu0
    %v253 = vadd.f32 %v80, %v252
    %v254 = vpop.f32.mrf.mxu0
    %v255 = vadd.f32 %v84, %v254
    %v256 = vpop.f32.mrf.mxu0
    %v257 = vadd.f32 %v80, %v256
    %v258 = vpop.f32.mrf.mxu0
    %v259 = vadd.f32 %v84, %v258
    %260 = vmatprep.mubr.bf16.mxu0 0
    %261 = vmatmul.mubr.bf16.gmra.mxu0 %v110
    %v262 = vpop.f32.mrf.mxu0
    %v263 = vadd.f32 %v80, %v262
    %v264 = vpop.f32.mrf.mxu0
    %v265 = vadd.f32 %v84, %v264
    %v266 = vpop.f32.mrf.mxu0
    %v267 = vadd.f32 %v80, %v266
    %v268 = vpop.f32.mrf.mxu0
    %v269 = vadd.f32 %v84, %v268
    %270 = vdwg.mxu0
    %271 = vst [vmem:[#allocation2] sm:$0xff] %v160
    %272 = vst [vmem:[#allocation2 + $0x8] sm:$0xff] %v162
    %273 = vst [vmem:[#allocation2 + $0x10] sm:$0xff] %v233
    %274 = vst [vmem:[#allocation2 + $0x18] sm:$0xff] %v235
    %275 = vst [vmem:[#allocation2 + $0x20] sm:$0xff] %v164
    %276 = vst [vmem:[#allocation2 + $0x28] sm:$0xff] %v166
    %277 = vst [vmem:[#allocation2 + $0x30] sm:$0xff] %v237
    %278 = vst [vmem:[#allocation2 + $0x38] sm:$0xff] %v239
    %279 = vst [vmem:[#allocation2 + $0x40] sm:$0xff] %v170
    %280 = vst [vmem:[#allocation2 + $0x48] sm:$0xff] %v172
    %281 = vst [vmem:[#allocation2 + $0x50] sm:$0xff] %v243
    %282 = vst [vmem:[#allocation2 + $0x58] sm:$0xff] %v245
    %283 = vst [vmem:[#allocation2 + $0x60] sm:$0xff] %v174
    %284 = vst [vmem:[#allocation2 + $0x68] sm:$0xff] %v176
    %285 = vst [vmem:[#allocation2 + $0x70] sm:$0xff] %v247
    %286 = vst [vmem:[#allocation2 + $0x78] sm:$0xff] %v249
    %287 = vst [vmem:[#allocation2 + $0x80] sm:$0xff] %v180
    %288 = vst [vmem:[#allocation2 + $0x88] sm:$0xff] %v182
    %289 = vst [vmem:[#allocation2 + $0x90] sm:$0xff] %v253
    %290 = vst [vmem:[#allocation2 + $0x98] sm:$0xff] %v255
    %291 = vst [vmem:[#allocation2 + $0xa0] sm:$0xff] %v184
    %292 = vst [vmem:[#allocation2 + $0xa8] sm:$0xff] %v186
    %293 = vst [vmem:[#allocation2 + $0xb0] sm:$0xff] %v257
    %294 = vst [vmem:[#allocation2 + $0xb8] sm:$0xff] %v259
    %295 = vst [vmem:[#allocation2 + $0xc0] sm:$0xff] %v190
    %296 = vst [vmem:[#allocation2 + $0xc8] sm:$0xff] %v192
    %297 = vst [vmem:[#allocation2 + $0xd0] sm:$0xff] %v263
    %298 = vst [vmem:[#allocation2 + $0xd8] sm:$0xff] %v265
    %299 = vst [vmem:[#allocation2 + $0xe0] sm:$0xff] %v194
    %300 = vst [vmem:[#allocation2 + $0xe8] sm:$0xff] %v196
    %301 = vst [vmem:[#allocation2 + $0xf0] sm:$0xff] %v267
    %302 = vst [vmem:[#allocation2 + $0xf8] sm:$0xff] %v269
    %v303 = vld [vmem:[#allocation3] sm:$0xff]
    %v304 = vld [vmem:[#allocation3 + $0x8] sm:$0xff]
    %v305 = vld [vmem:[#allocation3 + $0x10] sm:$0xff]
    %v306 = vld [vmem:[#allocation3 + $0x18] sm:$0xff]
    %v307 = vld [vmem:[#allocation3 + $0x20] sm:$0xff]
    %v308 = vld [vmem:[#allocation3 + $0x28] sm:$0xff]
    %v309 = vld [vmem:[#allocation3 + $0x30] sm:$0xff]
    %v310 = vld [vmem:[#allocation3 + $0x38] sm:$0xff]
    %v311 = vld [vmem:[#allocation3 + $0x40] sm:$0xff]
    %v312 = vld [vmem:[#allocation3 + $0x48] sm:$0xff]
    %v313 = vld [vmem:[#allocation3 + $0x50] sm:$0xff]
    %v314 = vld [vmem:[#allocation3 + $0x58] sm:$0xff]
    %v315 = vld [vmem:[#allocation3 + $0x60] sm:$0xff]
    %v316 = vld [vmem:[#allocation3 + $0x68] sm:$0xff]
    %v317 = vld [vmem:[#allocation3 + $0x70] sm:$0xff]
    %v318 = vld [vmem:[#allocation3 + $0x78] sm:$0xff]
    %v319 = vld [vmem:[#allocation3 + $0x80] sm:$0xff]
    %v320 = vld [vmem:[#allocation3 + $0x88] sm:$0xff]
    %v321 = vld [vmem:[#allocation3 + $0x90] sm:$0xff]
    %v322 = vld [vmem:[#allocation3 + $0x98] sm:$0xff]
    %v323 = vld [vmem:[#allocation3 + $0xa0] sm:$0xff]
    %v324 = vld [vmem:[#allocation3 + $0xa8] sm:$0xff]
    %v325 = vld [vmem:[#allocation3 + $0xb0] sm:$0xff]
    %v326 = vld [vmem:[#allocation3 + $0xb8] sm:$0xff]
    %v327 = vld [vmem:[#allocation3 + $0xc0] sm:$0xff]
    %v328 = vld [vmem:[#allocation3 + $0xc8] sm:$0xff]
    %v329 = vld [vmem:[#allocation3 + $0xd0] sm:$0xff]
    %v330 = vld [vmem:[#allocation3 + $0xd8] sm:$0xff]
    %v331 = vld [vmem:[#allocation3 + $0xe0] sm:$0xff]
    %v332 = vld [vmem:[#allocation3 + $0xe8] sm:$0xff]
    %v333 = vld [vmem:[#allocation3 + $0xf0] sm:$0xff]
    %v334 = vld [vmem:[#allocation3 + $0xf8] sm:$0xff]
    %v335 = vld [vmem:[%s5] sm:$0x1]
    %v337 = vlaneseq
    %v338 = vshrl.u32 %v337, 7
    %v339 = vsub.s32 0, %v338
    %v340 = vrot.slane %v335, %v339
    %v342 = vadd.f32 %v340, 0.0
    %v343 = vlaneseq
    %v344 = vand.u32 %v343, 127
    %v345 = vld [vmem:[#allocation2] sm:$0xff]
    %v346 = vld [vmem:[#allocation2 + $0x8] sm:$0xff]
    %v347 = vld [vmem:[#allocation2 + $0x10] sm:$0xff]
    %v348 = vld [vmem:[#allocation2 + $0x18] sm:$0xff]
    %v381 = vunpack.c.l.b16 %v303
    %v382 = vunpack.c.h.b16 %v303
    %v383 = vunpack.c.l.b16 %v304
    %v384 = vunpack.c.h.b16 %v304
    %v385 = vunpack.c.l.b16 %v305
    %v386 = vunpack.c.h.b16 %v305
    %v387 = vunpack.c.l.b16 %v306
    %v388 = vunpack.c.h.b16 %v306
    %v389 = vunpack.c.l.b16 %v307
    %v390 = vunpack.c.h.b16 %v307
    %v391 = vunpack.c.l.b16 %v308
    %v392 = vunpack.c.h.b16 %v308
    %v393 = vunpack.c.l.b16 %v309
    %v394 = vunpack.c.h.b16 %v309
    %v395 = vunpack.c.l.b16 %v310
    %v396 = vunpack.c.h.b16 %v310
    %v397 = vunpack.c.l.b16 %v311
    %v398 = vunpack.c.h.b16 %v311
    %v399 = vunpack.c.l.b16 %v312
    %v400 = vunpack.c.h.b16 %v312
    %v401 = vunpack.c.l.b16 %v313
    %v402 = vunpack.c.h.b16 %v313
    %v403 = vunpack.c.l.b16 %v314
    %v404 = vunpack.c.h.b16 %v314
    %v405 = vunpack.c.l.b16 %v315
    %v406 = vunpack.c.h.b16 %v315
    %v407 = vunpack.c.l.b16 %v316
    %v408 = vunpack.c.h.b16 %v316
    %v409 = vunpack.c.l.b16 %v317
    %v410 = vunpack.c.h.b16 %v317
    %v411 = vunpack.c.l.b16 %v318
    %v412 = vunpack.c.h.b16 %v318
    %v413 = vunpack.c.l.b16 %v319
    %v414 = vunpack.c.h.b16 %v319
    %v415 = vunpack.c.l.b16 %v320
    %v416 = vunpack.c.h.b16 %v320
    %v417 = vunpack.c.l.b16 %v321
    %v418 = vunpack.c.h.b16 %v321
    %v419 = vunpack.c.l.b16 %v322
    %v420 = vunpack.c.h.b16 %v322
    %v421 = vunpack.c.l.b16 %v323
    %v422 = vunpack.c.h.b16 %v323
    %v423 = vunpack.c.l.b16 %v324
    %v424 = vunpack.c.h.b16 %v324
    %v425 = vunpack.c.l.b16 %v325
    %v426 = vunpack.c.h.b16 %v325
    %v427 = vunpack.c.l.b16 %v326
    %v428 = vunpack.c.h.b16 %v326
    %v429 = vunpack.c.l.b16 %v327
    %v430 = vunpack.c.h.b16 %v327
    %v431 = vunpack.c.l.b16 %v328
    %v432 = vunpack.c.h.b16 %v328
    %v433 = vunpack.c.l.b16 %v329
    %v434 = vunpack.c.h.b16 %v329
    %v435 = vunpack.c.l.b16 %v330
    %v436 = vunpack.c.h.b16 %v330
    %v437 = vunpack.c.l.b16 %v331
    %v438 = vunpack.c.h.b16 %v331
    %v439 = vunpack.c.l.b16 %v332
    %v440 = vunpack.c.h.b16 %v332
    %v441 = vunpack.c.l.b16 %v333
    %v442 = vunpack.c.h.b16 %v333
    %v443 = vunpack.c.l.b16 %v334
    %v444 = vunpack.c.h.b16 %v334
    %v445 = vpack.c.b16 %v385, %v381
    %v446 = vpack.c.b16 %v386, %v382
    %v447 = vpack.c.b16 %v387, %v383
    %v448 = vpack.c.b16 %v388, %v384
    %v449 = vpack.c.b16 %v393, %v389
    %v450 = vpack.c.b16 %v394, %v390
    %v451 = vpack.c.b16 %v395, %v391
    %v452 = vpack.c.b16 %v396, %v392
    %v453 = vpack.c.b16 %v401, %v397
    %v454 = vpack.c.b16 %v402, %v398
    %v455 = vpack.c.b16 %v403, %v399
    %v456 = vpack.c.b16 %v404, %v400
    %v457 = vpack.c.b16 %v409, %v405
    %v458 = vpack.c.b16 %v410, %v406
    %v459 = vpack.c.b16 %v411, %v407
    %v460 = vpack.c.b16 %v412, %v408
    %v461 = vpack.c.b16 %v417, %v413
    %v462 = vpack.c.b16 %v418, %v414
    %v463 = vpack.c.b16 %v419, %v415
    %v464 = vpack.c.b16 %v420, %v416
    %v465 = vpack.c.b16 %v425, %v421
    %v466 = vpack.c.b16 %v426, %v422
    %v467 = vpack.c.b16 %v427, %v423
    %v468 = vpack.c.b16 %v428, %v424
    %v469 = vpack.c.b16 %v433, %v429
    %v470 = vpack.c.b16 %v434, %v430
    %v471 = vpack.c.b16 %v435, %v431
    %v472 = vpack.c.b16 %v436, %v432
    %v473 = vpack.c.b16 %v441, %v437
    %v474 = vpack.c.b16 %v442, %v438
    %v475 = vpack.c.b16 %v443, %v439
    %v476 = vpack.c.b16 %v444, %v440
    %509 = vmatprep.subr.bf16.mxu0 %v474
    %510 = vmatpush1.bf16.msra.mxu0 %v473
    %511 = vmatprep.subr.bf16.mxu0 %v470
    %512 = vmatpush1.bf16.msra.mxu0 %v469
    %513 = vmatprep.subr.bf16.mxu0 %v466
    %514 = vmatpush1.bf16.msra.mxu0 %v465
    %515 = vmatprep.subr.bf16.mxu0 %v462
    %516 = vmatpush1.bf16.msra.mxu0 %v461
    %517 = vmatprep.subr.bf16.mxu0 %v458
    %518 = vmatpush1.bf16.msra.mxu0 %v457
    %519 = vmatprep.subr.bf16.mxu0 %v454
    %520 = vmatpush1.bf16.msra.mxu0 %v453
    %521 = vmatprep.subr.bf16.mxu0 %v450
    %522 = vmatpush1.bf16.msra.mxu0 %v449
    %523 = vmatprep.subr.bf16.mxu0 %v446
    %524 = vmatpush1.bf16.msra.mxu0 %v445
    %525 = vmatprep.subr.bf16.mxu0 0
    %526 = vmatpush2.bf16.msra.mxu0 0
    %527 = vmatprep.subr.bf16.mxu0 0
    %528 = vmatpush2.bf16.msra.mxu0 0
    %529 = vmatprep.subr.bf16.mxu0 0
    %530 = vmatpush2.bf16.msra.mxu0 0
    %531 = vmatprep.subr.bf16.mxu0 0
    %532 = vmatpush2.bf16.msra.mxu0 0
    %533 = vmatprep.subr.bf16.mxu0 0
    %534 = vmatpush2.bf16.msra.mxu0 0
    %535 = vmatprep.subr.bf16.mxu0 0
    %536 = vmatpush2.bf16.msra.mxu0 0
    %537 = vmatprep.subr.bf16.mxu0 0
    %538 = vmatpush2.bf16.msra.mxu0 0
    %539 = vmatprep.subr.bf16.mxu0 0
    %540 = vmatpush2.bf16.msra.mxu0 0
    %541 = vmatprep.mubr.bf16.mxu0 0
    %542 = vmatmul.mubr.bf16.gmra.mxu0 0
    %v543 = vpop.f32.mrf.mxu0
    %v544 = vadd.f32 0.0, %v543
    %v545 = vpop.f32.mrf.mxu0
    %v546 = vadd.f32 0.0, %v545
    %v547 = vpop.f32.mrf.mxu0
    %v548 = vpop.f32.mrf.mxu0
    %549 = vdwg.mxu0
    %550 = vmatprep.subr.bf16.mxu0 %v476
    %551 = vmatpush1.bf16.msra.mxu0 %v475
    %552 = vmatprep.subr.bf16.mxu0 %v472
    %553 = vmatpush1.bf16.msra.mxu0 %v471
    %554 = vmatprep.subr.bf16.mxu0 %v468
    %555 = vmatpush1.bf16.msra.mxu0 %v467
    %556 = vmatprep.subr.bf16.mxu0 %v464
    %557 = vmatpush1.bf16.msra.mxu0 %v463
    %558 = vmatprep.subr.bf16.mxu0 %v460
    %559 = vmatpush1.bf16.msra.mxu0 %v459
    %560 = vmatprep.subr.bf16.mxu0 %v456
    %561 = vmatpush1.bf16.msra.mxu0 %v455
    %562 = vmatprep.subr.bf16.mxu0 %v452
    %563 = vmatpush1.bf16.msra.mxu0 %v451
    %564 = vmatprep.subr.bf16.mxu0 %v448
    %565 = vmatpush1.bf16.msra.mxu0 %v447
    %566 = vmatprep.subr.bf16.mxu0 0
    %567 = vmatpush2.bf16.msra.mxu0 0
    %568 = vmatprep.subr.bf16.mxu0 0
    %569 = vmatpush2.bf16.msra.mxu0 0
    %570 = vmatprep.subr.bf16.mxu0 0
    %571 = vmatpush2.bf16.msra.mxu0 0
    %572 = vmatprep.subr.bf16.mxu0 0
    %573 = vmatpush2.bf16.msra.mxu0 0
    %574 = vmatprep.subr.bf16.mxu0 0
    %575 = vmatpush2.bf16.msra.mxu0 0
    %576 = vmatprep.subr.bf16.mxu0 0
    %577 = vmatpush2.bf16.msra.mxu0 0
    %578 = vmatprep.subr.bf16.mxu0 0
    %579 = vmatpush2.bf16.msra.mxu0 0
    %580 = vmatprep.subr.bf16.mxu0 0
    %581 = vmatpush2.bf16.msra.mxu0 0
    %582 = vmatprep.mubr.bf16.mxu0 0
    %583 = vmatmul.mubr.bf16.gmra.mxu0 0
    %v584 = vpop.f32.mrf.mxu0
    %v585 = vadd.f32 0.0, %v584
    %v586 = vpop.f32.mrf.mxu0
    %v587 = vadd.f32 0.0, %v586
    %v588 = vpop.f32.mrf.mxu0
    %v589 = vpop.f32.mrf.mxu0
    %590 = vdwg.mxu0
    %v591 = vadd.f32 %v345, %v544
    %v592 = vadd.f32 %v346, %v546
    %v593 = vadd.f32 %v347, %v585
    %v594 = vadd.f32 %v348, %v587
    %v595 = vxor.u32 %v591, 2147483648
    %v596 = vmul.f32 %v595, 1.442695
    %v597 = vpow.pop %v596
    %v598 = vadd.f32 %v597, 1.0
    %v599 = vrcp.pop %v598
    %v600 = vmul.f32 1.0, %v599
    %v601 = vxor.u32 %v592, 2147483648
    %v602 = vmul.f32 %v601, 1.442695
    %v603 = vpow.pop %v602
    %v604 = vadd.f32 %v603, 1.0
    %v605 = vrcp.pop %v604
    %v606 = vmul.f32 1.0, %v605
    %v607 = vtanh.pop %v593
    %v608 = vxor.u32 %v594, 2147483648
    %v609 = vmul.f32 %v608, 1.442695
    %v610 = vpow.pop %v609
    %v611 = vadd.f32 %v610, 1.0
    %v612 = vrcp.pop %v611
    %v613 = vmul.f32 1.0, %v612
    %v614 = vmul.f32 %v606, 0.0
    %v615 = vmul.f32 %v600, %v607
    %v616 = vadd.f32 %v614, %v615
    %v617 = vtanh.pop %v616
    %v618 = vmul.f32 %v613, %v617
    %vm619 = vcmp.lt.s32.totalorder %v344, 32
    %v620 = vsel %vm619, 1, 0
    %vm621 = vcmp.eq.s32.totalorder %v620, 1
    %v622 = vsel %vm621, %v616, 0.0
    %v623 = vsel %vm621, %v618, 0.0
    %v624 = vld [vmem:[#allocation2 + $0x20] sm:$0xff]
    %v625 = vld [vmem:[#allocation2 + $0x28] sm:$0xff]
    %v626 = vld [vmem:[#allocation2 + $0x30] sm:$0xff]
    %v627 = vld [vmem:[#allocation2 + $0x38] sm:$0xff]
    %v628 = vpack.c.bf16 %v623, %v623
    %629 = vmatprep.subr.bf16.mxu0 %v474
    %630 = vmatpush1.bf16.msra.mxu0 %v473
    %631 = vmatprep.subr.bf16.mxu0 %v470
    %632 = vmatpush1.bf16.msra.mxu0 %v469
    %633 = vmatprep.subr.bf16.mxu0 %v466
    %634 = vmatpush1.bf16.msra.mxu0 %v465
    %635 = vmatprep.subr.bf16.mxu0 %v462
    %636 = vmatpush1.bf16.msra.mxu0 %v461
    %637 = vmatprep.subr.bf16.mxu0 %v458
    %638 = vmatpush1.bf16.msra.mxu0 %v457
    %639 = vmatprep.subr.bf16.mxu0 %v454
    %640 = vmatpush1.bf16.msra.mxu0 %v453
    %641 = vmatprep.subr.bf16.mxu0 %v450
    %642 = vmatpush1.bf16.msra.mxu0 %v449
    %643 = vmatprep.subr.bf16.mxu0 %v446
    %644 = vmatpush1.bf16.msra.mxu0 %v445
    %645 = vmatprep.subr.bf16.mxu0 0
    %646 = vmatpush2.bf16.msra.mxu0 0
    %647 = vmatprep.subr.bf16.mxu0 0
    %648 = vmatpush2.bf16.msra.mxu0 0
    %649 = vmatprep.subr.bf16.mxu0 0
    %650 = vmatpush2.bf16.msra.mxu0 0
    %651 = vmatprep.subr.bf16.mxu0 0
    %652 = vmatpush2.bf16.msra.mxu0 0
    %653 = vmatprep.subr.bf16.mxu0 0
    %654 = vmatpush2.bf16.msra.mxu0 0
    %655 = vmatprep.subr.bf16.mxu0 0
    %656 = vmatpush2.bf16.msra.mxu0 0
    %657 = vmatprep.subr.bf16.mxu0 0
    %658 = vmatpush2.bf16.msra.mxu0 0
    %659 = vmatprep.subr.bf16.mxu0 0
    %660 = vmatpush2.bf16.msra.mxu0 0
    %661 = vmatprep.mubr.bf16.mxu0 0
    %662 = vmatmul.mubr.bf16.gmra.mxu0 %v628
    %v663 = vpop.f32.mrf.mxu0
    %v664 = vadd.f32 0.0, %v663
    %v665 = vpop.f32.mrf.mxu0
    %v666 = vadd.f32 0.0, %v665
    %v667 = vpop.f32.mrf.mxu0
    %v668 = vpop.f32.mrf.mxu0
    %669 = vdwg.mxu0
    %670 = vmatprep.subr.bf16.mxu0 %v476
    %671 = vmatpush1.bf16.msra.mxu0 %v475
    %672 = vmatprep.subr.bf16.mxu0 %v472
    %673 = vmatpush1.bf16.msra.mxu0 %v471
    %674 = vmatprep.subr.bf16.mxu0 %v468
    %675 = vmatpush1.bf16.msra.mxu0 %v467
    %676 = vmatprep.subr.bf16.mxu0 %v464
    %677 = vmatpush1.bf16.msra.mxu0 %v463
    %678 = vmatprep.subr.bf16.mxu0 %v460
    %679 = vmatpush1.bf16.msra.mxu0 %v459
    %680 = vmatprep.subr.bf16.mxu0 %v456
    %681 = vmatpush1.bf16.msra.mxu0 %v455
    %682 = vmatprep.subr.bf16.mxu0 %v452
    %683 = vmatpush1.bf16.msra.mxu0 %v451
    %684 = vmatprep.subr.bf16.mxu0 %v448
    %685 = vmatpush1.bf16.msra.mxu0 %v447
    %686 = vmatprep.subr.bf16.mxu0 0
    %687 = vmatpush2.bf16.msra.mxu0 0
    %688 = vmatprep.subr.bf16.mxu0 0
    %689 = vmatpush2.bf16.msra.mxu0 0
    %690 = vmatprep.subr.bf16.mxu0 0
    %691 = vmatpush2.bf16.msra.mxu0 0
    %692 = vmatprep.subr.bf16.mxu0 0
    %693 = vmatpush2.bf16.msra.mxu0 0
    %694 = vmatprep.subr.bf16.mxu0 0
    %695 = vmatpush2.bf16.msra.mxu0 0
    %696 = vmatprep.subr.bf16.mxu0 0
    %697 = vmatpush2.bf16.msra.mxu0 0
    %698 = vmatprep.subr.bf16.mxu0 0
    %699 = vmatpush2.bf16.msra.mxu0 0
    %700 = vmatprep.subr.bf16.mxu0 0
    %701 = vmatpush2.bf16.msra.mxu0 0
    %702 = vmatprep.mubr.bf16.mxu0 0
    %703 = vmatmul.mubr.bf16.gmra.mxu0 %v628
    %v704 = vpop.f32.mrf.mxu0
    %v705 = vadd.f32 0.0, %v704
    %v706 = vpop.f32.mrf.mxu0
    %v707 = vadd.f32 0.0, %v706
    %v708 = vpop.f32.mrf.mxu0
    %v709 = vpop.f32.mrf.mxu0
    %710 = vdwg.mxu0
    %v711 = vadd.f32 %v624, %v664
    %v712 = vadd.f32 %v625, %v666
    %v713 = vadd.f32 %v626, %v705
    %v714 = vadd.f32 %v627, %v707
    %v715 = vxor.u32 %v711, 2147483648
    %v716 = vmul.f32 %v715, 1.442695
    %v717 = vpow.pop %v716
    %v718 = vadd.f32 %v717, 1.0
    %v719 = vrcp.pop %v718
    %v720 = vmul.f32 1.0, %v719
    %v721 = vxor.u32 %v712, 2147483648
    %v722 = vmul.f32 %v721, 1.442695
    %v723 = vpow.pop %v722
    %v724 = vadd.f32 %v723, 1.0
    %v725 = vrcp.pop %v724
    %v726 = vmul.f32 1.0, %v725
    %v727 = vtanh.pop %v713
    %v728 = vxor.u32 %v714, 2147483648
    %v729 = vmul.f32 %v728, 1.442695
    %v730 = vpow.pop %v729
    %v731 = vadd.f32 %v730, 1.0
    %v732 = vrcp.pop %v731
    %v733 = vmul.f32 1.0, %v732
    %v734 = vmul.f32 %v726, %v622
    %v735 = vmul.f32 %v720, %v727
    %v736 = vadd.f32 %v734, %v735
    %v737 = vtanh.pop %v736
    %v738 = vmul.f32 %v733, %v737
    %vm739 = vcmp.lt.s32.totalorder %v344, 64
    %v740 = vsel %vm739, 1, 0
    %vm741 = vcmp.eq.s32.totalorder %v740, 1
    %v742 = vsel %vm741, %v736, %v622
    %v743 = vsel %vm741, %v738, %v623
    %v744 = vld [vmem:[#allocation2 + $0x40] sm:$0xff]
    %v745 = vld [vmem:[#allocation2 + $0x48] sm:$0xff]
    %v746 = vld [vmem:[#allocation2 + $0x50] sm:$0xff]
    %v747 = vld [vmem:[#allocation2 + $0x58] sm:$0xff]
    %v748 = vpack.c.bf16 %v743, %v743
    %749 = vmatprep.subr.bf16.mxu0 %v474
    %750 = vmatpush1.bf16.msra.mxu0 %v473
    %751 = vmatprep.subr.bf16.mxu0 %v470
    %752 = vmatpush1.bf16.msra.mxu0 %v469
    %753 = vmatprep.subr.bf16.mxu0 %v466
    %754 = vmatpush1.bf16.msra.mxu0 %v465
    %755 = vmatprep.subr.bf16.mxu0 %v462
    %756 = vmatpush1.bf16.msra.mxu0 %v461
    %757 = vmatprep.subr.bf16.mxu0 %v458
    %758 = vmatpush1.bf16.msra.mxu0 %v457
    %759 = vmatprep.subr.bf16.mxu0 %v454
    %760 = vmatpush1.bf16.msra.mxu0 %v453
    %761 = vmatprep.subr.bf16.mxu0 %v450
    %762 = vmatpush1.bf16.msra.mxu0 %v449
    %763 = vmatprep.subr.bf16.mxu0 %v446
    %764 = vmatpush1.bf16.msra.mxu0 %v445
    %765 = vmatprep.subr.bf16.mxu0 0
    %766 = vmatpush2.bf16.msra.mxu0 0
    %767 = vmatprep.subr.bf16.mxu0 0
    %768 = vmatpush2.bf16.msra.mxu0 0
    %769 = vmatprep.subr.bf16.mxu0 0
    %770 = vmatpush2.bf16.msra.mxu0 0
    %771 = vmatprep.subr.bf16.mxu0 0
    %772 = vmatpush2.bf16.msra.mxu0 0
    %773 = vmatprep.subr.bf16.mxu0 0
    %774 = vmatpush2.bf16.msra.mxu0 0
    %775 = vmatprep.subr.bf16.mxu0 0
    %776 = vmatpush2.bf16.msra.mxu0 0
    %777 = vmatprep.subr.bf16.mxu0 0
    %778 = vmatpush2.bf16.msra.mxu0 0
    %779 = vmatprep.subr.bf16.mxu0 0
    %780 = vmatpush2.bf16.msra.mxu0 0
    %781 = vmatprep.mubr.bf16.mxu0 0
    %782 = vmatmul.mubr.bf16.gmra.mxu0 %v748
    %v783 = vpop.f32.mrf.mxu0
    %v784 = vadd.f32 0.0, %v783
    %v785 = vpop.f32.mrf.mxu0
    %v786 = vadd.f32 0.0, %v785
    %v787 = vpop.f32.mrf.mxu0
    %v788 = vpop.f32.mrf.mxu0
    %789 = vdwg.mxu0
    %790 = vmatprep.subr.bf16.mxu0 %v476
    %791 = vmatpush1.bf16.msra.mxu0 %v475
    %792 = vmatprep.subr.bf16.mxu0 %v472
    %793 = vmatpush1.bf16.msra.mxu0 %v471
    %794 = vmatprep.subr.bf16.mxu0 %v468
    %795 = vmatpush1.bf16.msra.mxu0 %v467
    %796 = vmatprep.subr.bf16.mxu0 %v464
    %797 = vmatpush1.bf16.msra.mxu0 %v463
    %798 = vmatprep.subr.bf16.mxu0 %v460
    %799 = vmatpush1.bf16.msra.mxu0 %v459
    %800 = vmatprep.subr.bf16.mxu0 %v456
    %801 = vmatpush1.bf16.msra.mxu0 %v455
    %802 = vmatprep.subr.bf16.mxu0 %v452
    %803 = vmatpush1.bf16.msra.mxu0 %v451
    %804 = vmatprep.subr.bf16.mxu0 %v448
    %805 = vmatpush1.bf16.msra.mxu0 %v447
    %806 = vmatprep.subr.bf16.mxu0 0
    %807 = vmatpush2.bf16.msra.mxu0 0
    %808 = vmatprep.subr.bf16.mxu0 0
    %809 = vmatpush2.bf16.msra.mxu0 0
    %810 = vmatprep.subr.bf16.mxu0 0
    %811 = vmatpush2.bf16.msra.mxu0 0
    %812 = vmatprep.subr.bf16.mxu0 0
    %813 = vmatpush2.bf16.msra.mxu0 0
    %814 = vmatprep.subr.bf16.mxu0 0
    %815 = vmatpush2.bf16.msra.mxu0 0
    %816 = vmatprep.subr.bf16.mxu0 0
    %817 = vmatpush2.bf16.msra.mxu0 0
    %818 = vmatprep.subr.bf16.mxu0 0
    %819 = vmatpush2.bf16.msra.mxu0 0
    %820 = vmatprep.subr.bf16.mxu0 0
    %821 = vmatpush2.bf16.msra.mxu0 0
    %822 = vmatprep.mubr.bf16.mxu0 0
    %823 = vmatmul.mubr.bf16.gmra.mxu0 %v748
    %v824 = vpop.f32.mrf.mxu0
    %v825 = vadd.f32 0.0, %v824
    %v826 = vpop.f32.mrf.mxu0
    %v827 = vadd.f32 0.0, %v826
    %v828 = vpop.f32.mrf.mxu0
    %v829 = vpop.f32.mrf.mxu0
    %830 = vdwg.mxu0
    %v831 = vadd.f32 %v744, %v784
    %v832 = vadd.f32 %v745, %v786
    %v833 = vadd.f32 %v746, %v825
    %v834 = vadd.f32 %v747, %v827
    %v835 = vxor.u32 %v831, 2147483648
    %v836 = vmul.f32 %v835, 1.442695
    %v837 = vpow.pop %v836
    %v838 = vadd.f32 %v837, 1.0
    %v839 = vrcp.pop %v838
    %v840 = vmul.f32 1.0, %v839
    %v841 = vxor.u32 %v832, 2147483648
    %v842 = vmul.f32 %v841, 1.442695
    %v843 = vpow.pop %v842
    %v844 = vadd.f32 %v843, 1.0
    %v845 = vrcp.pop %v844
    %v846 = vmul.f32 1.0, %v845
    %v847 = vtanh.pop %v833
    %v848 = vxor.u32 %v834, 2147483648
    %v849 = vmul.f32 %v848, 1.442695
    %v850 = vpow.pop %v849
    %v851 = vadd.f32 %v850, 1.0
    %v852 = vrcp.pop %v851
    %v853 = vmul.f32 1.0, %v852
    %v854 = vmul.f32 %v846, %v742
    %v855 = vmul.f32 %v840, %v847
    %v856 = vadd.f32 %v854, %v855
    %v857 = vtanh.pop %v856
    %v858 = vmul.f32 %v853, %v857
    %vm859 = vcmp.lt.s32.totalorder %v344, 96
    %v860 = vsel %vm859, 1, 0
    %vm861 = vcmp.eq.s32.totalorder %v860, 1
    %v862 = vsel %vm861, %v856, %v742
    %v863 = vsel %vm861, %v858, %v743
    %v864 = vld [vmem:[#allocation2 + $0x60] sm:$0xff]
    %v865 = vld [vmem:[#allocation2 + $0x68] sm:$0xff]
    %v866 = vld [vmem:[#allocation2 + $0x70] sm:$0xff]
    %v867 = vld [vmem:[#allocation2 + $0x78] sm:$0xff]
    %v868 = vpack.c.bf16 %v863, %v863
    %869 = vmatprep.subr.bf16.mxu0 %v474
    %870 = vmatpush1.bf16.msra.mxu0 %v473
    %871 = vmatprep.subr.bf16.mxu0 %v470
    %872 = vmatpush1.bf16.msra.mxu0 %v469
    %873 = vmatprep.subr.bf16.mxu0 %v466
    %874 = vmatpush1.bf16.msra.mxu0 %v465
    %875 = vmatprep.subr.bf16.mxu0 %v462
    %876 = vmatpush1.bf16.msra.mxu0 %v461
    %877 = vmatprep.subr.bf16.mxu0 %v458
    %878 = vmatpush1.bf16.msra.mxu0 %v457
    %879 = vmatprep.subr.bf16.mxu0 %v454
    %880 = vmatpush1.bf16.msra.mxu0 %v453
    %881 = vmatprep.subr.bf16.mxu0 %v450
    %882 = vmatpush1.bf16.msra.mxu0 %v449
    %883 = vmatprep.subr.bf16.mxu0 %v446
    %884 = vmatpush1.bf16.msra.mxu0 %v445
    %885 = vmatprep.subr.bf16.mxu0 0
    %886 = vmatpush2.bf16.msra.mxu0 0
    %887 = vmatprep.subr.bf16.mxu0 0
    %888 = vmatpush2.bf16.msra.mxu0 0
    %889 = vmatprep.subr.bf16.mxu0 0
    %890 = vmatpush2.bf16.msra.mxu0 0
    %891 = vmatprep.subr.bf16.mxu0 0
    %892 = vmatpush2.bf16.msra.mxu0 0
    %893 = vmatprep.subr.bf16.mxu0 0
    %894 = vmatpush2.bf16.msra.mxu0 0
    %895 = vmatprep.subr.bf16.mxu0 0
    %896 = vmatpush2.bf16.msra.mxu0 0
    %897 = vmatprep.subr.bf16.mxu0 0
    %898 = vmatpush2.bf16.msra.mxu0 0
    %899 = vmatprep.subr.bf16.mxu0 0
    %900 = vmatpush2.bf16.msra.mxu0 0
    %901 = vmatprep.mubr.bf16.mxu0 0
    %902 = vmatmul.mubr.bf16.gmra.mxu0 %v868
    %v903 = vpop.f32.mrf.mxu0
    %v904 = vadd.f32 0.0, %v903
    %v905 = vpop.f32.mrf.mxu0
    %v906 = vadd.f32 0.0, %v905
    %v907 = vpop.f32.mrf.mxu0
    %v908 = vpop.f32.mrf.mxu0
    %909 = vdwg.mxu0
    %910 = vmatprep.subr.bf16.mxu0 %v476
    %911 = vmatpush1.bf16.msra.mxu0 %v475
    %912 = vmatprep.subr.bf16.mxu0 %v472
    %913 = vmatpush1.bf16.msra.mxu0 %v471
    %914 = vmatprep.subr.bf16.mxu0 %v468
    %915 = vmatpush1.bf16.msra.mxu0 %v467
    %916 = vmatprep.subr.bf16.mxu0 %v464
    %917 = vmatpush1.bf16.msra.mxu0 %v463
    %918 = vmatprep.subr.bf16.mxu0 %v460
    %919 = vmatpush1.bf16.msra.mxu0 %v459
    %920 = vmatprep.subr.bf16.mxu0 %v456
    %921 = vmatpush1.bf16.msra.mxu0 %v455
    %922 = vmatprep.subr.bf16.mxu0 %v452
    %923 = vmatpush1.bf16.msra.mxu0 %v451
    %924 = vmatprep.subr.bf16.mxu0 %v448
    %925 = vmatpush1.bf16.msra.mxu0 %v447
    %926 = vmatprep.subr.bf16.mxu0 0
    %927 = vmatpush2.bf16.msra.mxu0 0
    %928 = vmatprep.subr.bf16.mxu0 0
    %929 = vmatpush2.bf16.msra.mxu0 0
    %930 = vmatprep.subr.bf16.mxu0 0
    %931 = vmatpush2.bf16.msra.mxu0 0
    %932 = vmatprep.subr.bf16.mxu0 0
    %933 = vmatpush2.bf16.msra.mxu0 0
    %934 = vmatprep.subr.bf16.mxu0 0
    %935 = vmatpush2.bf16.msra.mxu0 0
    %936 = vmatprep.subr.bf16.mxu0 0
    %937 = vmatpush2.bf16.msra.mxu0 0
    %938 = vmatprep.subr.bf16.mxu0 0
    %939 = vmatpush2.bf16.msra.mxu0 0
    %940 = vmatprep.subr.bf16.mxu0 0
    %941 = vmatpush2.bf16.msra.mxu0 0
    %942 = vmatprep.mubr.bf16.mxu0 0
    %943 = vmatmul.mubr.bf16.gmra.mxu0 %v868
    %v944 = vpop.f32.mrf.mxu0
    %v945 = vadd.f32 0.0, %v944
    %v946 = vpop.f32.mrf.mxu0
    %v947 = vadd.f32 0.0, %v946
    %v948 = vpop.f32.mrf.mxu0
    %v949 = vpop.f32.mrf.mxu0
    %950 = vdwg.mxu0
    %v951 = vadd.f32 %v864, %v904
    %v952 = vadd.f32 %v865, %v906
    %v953 = vadd.f32 %v866, %v945
    %v954 = vadd.f32 %v867, %v947
    %v955 = vxor.u32 %v951, 2147483648
    %v956 = vmul.f32 %v955, 1.442695
    %v957 = vpow.pop %v956
    %v958 = vadd.f32 %v957, 1.0
    %v959 = vrcp.pop %v958
    %v960 = vmul.f32 1.0, %v959
    %v961 = vxor.u32 %v952, 2147483648
    %v962 = vmul.f32 %v961, 1.442695
    %v963 = vpow.pop %v962
    %v964 = vadd.f32 %v963, 1.0
    %v965 = vrcp.pop %v964
    %v966 = vmul.f32 1.0, %v965
    %v967 = vtanh.pop %v953
    %v968 = vxor.u32 %v954, 2147483648
    %v969 = vmul.f32 %v968, 1.442695
    %v970 = vpow.pop %v969
    %v971 = vadd.f32 %v970, 1.0
    %v972 = vrcp.pop %v971
    %v973 = vmul.f32 1.0, %v972
    %v974 = vmul.f32 %v966, %v862
    %v975 = vmul.f32 %v960, %v967
    %v976 = vadd.f32 %v974, %v975
    %v977 = vtanh.pop %v976
    %v978 = vmul.f32 %v973, %v977
    %v979 = vpack.c.bf16 %v978, %v978
    %v980 = vld [vmem:[#allocation6] sm:$0xf]
    %v981 = vld [vmem:[#allocation6 + $0x4] sm:$0xf]
    %v982 = vld [vmem:[#allocation6 + $0x8] sm:$0xf]
    %v983 = vld [vmem:[#allocation6 + $0xc] sm:$0xf]
    %v984 = vld [vmem:[#allocation6 + $0x10] sm:$0xf]
    %v985 = vld [vmem:[#allocation6 + $0x14] sm:$0xf]
    %v986 = vld [vmem:[#allocation6 + $0x18] sm:$0xf]
    %v987 = vld [vmem:[#allocation6 + $0x1c] sm:$0xf]
    %v988 = vld [vmem:[#allocation6 + $0x20] sm:$0xf]
    %v989 = vld [vmem:[#allocation6 + $0x24] sm:$0xf]
    %v990 = vld [vmem:[#allocation6 + $0x28] sm:$0xf]
    %v991 = vld [vmem:[#allocation6 + $0x2c] sm:$0xf]
    %v992 = vld [vmem:[#allocation6 + $0x30] sm:$0xf]
    %v993 = vld [vmem:[#allocation6 + $0x34] sm:$0xf]
    %v994 = vld [vmem:[#allocation6 + $0x38] sm:$0xf]
    %v995 = vld [vmem:[#allocation6 + $0x3c] sm:$0xf]
    %v1012 = vunpack.c.l.b16 %v980
    %v1013 = vunpack.c.l.b16 %v981
    %v1014 = vunpack.c.l.b16 %v982
    %v1015 = vunpack.c.l.b16 %v983
    %v1016 = vunpack.c.l.b16 %v984
    %v1017 = vunpack.c.l.b16 %v985
    %v1018 = vunpack.c.l.b16 %v986
    %v1019 = vunpack.c.l.b16 %v987
    %v1020 = vunpack.c.l.b16 %v988
    %v1021 = vunpack.c.l.b16 %v989
    %v1022 = vunpack.c.l.b16 %v990
    %v1023 = vunpack.c.l.b16 %v991
    %v1024 = vunpack.c.l.b16 %v992
    %v1025 = vunpack.c.l.b16 %v993
    %v1026 = vunpack.c.l.b16 %v994
    %v1027 = vunpack.c.l.b16 %v995
    %v1028 = vpack.c.b16 %v1013, %v1012
    %v1029 = vpack.c.b16 %v1015, %v1014
    %v1030 = vpack.c.b16 %v1017, %v1016
    %v1031 = vpack.c.b16 %v1019, %v1018
    %v1032 = vpack.c.b16 %v1021, %v1020
    %v1033 = vpack.c.b16 %v1023, %v1022
    %v1034 = vpack.c.b16 %v1025, %v1024
    %v1035 = vpack.c.b16 %v1027, %v1026
    %1044 = vmatprep.subr.bf16.mxu0 0
    %1045 = vmatpush1.bf16.msra.mxu0 %v1035
    %1046 = vmatprep.subr.bf16.mxu0 0
    %1047 = vmatpush1.bf16.msra.mxu0 %v1034
    %1048 = vmatprep.subr.bf16.mxu0 0
    %1049 = vmatpush1.bf16.msra.mxu0 %v1033
    %1050 = vmatprep.subr.bf16.mxu0 0
    %1051 = vmatpush1.bf16.msra.mxu0 %v1032
    %1052 = vmatprep.subr.bf16.mxu0 0
    %1053 = vmatpush1.bf16.msra.mxu0 %v1031
    %1054 = vmatprep.subr.bf16.mxu0 0
    %1055 = vmatpush1.bf16.msra.mxu0 %v1030
    %1056 = vmatprep.subr.bf16.mxu0 0
    %1057 = vmatpush1.bf16.msra.mxu0 %v1029
    %1058 = vmatprep.subr.bf16.mxu0 0
    %1059 = vmatpush1.bf16.msra.mxu0 %v1028
    %1060 = vmatprep.subr.bf16.mxu0 0
    %1061 = vmatpush2.bf16.msra.mxu0 0
    %1062 = vmatprep.subr.bf16.mxu0 0
    %1063 = vmatpush2.bf16.msra.mxu0 0
    %1064 = vmatprep.subr.bf16.mxu0 0
    %1065 = vmatpush2.bf16.msra.mxu0 0
    %1066 = vmatprep.subr.bf16.mxu0 0
    %1067 = vmatpush2.bf16.msra.mxu0 0
    %1068 = vmatprep.subr.bf16.mxu0 0
    %1069 = vmatpush2.bf16.msra.mxu0 0
    %1070 = vmatprep.subr.bf16.mxu0 0
    %1071 = vmatpush2.bf16.msra.mxu0 0
    %1072 = vmatprep.subr.bf16.mxu0 0
    %1073 = vmatpush2.bf16.msra.mxu0 0
    %1074 = vmatprep.subr.bf16.mxu0 0
    %1075 = vmatpush2.bf16.msra.mxu0 0
    %1076 = vmatprep.mubr.bf16.mxu0 0
    %1077 = vmatmul.mubr.bf16.gmra.mxu0 %v979
    %v1078 = vpop.f32.mrf.mxu0
    %v1079 = vadd.f32 0.0, %v1078
    %v1080 = vpop.f32.mrf.mxu0
    %v1081 = vpop.f32.mrf.mxu0
    %v1082 = vpop.f32.mrf.mxu0
    %1083 = vdwg.mxu0
    %v1084 = vadd.f32 %v342, %v1079
    %v1085 = vld [vmem:[#allocation2 + $0x80] sm:$0xff]
    %v1086 = vld [vmem:[#allocation2 + $0x88] sm:$0xff]
    %v1087 = vld [vmem:[#allocation2 + $0x90] sm:$0xff]
    %v1088 = vld [vmem:[#allocation2 + $0x98] sm:$0xff]
    %1089 = vmatprep.subr.bf16.mxu0 %v474
    %1090 = vmatpush1.bf16.msra.mxu0 %v473
    %1091 = vmatprep.subr.bf16.mxu0 %v470
    %1092 = vmatpush1.bf16.msra.mxu0 %v469
    %1093 = vmatprep.subr.bf16.mxu0 %v466
    %1094 = vmatpush1.bf16.msra.mxu0 %v465
    %1095 = vmatprep.subr.bf16.mxu0 %v462
    %1096 = vmatpush1.bf16.msra.mxu0 %v461
    %1097 = vmatprep.subr.bf16.mxu0 %v458
    %1098 = vmatpush1.bf16.msra.mxu0 %v457
    %1099 = vmatprep.subr.bf16.mxu0 %v454
    %1100 = vmatpush1.bf16.msra.mxu0 %v453
    %1101 = vmatprep.subr.bf16.mxu0 %v450
    %1102 = vmatpush1.bf16.msra.mxu0 %v449
    %1103 = vmatprep.subr.bf16.mxu0 %v446
    %1104 = vmatpush1.bf16.msra.mxu0 %v445
    %1105 = vmatprep.subr.bf16.mxu0 0
    %1106 = vmatpush2.bf16.msra.mxu0 0
    %1107 = vmatprep.subr.bf16.mxu0 0
    %1108 = vmatpush2.bf16.msra.mxu0 0
    %1109 = vmatprep.subr.bf16.mxu0 0
    %1110 = vmatpush2.bf16.msra.mxu0 0
    %1111 = vmatprep.subr.bf16.mxu0 0
    %1112 = vmatpush2.bf16.msra.mxu0 0
    %1113 = vmatprep.subr.bf16.mxu0 0
    %1114 = vmatpush2.bf16.msra.mxu0 0
    %1115 = vmatprep.subr.bf16.mxu0 0
    %1116 = vmatpush2.bf16.msra.mxu0 0
    %1117 = vmatprep.subr.bf16.mxu0 0
    %1118 = vmatpush2.bf16.msra.mxu0 0
    %1119 = vmatprep.subr.bf16.mxu0 0
    %1120 = vmatpush2.bf16.msra.mxu0 0
    %1121 = vmatprep.mubr.bf16.mxu0 0
    %1122 = vmatmul.mubr.bf16.gmra.mxu0 %v979
    %v1123 = vpop.f32.mrf.mxu0
    %v1124 = vadd.f32 0.0, %v1123
    %v1125 = vpop.f32.mrf.mxu0
    %v1126 = vadd.f32 0.0, %v1125
    %v1127 = vpop.f32.mrf.mxu0
    %v1128 = vpop.f32.mrf.mxu0
    %1129 = vdwg.mxu0
    %1130 = vmatprep.subr.bf16.mxu0 %v476
    %1131 = vmatpush1.bf16.msra.mxu0 %v475
    %1132 = vmatprep.subr.bf16.mxu0 %v472
    %1133 = vmatpush1.bf16.msra.mxu0 %v471
    %1134 = vmatprep.subr.bf16.mxu0 %v468
    %1135 = vmatpush1.bf16.msra.mxu0 %v467
    %1136 = vmatprep.subr.bf16.mxu0 %v464
    %1137 = vmatpush1.bf16.msra.mxu0 %v463
    %1138 = vmatprep.subr.bf16.mxu0 %v460
    %1139 = vmatpush1.bf16.msra.mxu0 %v459
    %1140 = vmatprep.subr.bf16.mxu0 %v456
    %1141 = vmatpush1.bf16.msra.mxu0 %v455
    %1142 = vmatprep.subr.bf16.mxu0 %v452
    %1143 = vmatpush1.bf16.msra.mxu0 %v451
    %1144 = vmatprep.subr.bf16.mxu0 %v448
    %1145 = vmatpush1.bf16.msra.mxu0 %v447
    %1146 = vmatprep.subr.bf16.mxu0 0
    %1147 = vmatpush2.bf16.msra.mxu0 0
    %1148 = vmatprep.subr.bf16.mxu0 0
    %1149 = vmatpush2.bf16.msra.mxu0 0
    %1150 = vmatprep.subr.bf16.mxu0 0
    %1151 = vmatpush2.bf16.msra.mxu0 0
    %1152 = vmatprep.subr.bf16.mxu0 0
    %1153 = vmatpush2.bf16.msra.mxu0 0
    %1154 = vmatprep.subr.bf16.mxu0 0
    %1155 = vmatpush2.bf16.msra.mxu0 0
    %1156 = vmatprep.subr.bf16.mxu0 0
    %1157 = vmatpush2.bf16.msra.mxu0 0
    %1158 = vmatprep.subr.bf16.mxu0 0
    %1159 = vmatpush2.bf16.msra.mxu0 0
    %1160 = vmatprep.subr.bf16.mxu0 0
    %1161 = vmatpush2.bf16.msra.mxu0 0
    %1162 = vmatprep.mubr.bf16.mxu0 0
    %1163 = vmatmul.mubr.bf16.gmra.mxu0 %v979
    %v1164 = vpop.f32.mrf.mxu0
    %v1165 = vadd.f32 0.0, %v1164
    %v1166 = vpop.f32.mrf.mxu0
    %v1167 = vadd.f32 0.0, %v1166
    %v1168 = vpop.f32.mrf.mxu0
    %v1169 = vpop.f32.mrf.mxu0
    %1170 = vdwg.mxu0
    %v1171 = vadd.f32 %v1085, %v1124
    %v1172 = vadd.f32 %v1086, %v1126
    %v1173 = vadd.f32 %v1087, %v1165
    %v1174 = vadd.f32 %v1088, %v1167
    %v1175 = vxor.u32 %v1171, 2147483648
    %v1176 = vmul.f32 %v1175, 1.442695
    %v1177 = vpow.pop %v1176
    %v1178 = vadd.f32 %v1177, 1.0
    %v1179 = vrcp.pop %v1178
    %v1180 = vmul.f32 1.0, %v1179
    %v1181 = vxor.u32 %v1172, 2147483648
    %v1182 = vmul.f32 %v1181, 1.442695
    %v1183 = vpow.pop %v1182
    %v1184 = vadd.f32 %v1183, 1.0
    %v1185 = vrcp.pop %v1184
    %v1186 = vmul.f32 1.0, %v1185
    %v1187 = vtanh.pop %v1173
    %v1188 = vxor.u32 %v1174, 2147483648
    %v1189 = vmul.f32 %v1188, 1.442695
    %v1190 = vpow.pop %v1189
    %v1191 = vadd.f32 %v1190, 1.0
    %v1192 = vrcp.pop %v1191
    %v1193 = vmul.f32 1.0, %v1192
    %v1194 = vmul.f32 %v1186, %v976
    %v1195 = vmul.f32 %v1180, %v1187
    %v1196 = vadd.f32 %v1194, %v1195
    %v1197 = vtanh.pop %v1196
    %v1198 = vmul.f32 %v1193, %v1197
    %v1199 = vpack.c.bf16 %v1198, %v1198
    %s1200 = scalar_lea.vmem [#allocation6], 64
    %v1201 = vld [vmem:[%s1200] sm:$0xf]
    %v1202 = vld [vmem:[%s1200 + $0x4] sm:$0xf]
    %v1203 = vld [vmem:[%s1200 + $0x8] sm:$0xf]
    %v1204 = vld [vmem:[%s1200 + $0xc] sm:$0xf]
    %v1205 = vld [vmem:[%s1200 + $0x10] sm:$0xf]
    %v1206 = vld [vmem:[%s1200 + $0x14] sm:$0xf]
    %v1207 = vld [vmem:[%s1200 + $0x18] sm:$0xf]
    %v1208 = vld [vmem:[%s1200 + $0x1c] sm:$0xf]
    %v1209 = vld [vmem:[%s1200 + $0x20] sm:$0xf]
    %v1210 = vld [vmem:[%s1200 + $0x24] sm:$0xf]
    %v1211 = vld [vmem:[%s1200 + $0x28] sm:$0xf]
    %v1212 = vld [vmem:[%s1200 + $0x2c] sm:$0xf]
    %v1213 = vld [vmem:[%s1200 + $0x30] sm:$0xf]
    %v1214 = vld [vmem:[%s1200 + $0x34] sm:$0xf]
    %v1215 = vld [vmem:[%s1200 + $0x38] sm:$0xf]
    %v1216 = vld [vmem:[%s1200 + $0x3c] sm:$0xf]
    %v1233 = vunpack.c.l.b16 %v1201
    %v1234 = vunpack.c.l.b16 %v1202
    %v1235 = vunpack.c.l.b16 %v1203
    %v1236 = vunpack.c.l.b16 %v1204
    %v1237 = vunpack.c.l.b16 %v1205
    %v1238 = vunpack.c.l.b16 %v1206
    %v1239 = vunpack.c.l.b16 %v1207
    %v1240 = vunpack.c.l.b16 %v1208
    %v1241 = vunpack.c.l.b16 %v1209
    %v1242 = vunpack.c.l.b16 %v1210
    %v1243 = vunpack.c.l.b16 %v1211
    %v1244 = vunpack.c.l.b16 %v1212
    %v1245 = vunpack.c.l.b16 %v1213
    %v1246 = vunpack.c.l.b16 %v1214
    %v1247 = vunpack.c.l.b16 %v1215
    %v1248 = vunpack.c.l.b16 %v1216
    %v1249 = vpack.c.b16 %v1234, %v1233
    %v1250 = vpack.c.b16 %v1236, %v1235
    %v1251 = vpack.c.b16 %v1238, %v1237
    %v1252 = vpack.c.b16 %v1240, %v1239
    %v1253 = vpack.c.b16 %v1242, %v1241
    %v1254 = vpack.c.b16 %v1244, %v1243
    %v1255 = vpack.c.b16 %v1246, %v1245
    %v1256 = vpack.c.b16 %v1248, %v1247
    %1265 = vmatprep.subr.bf16.mxu0 0
    %1266 = vmatpush1.bf16.msra.mxu0 %v1256
    %1267 = vmatprep.subr.bf16.mxu0 0
    %1268 = vmatpush1.bf16.msra.mxu0 %v1255
    %1269 = vmatprep.subr.bf16.mxu0 0
    %1270 = vmatpush1.bf16.msra.mxu0 %v1254
    %1271 = vmatprep.subr.bf16.mxu0 0
    %1272 = vmatpush1.bf16.msra.mxu0 %v1253
    %1273 = vmatprep.subr.bf16.mxu0 0
    %1274 = vmatpush1.bf16.msra.mxu0 %v1252
    %1275 = vmatprep.subr.bf16.mxu0 0
    %1276 = vmatpush1.bf16.msra.mxu0 %v1251
    %1277 = vmatprep.subr.bf16.mxu0 0
    %1278 = vmatpush1.bf16.msra.mxu0 %v1250
    %1279 = vmatprep.subr.bf16.mxu0 0
    %1280 = vmatpush1.bf16.msra.mxu0 %v1249
    %1281 = vmatprep.subr.bf16.mxu0 0
    %1282 = vmatpush2.bf16.msra.mxu0 0
    %1283 = vmatprep.subr.bf16.mxu0 0
    %1284 = vmatpush2.bf16.msra.mxu0 0
    %1285 = vmatprep.subr.bf16.mxu0 0
    %1286 = vmatpush2.bf16.msra.mxu0 0
    %1287 = vmatprep.subr.bf16.mxu0 0
    %1288 = vmatpush2.bf16.msra.mxu0 0
    %1289 = vmatprep.subr.bf16.mxu0 0
    %1290 = vmatpush2.bf16.msra.mxu0 0
    %1291 = vmatprep.subr.bf16.mxu0 0
    %1292 = vmatpush2.bf16.msra.mxu0 0
    %1293 = vmatprep.subr.bf16.mxu0 0
    %1294 = vmatpush2.bf16.msra.mxu0 0
    %1295 = vmatprep.subr.bf16.mxu0 0
    %1296 = vmatpush2.bf16.msra.mxu0 0
    %1297 = vmatprep.mubr.bf16.mxu0 0
    %1298 = vmatmul.mubr.bf16.gmra.mxu0 %v1199
    %v1299 = vpop.f32.mrf.mxu0
    %v1300 = vadd.f32 0.0, %v1299
    %v1301 = vpop.f32.mrf.mxu0
    %v1302 = vpop.f32.mrf.mxu0
    %v1303 = vpop.f32.mrf.mxu0
    %1304 = vdwg.mxu0
    %v1305 = vadd.f32 %v1084, %v1300
    %v1306 = vld [vmem:[#allocation2 + $0xa0] sm:$0xff]
    %v1307 = vld [vmem:[#allocation2 + $0xa8] sm:$0xff]
    %v1308 = vld [vmem:[#allocation2 + $0xb0] sm:$0xff]
    %v1309 = vld [vmem:[#allocation2 + $0xb8] sm:$0xff]
    %1310 = vmatprep.subr.bf16.mxu0 %v474
    %1311 = vmatpush1.bf16.msra.mxu0 %v473
    %1312 = vmatprep.subr.bf16.mxu0 %v470
    %1313 = vmatpush1.bf16.msra.mxu0 %v469
    %1314 = vmatprep.subr.bf16.mxu0 %v466
    %1315 = vmatpush1.bf16.msra.mxu0 %v465
    %1316 = vmatprep.subr.bf16.mxu0 %v462
    %1317 = vmatpush1.bf16.msra.mxu0 %v461
    %1318 = vmatprep.subr.bf16.mxu0 %v458
    %1319 = vmatpush1.bf16.msra.mxu0 %v457
    %1320 = vmatprep.subr.bf16.mxu0 %v454
    %1321 = vmatpush1.bf16.msra.mxu0 %v453
    %1322 = vmatprep.subr.bf16.mxu0 %v450
    %1323 = vmatpush1.bf16.msra.mxu0 %v449
    %1324 = vmatprep.subr.bf16.mxu0 %v446
    %1325 = vmatpush1.bf16.msra.mxu0 %v445
    %1326 = vmatprep.subr.bf16.mxu0 0
    %1327 = vmatpush2.bf16.msra.mxu0 0
    %1328 = vmatprep.subr.bf16.mxu0 0
    %1329 = vmatpush2.bf16.msra.mxu0 0
    %1330 = vmatprep.subr.bf16.mxu0 0
    %1331 = vmatpush2.bf16.msra.mxu0 0
    %1332 = vmatprep.subr.bf16.mxu0 0
    %1333 = vmatpush2.bf16.msra.mxu0 0
    %1334 = vmatprep.subr.bf16.mxu0 0
    %1335 = vmatpush2.bf16.msra.mxu0 0
    %1336 = vmatprep.subr.bf16.mxu0 0
    %1337 = vmatpush2.bf16.msra.mxu0 0
    %1338 = vmatprep.subr.bf16.mxu0 0
    %1339 = vmatpush2.bf16.msra.mxu0 0
    %1340 = vmatprep.subr.bf16.mxu0 0
    %1341 = vmatpush2.bf16.msra.mxu0 0
    %1342 = vmatprep.mubr.bf16.mxu0 0
    %1343 = vmatmul.mubr.bf16.gmra.mxu0 %v1199
    %v1344 = vpop.f32.mrf.mxu0
    %v1345 = vadd.f32 0.0, %v1344
    %v1346 = vpop.f32.mrf.mxu0
    %v1347 = vadd.f32 0.0, %v1346
    %v1348 = vpop.f32.mrf.mxu0
    %v1349 = vpop.f32.mrf.mxu0
    %1350 = vdwg.mxu0
    %1351 = vmatprep.subr.bf16.mxu0 %v476
    %1352 = vmatpush1.bf16.msra.mxu0 %v475
    %1353 = vmatprep.subr.bf16.mxu0 %v472
    %1354 = vmatpush1.bf16.msra.mxu0 %v471
    %1355 = vmatprep.subr.bf16.mxu0 %v468
    %1356 = vmatpush1.bf16.msra.mxu0 %v467
    %1357 = vmatprep.subr.bf16.mxu0 %v464
    %1358 = vmatpush1.bf16.msra.mxu0 %v463
    %1359 = vmatprep.subr.bf16.mxu0 %v460
    %1360 = vmatpush1.bf16.msra.mxu0 %v459
    %1361 = vmatprep.subr.bf16.mxu0 %v456
    %1362 = vmatpush1.bf16.msra.mxu0 %v455
    %1363 = vmatprep.subr.bf16.mxu0 %v452
    %1364 = vmatpush1.bf16.msra.mxu0 %v451
    %1365 = vmatprep.subr.bf16.mxu0 %v448
    %1366 = vmatpush1.bf16.msra.mxu0 %v447
    %1367 = vmatprep.subr.bf16.mxu0 0
    %1368 = vmatpush2.bf16.msra.mxu0 0
    %1369 = vmatprep.subr.bf16.mxu0 0
    %1370 = vmatpush2.bf16.msra.mxu0 0
    %1371 = vmatprep.subr.bf16.mxu0 0
    %1372 = vmatpush2.bf16.msra.mxu0 0
    %1373 = vmatprep.subr.bf16.mxu0 0
    %1374 = vmatpush2.bf16.msra.mxu0 0
    %1375 = vmatprep.subr.bf16.mxu0 0
    %1376 = vmatpush2.bf16.msra.mxu0 0
    %1377 = vmatprep.subr.bf16.mxu0 0
    %1378 = vmatpush2.bf16.msra.mxu0 0
    %1379 = vmatprep.subr.bf16.mxu0 0
    %1380 = vmatpush2.bf16.msra.mxu0 0
    %1381 = vmatprep.subr.bf16.mxu0 0
    %1382 = vmatpush2.bf16.msra.mxu0 0
    %1383 = vmatprep.mubr.bf16.mxu0 0
    %1384 = vmatmul.mubr.bf16.gmra.mxu0 %v1199
    %v1385 = vpop.f32.mrf.mxu0
    %v1386 = vadd.f32 0.0, %v1385
    %v1387 = vpop.f32.mrf.mxu0
    %v1388 = vadd.f32 0.0, %v1387
    %v1389 = vpop.f32.mrf.mxu0
    %v1390 = vpop.f32.mrf.mxu0
    %1391 = vdwg.mxu0
    %v1392 = vadd.f32 %v1306, %v1345
    %v1393 = vadd.f32 %v1307, %v1347
    %v1394 = vadd.f32 %v1308, %v1386
    %v1395 = vadd.f32 %v1309, %v1388
    %v1396 = vxor.u32 %v1392, 2147483648
    %v1397 = vmul.f32 %v1396, 1.442695
    %v1398 = vpow.pop %v1397
    %v1399 = vadd.f32 %v1398, 1.0
    %v1400 = vrcp.pop %v1399
    %v1401 = vmul.f32 1.0, %v1400
    %v1402 = vxor.u32 %v1393, 2147483648
    %v1403 = vmul.f32 %v1402, 1.442695
    %v1404 = vpow.pop %v1403
    %v1405 = vadd.f32 %v1404, 1.0
    %v1406 = vrcp.pop %v1405
    %v1407 = vmul.f32 1.0, %v1406
    %v1408 = vtanh.pop %v1394
    %v1409 = vxor.u32 %v1395, 2147483648
    %v1410 = vmul.f32 %v1409, 1.442695
    %v1411 = vpow.pop %v1410
    %v1412 = vadd.f32 %v1411, 1.0
    %v1413 = vrcp.pop %v1412
    %v1414 = vmul.f32 1.0, %v1413
    %v1415 = vmul.f32 %v1407, %v1196
    %v1416 = vmul.f32 %v1401, %v1408
    %v1417 = vadd.f32 %v1415, %v1416
    %v1418 = vtanh.pop %v1417
    %v1419 = vmul.f32 %v1414, %v1418
    %v1420 = vpack.c.bf16 %v1419, %v1419
    %s1421 = scalar_lea.vmem [#allocation6], 128
    %v1422 = vld [vmem:[%s1421] sm:$0xf]
    %v1423 = vld [vmem:[%s1421 + $0x4] sm:$0xf]
    %v1424 = vld [vmem:[%s1421 + $0x8] sm:$0xf]
    %v1425 = vld [vmem:[%s1421 + $0xc] sm:$0xf]
    %v1426 = vld [vmem:[%s1421 + $0x10] sm:$0xf]
    %v1427 = vld [vmem:[%s1421 + $0x14] sm:$0xf]
    %v1428 = vld [vmem:[%s1421 + $0x18] sm:$0xf]
    %v1429 = vld [vmem:[%s1421 + $0x1c] sm:$0xf]
    %v1430 = vld [vmem:[%s1421 + $0x20] sm:$0xf]
    %v1431 = vld [vmem:[%s1421 + $0x24] sm:$0xf]
    %v1432 = vld [vmem:[%s1421 + $0x28] sm:$0xf]
    %v1433 = vld [vmem:[%s1421 + $0x2c] sm:$0xf]
    %v1434 = vld [vmem:[%s1421 + $0x30] sm:$0xf]
    %v1435 = vld [vmem:[%s1421 + $0x34] sm:$0xf]
    %v1436 = vld [vmem:[%s1421 + $0x38] sm:$0xf]
    %v1437 = vld [vmem:[%s1421 + $0x3c] sm:$0xf]
    %v1454 = vunpack.c.l.b16 %v1422
    %v1455 = vunpack.c.l.b16 %v1423
    %v1456 = vunpack.c.l.b16 %v1424
    %v1457 = vunpack.c.l.b16 %v1425
    %v1458 = vunpack.c.l.b16 %v1426
    %v1459 = vunpack.c.l.b16 %v1427
    %v1460 = vunpack.c.l.b16 %v1428
    %v1461 = vunpack.c.l.b16 %v1429
    %v1462 = vunpack.c.l.b16 %v1430
    %v1463 = vunpack.c.l.b16 %v1431
    %v1464 = vunpack.c.l.b16 %v1432
    %v1465 = vunpack.c.l.b16 %v1433
    %v1466 = vunpack.c.l.b16 %v1434
    %v1467 = vunpack.c.l.b16 %v1435
    %v1468 = vunpack.c.l.b16 %v1436
    %v1469 = vunpack.c.l.b16 %v1437
    %v1470 = vpack.c.b16 %v1455, %v1454
    %v1471 = vpack.c.b16 %v1457, %v1456
    %v1472 = vpack.c.b16 %v1459, %v1458
    %v1473 = vpack.c.b16 %v1461, %v1460
    %v1474 = vpack.c.b16 %v1463, %v1462
    %v1475 = vpack.c.b16 %v1465, %v1464
    %v1476 = vpack.c.b16 %v1467, %v1466
    %v1477 = vpack.c.b16 %v1469, %v1468
    %1486 = vmatprep.subr.bf16.mxu0 0
    %1487 = vmatpush1.bf16.msra.mxu0 %v1477
    %1488 = vmatprep.subr.bf16.mxu0 0
    %1489 = vmatpush1.bf16.msra.mxu0 %v1476
    %1490 = vmatprep.subr.bf16.mxu0 0
    %1491 = vmatpush1.bf16.msra.mxu0 %v1475
    %1492 = vmatprep.subr.bf16.mxu0 0
    %1493 = vmatpush1.bf16.msra.mxu0 %v1474
    %1494 = vmatprep.subr.bf16.mxu0 0
    %1495 = vmatpush1.bf16.msra.mxu0 %v1473
    %1496 = vmatprep.subr.bf16.mxu0 0
    %1497 = vmatpush1.bf16.msra.mxu0 %v1472
    %1498 = vmatprep.subr.bf16.mxu0 0
    %1499 = vmatpush1.bf16.msra.mxu0 %v1471
    %1500 = vmatprep.subr.bf16.mxu0 0
    %1501 = vmatpush1.bf16.msra.mxu0 %v1470
    %1502 = vmatprep.subr.bf16.mxu0 0
    %1503 = vmatpush2.bf16.msra.mxu0 0
    %1504 = vmatprep.subr.bf16.mxu0 0
    %1505 = vmatpush2.bf16.msra.mxu0 0
    %1506 = vmatprep.subr.bf16.mxu0 0
    %1507 = vmatpush2.bf16.msra.mxu0 0
    %1508 = vmatprep.subr.bf16.mxu0 0
    %1509 = vmatpush2.bf16.msra.mxu0 0
    %1510 = vmatprep.subr.bf16.mxu0 0
    %1511 = vmatpush2.bf16.msra.mxu0 0
    %1512 = vmatprep.subr.bf16.mxu0 0
    %1513 = vmatpush2.bf16.msra.mxu0 0
    %1514 = vmatprep.subr.bf16.mxu0 0
    %1515 = vmatpush2.bf16.msra.mxu0 0
    %1516 = vmatprep.subr.bf16.mxu0 0
    %1517 = vmatpush2.bf16.msra.mxu0 0
    %1518 = vmatprep.mubr.bf16.mxu0 0
    %1519 = vmatmul.mubr.bf16.gmra.mxu0 %v1420
    %v1520 = vpop.f32.mrf.mxu0
    %v1521 = vadd.f32 0.0, %v1520
    %v1522 = vpop.f32.mrf.mxu0
    %v1523 = vpop.f32.mrf.mxu0
    %v1524 = vpop.f32.mrf.mxu0
    %1525 = vdwg.mxu0
    %v1526 = vadd.f32 %v1305, %v1521
    %v1527 = vld [vmem:[#allocation2 + $0xc0] sm:$0xff]
    %v1528 = vld [vmem:[#allocation2 + $0xc8] sm:$0xff]
    %v1529 = vld [vmem:[#allocation2 + $0xd0] sm:$0xff]
    %v1530 = vld [vmem:[#allocation2 + $0xd8] sm:$0xff]
    %1531 = vmatprep.subr.bf16.mxu0 %v474
    %1532 = vmatpush1.bf16.msra.mxu0 %v473
    %1533 = vmatprep.subr.bf16.mxu0 %v470
    %1534 = vmatpush1.bf16.msra.mxu0 %v469
    %1535 = vmatprep.subr.bf16.mxu0 %v466
    %1536 = vmatpush1.bf16.msra.mxu0 %v465
    %1537 = vmatprep.subr.bf16.mxu0 %v462
    %1538 = vmatpush1.bf16.msra.mxu0 %v461
    %1539 = vmatprep.subr.bf16.mxu0 %v458
    %1540 = vmatpush1.bf16.msra.mxu0 %v457
    %1541 = vmatprep.subr.bf16.mxu0 %v454
    %1542 = vmatpush1.bf16.msra.mxu0 %v453
    %1543 = vmatprep.subr.bf16.mxu0 %v450
    %1544 = vmatpush1.bf16.msra.mxu0 %v449
    %1545 = vmatprep.subr.bf16.mxu0 %v446
    %1546 = vmatpush1.bf16.msra.mxu0 %v445
    %1547 = vmatprep.subr.bf16.mxu0 0
    %1548 = vmatpush2.bf16.msra.mxu0 0
    %1549 = vmatprep.subr.bf16.mxu0 0
    %1550 = vmatpush2.bf16.msra.mxu0 0
    %1551 = vmatprep.subr.bf16.mxu0 0
    %1552 = vmatpush2.bf16.msra.mxu0 0
    %1553 = vmatprep.subr.bf16.mxu0 0
    %1554 = vmatpush2.bf16.msra.mxu0 0
    %1555 = vmatprep.subr.bf16.mxu0 0
    %1556 = vmatpush2.bf16.msra.mxu0 0
    %1557 = vmatprep.subr.bf16.mxu0 0
    %1558 = vmatpush2.bf16.msra.mxu0 0
    %1559 = vmatprep.subr.bf16.mxu0 0
    %1560 = vmatpush2.bf16.msra.mxu0 0
    %1561 = vmatprep.subr.bf16.mxu0 0
    %1562 = vmatpush2.bf16.msra.mxu0 0
    %1563 = vmatprep.mubr.bf16.mxu0 0
    %1564 = vmatmul.mubr.bf16.gmra.mxu0 %v1420
    %v1565 = vpop.f32.mrf.mxu0
    %v1566 = vadd.f32 0.0, %v1565
    %v1567 = vpop.f32.mrf.mxu0
    %v1568 = vadd.f32 0.0, %v1567
    %v1569 = vpop.f32.mrf.mxu0
    %v1570 = vpop.f32.mrf.mxu0
    %1571 = vdwg.mxu0
    %1572 = vmatprep.subr.bf16.mxu0 %v476
    %1573 = vmatpush1.bf16.msra.mxu0 %v475
    %1574 = vmatprep.subr.bf16.mxu0 %v472
    %1575 = vmatpush1.bf16.msra.mxu0 %v471
    %1576 = vmatprep.subr.bf16.mxu0 %v468
    %1577 = vmatpush1.bf16.msra.mxu0 %v467
    %1578 = vmatprep.subr.bf16.mxu0 %v464
    %1579 = vmatpush1.bf16.msra.mxu0 %v463
    %1580 = vmatprep.subr.bf16.mxu0 %v460
    %1581 = vmatpush1.bf16.msra.mxu0 %v459
    %1582 = vmatprep.subr.bf16.mxu0 %v456
    %1583 = vmatpush1.bf16.msra.mxu0 %v455
    %1584 = vmatprep.subr.bf16.mxu0 %v452
    %1585 = vmatpush1.bf16.msra.mxu0 %v451
    %1586 = vmatprep.subr.bf16.mxu0 %v448
    %1587 = vmatpush1.bf16.msra.mxu0 %v447
    %1588 = vmatprep.subr.bf16.mxu0 0
    %1589 = vmatpush2.bf16.msra.mxu0 0
    %1590 = vmatprep.subr.bf16.mxu0 0
    %1591 = vmatpush2.bf16.msra.mxu0 0
    %1592 = vmatprep.subr.bf16.mxu0 0
    %1593 = vmatpush2.bf16.msra.mxu0 0
    %1594 = vmatprep.subr.bf16.mxu0 0
    %1595 = vmatpush2.bf16.msra.mxu0 0
    %1596 = vmatprep.subr.bf16.mxu0 0
    %1597 = vmatpush2.bf16.msra.mxu0 0
    %1598 = vmatprep.subr.bf16.mxu0 0
    %1599 = vmatpush2.bf16.msra.mxu0 0
    %1600 = vmatprep.subr.bf16.mxu0 0
    %1601 = vmatpush2.bf16.msra.mxu0 0
    %1602 = vmatprep.subr.bf16.mxu0 0
    %1603 = vmatpush2.bf16.msra.mxu0 0
    %1604 = vmatprep.mubr.bf16.mxu0 0
    %1605 = vmatmul.mubr.bf16.gmra.mxu0 %v1420
    %v1606 = vpop.f32.mrf.mxu0
    %v1607 = vadd.f32 0.0, %v1606
    %v1608 = vpop.f32.mrf.mxu0
    %v1609 = vadd.f32 0.0, %v1608
    %v1610 = vpop.f32.mrf.mxu0
    %v1611 = vpop.f32.mrf.mxu0
    %1612 = vdwg.mxu0
    %v1613 = vadd.f32 %v1527, %v1566
    %v1614 = vadd.f32 %v1528, %v1568
    %v1615 = vadd.f32 %v1529, %v1607
    %v1616 = vadd.f32 %v1530, %v1609
    %v1617 = vxor.u32 %v1613, 2147483648
    %v1618 = vmul.f32 %v1617, 1.442695
    %v1619 = vpow.pop %v1618
    %v1620 = vadd.f32 %v1619, 1.0
    %v1621 = vrcp.pop %v1620
    %v1622 = vmul.f32 1.0, %v1621
    %v1623 = vxor.u32 %v1614, 2147483648
    %v1624 = vmul.f32 %v1623, 1.442695
    %v1625 = vpow.pop %v1624
    %v1626 = vadd.f32 %v1625, 1.0
    %v1627 = vrcp.pop %v1626
    %v1628 = vmul.f32 1.0, %v1627
    %v1629 = vtanh.pop %v1615
    %v1630 = vxor.u32 %v1616, 2147483648
    %v1631 = vmul.f32 %v1630, 1.442695
    %v1632 = vpow.pop %v1631
    %v1633 = vadd.f32 %v1632, 1.0
    %v1634 = vrcp.pop %v1633
    %v1635 = vmul.f32 1.0, %v1634
    %v1636 = vmul.f32 %v1628, %v1417
    %v1637 = vmul.f32 %v1622, %v1629
    %v1638 = vadd.f32 %v1636, %v1637
    %v1639 = vtanh.pop %v1638
    %v1640 = vmul.f32 %v1635, %v1639
    %v1641 = vpack.c.bf16 %v1640, %v1640
    %s1642 = scalar_lea.vmem [#allocation6], 192
    %v1643 = vld [vmem:[%s1642] sm:$0xf]
    %v1644 = vld [vmem:[%s1642 + $0x4] sm:$0xf]
    %v1645 = vld [vmem:[%s1642 + $0x8] sm:$0xf]
    %v1646 = vld [vmem:[%s1642 + $0xc] sm:$0xf]
    %v1647 = vld [vmem:[%s1642 + $0x10] sm:$0xf]
    %v1648 = vld [vmem:[%s1642 + $0x14] sm:$0xf]
    %v1649 = vld [vmem:[%s1642 + $0x18] sm:$0xf]
    %v1650 = vld [vmem:[%s1642 + $0x1c] sm:$0xf]
    %v1651 = vld [vmem:[%s1642 + $0x20] sm:$0xf]
    %v1652 = vld [vmem:[%s1642 + $0x24] sm:$0xf]
    %v1653 = vld [vmem:[%s1642 + $0x28] sm:$0xf]
    %v1654 = vld [vmem:[%s1642 + $0x2c] sm:$0xf]
    %v1655 = vld [vmem:[%s1642 + $0x30] sm:$0xf]
    %v1656 = vld [vmem:[%s1642 + $0x34] sm:$0xf]
    %v1657 = vld [vmem:[%s1642 + $0x38] sm:$0xf]
    %v1658 = vld [vmem:[%s1642 + $0x3c] sm:$0xf]
    %v1675 = vunpack.c.l.b16 %v1643
    %v1676 = vunpack.c.l.b16 %v1644
    %v1677 = vunpack.c.l.b16 %v1645
    %v1678 = vunpack.c.l.b16 %v1646
    %v1679 = vunpack.c.l.b16 %v1647
    %v1680 = vunpack.c.l.b16 %v1648
    %v1681 = vunpack.c.l.b16 %v1649
    %v1682 = vunpack.c.l.b16 %v1650
    %v1683 = vunpack.c.l.b16 %v1651
    %v1684 = vunpack.c.l.b16 %v1652
    %v1685 = vunpack.c.l.b16 %v1653
    %v1686 = vunpack.c.l.b16 %v1654
    %v1687 = vunpack.c.l.b16 %v1655
    %v1688 = vunpack.c.l.b16 %v1656
    %v1689 = vunpack.c.l.b16 %v1657
    %v1690 = vunpack.c.l.b16 %v1658
    %v1691 = vpack.c.b16 %v1676, %v1675
    %v1692 = vpack.c.b16 %v1678, %v1677
    %v1693 = vpack.c.b16 %v1680, %v1679
    %v1694 = vpack.c.b16 %v1682, %v1681
    %v1695 = vpack.c.b16 %v1684, %v1683
    %v1696 = vpack.c.b16 %v1686, %v1685
    %v1697 = vpack.c.b16 %v1688, %v1687
    %v1698 = vpack.c.b16 %v1690, %v1689
    %1707 = vmatprep.subr.bf16.mxu0 0
    %1708 = vmatpush1.bf16.msra.mxu0 %v1698
    %1709 = vmatprep.subr.bf16.mxu0 0
    %1710 = vmatpush1.bf16.msra.mxu0 %v1697
    %1711 = vmatprep.subr.bf16.mxu0 0
    %1712 = vmatpush1.bf16.msra.mxu0 %v1696
    %1713 = vmatprep.subr.bf16.mxu0 0
    %1714 = vmatpush1.bf16.msra.mxu0 %v1695
    %1715 = vmatprep.subr.bf16.mxu0 0
    %1716 = vmatpush1.bf16.msra.mxu0 %v1694
    %1717 = vmatprep.subr.bf16.mxu0 0
    %1718 = vmatpush1.bf16.msra.mxu0 %v1693
    %1719 = vmatprep.subr.bf16.mxu0 0
    %1720 = vmatpush1.bf16.msra.mxu0 %v1692
    %1721 = vmatprep.subr.bf16.mxu0 0
    %1722 = vmatpush1.bf16.msra.mxu0 %v1691
    %1723 = vmatprep.subr.bf16.mxu0 0
    %1724 = vmatpush2.bf16.msra.mxu0 0
    %1725 = vmatprep.subr.bf16.mxu0 0
    %1726 = vmatpush2.bf16.msra.mxu0 0
    %1727 = vmatprep.subr.bf16.mxu0 0
    %1728 = vmatpush2.bf16.msra.mxu0 0
    %1729 = vmatprep.subr.bf16.mxu0 0
    %1730 = vmatpush2.bf16.msra.mxu0 0
    %1731 = vmatprep.subr.bf16.mxu0 0
    %1732 = vmatpush2.bf16.msra.mxu0 0
    %1733 = vmatprep.subr.bf16.mxu0 0
    %1734 = vmatpush2.bf16.msra.mxu0 0
    %1735 = vmatprep.subr.bf16.mxu0 0
    %1736 = vmatpush2.bf16.msra.mxu0 0
    %1737 = vmatprep.subr.bf16.mxu0 0
    %1738 = vmatpush2.bf16.msra.mxu0 0
    %1739 = vmatprep.mubr.bf16.mxu0 0
    %1740 = vmatmul.mubr.bf16.gmra.mxu0 %v1641
    %v1741 = vpop.f32.mrf.mxu0
    %v1742 = vadd.f32 0.0, %v1741
    %v1743 = vpop.f32.mrf.mxu0
    %v1744 = vpop.f32.mrf.mxu0
    %v1745 = vpop.f32.mrf.mxu0
    %1746 = vdwg.mxu0
    %v1747 = vadd.f32 %v1526, %v1742
    %v1748 = vld [vmem:[#allocation2 + $0xe0] sm:$0xff]
    %v1749 = vld [vmem:[#allocation2 + $0xe8] sm:$0xff]
    %v1750 = vld [vmem:[#allocation2 + $0xf0] sm:$0xff]
    %v1751 = vld [vmem:[#allocation2 + $0xf8] sm:$0xff]
    %1752 = vmatprep.subr.bf16.mxu0 %v474
    %1753 = vmatpush1.bf16.msra.mxu0 %v473
    %1754 = vmatprep.subr.bf16.mxu0 %v470
    %1755 = vmatpush1.bf16.msra.mxu0 %v469
    %1756 = vmatprep.subr.bf16.mxu0 %v466
    %1757 = vmatpush1.bf16.msra.mxu0 %v465
    %1758 = vmatprep.subr.bf16.mxu0 %v462
    %1759 = vmatpush1.bf16.msra.mxu0 %v461
    %1760 = vmatprep.subr.bf16.mxu0 %v458
    %1761 = vmatpush1.bf16.msra.mxu0 %v457
    %1762 = vmatprep.subr.bf16.mxu0 %v454
    %1763 = vmatpush1.bf16.msra.mxu0 %v453
    %1764 = vmatprep.subr.bf16.mxu0 %v450
    %1765 = vmatpush1.bf16.msra.mxu0 %v449
    %1766 = vmatprep.subr.bf16.mxu0 %v446
    %1767 = vmatpush1.bf16.msra.mxu0 %v445
    %1768 = vmatprep.subr.bf16.mxu0 0
    %1769 = vmatpush2.bf16.msra.mxu0 0
    %1770 = vmatprep.subr.bf16.mxu0 0
    %1771 = vmatpush2.bf16.msra.mxu0 0
    %1772 = vmatprep.subr.bf16.mxu0 0
    %1773 = vmatpush2.bf16.msra.mxu0 0
    %1774 = vmatprep.subr.bf16.mxu0 0
    %1775 = vmatpush2.bf16.msra.mxu0 0
    %1776 = vmatprep.subr.bf16.mxu0 0
    %1777 = vmatpush2.bf16.msra.mxu0 0
    %1778 = vmatprep.subr.bf16.mxu0 0
    %1779 = vmatpush2.bf16.msra.mxu0 0
    %1780 = vmatprep.subr.bf16.mxu0 0
    %1781 = vmatpush2.bf16.msra.mxu0 0
    %1782 = vmatprep.subr.bf16.mxu0 0
    %1783 = vmatpush2.bf16.msra.mxu0 0
    %1784 = vmatprep.mubr.bf16.mxu0 0
    %1785 = vmatmul.mubr.bf16.gmra.mxu0 %v1641
    %v1786 = vpop.f32.mrf.mxu0
    %v1787 = vadd.f32 0.0, %v1786
    %v1788 = vpop.f32.mrf.mxu0
    %v1789 = vadd.f32 0.0, %v1788
    %v1790 = vpop.f32.mrf.mxu0
    %v1791 = vpop.f32.mrf.mxu0
    %1792 = vdwg.mxu0
    %1793 = vmatprep.subr.bf16.mxu0 %v476
    %1794 = vmatpush1.bf16.msra.mxu0 %v475
    %1795 = vmatprep.subr.bf16.mxu0 %v472
    %1796 = vmatpush1.bf16.msra.mxu0 %v471
    %1797 = vmatprep.subr.bf16.mxu0 %v468
    %1798 = vmatpush1.bf16.msra.mxu0 %v467
    %1799 = vmatprep.subr.bf16.mxu0 %v464
    %1800 = vmatpush1.bf16.msra.mxu0 %v463
    %1801 = vmatprep.subr.bf16.mxu0 %v460
    %1802 = vmatpush1.bf16.msra.mxu0 %v459
    %1803 = vmatprep.subr.bf16.mxu0 %v456
    %1804 = vmatpush1.bf16.msra.mxu0 %v455
    %1805 = vmatprep.subr.bf16.mxu0 %v452
    %1806 = vmatpush1.bf16.msra.mxu0 %v451
    %1807 = vmatprep.subr.bf16.mxu0 %v448
    %1808 = vmatpush1.bf16.msra.mxu0 %v447
    %1809 = vmatprep.subr.bf16.mxu0 0
    %1810 = vmatpush2.bf16.msra.mxu0 0
    %1811 = vmatprep.subr.bf16.mxu0 0
    %1812 = vmatpush2.bf16.msra.mxu0 0
    %1813 = vmatprep.subr.bf16.mxu0 0
    %1814 = vmatpush2.bf16.msra.mxu0 0
    %1815 = vmatprep.subr.bf16.mxu0 0
    %1816 = vmatpush2.bf16.msra.mxu0 0
    %1817 = vmatprep.subr.bf16.mxu0 0
    %1818 = vmatpush2.bf16.msra.mxu0 0
    %1819 = vmatprep.subr.bf16.mxu0 0
    %1820 = vmatpush2.bf16.msra.mxu0 0
    %1821 = vmatprep.subr.bf16.mxu0 0
    %1822 = vmatpush2.bf16.msra.mxu0 0
    %1823 = vmatprep.subr.bf16.mxu0 0
    %1824 = vmatpush2.bf16.msra.mxu0 0
    %1825 = vmatprep.mubr.bf16.mxu0 0
    %1826 = vmatmul.mubr.bf16.gmra.mxu0 %v1641
    %v1827 = vpop.f32.mrf.mxu0
    %v1828 = vadd.f32 0.0, %v1827
    %v1829 = vpop.f32.mrf.mxu0
    %v1830 = vadd.f32 0.0, %v1829
    %v1831 = vpop.f32.mrf.mxu0
    %v1832 = vpop.f32.mrf.mxu0
    %1833 = vdwg.mxu0
    %v1834 = vadd.f32 %v1748, %v1787
    %v1835 = vadd.f32 %v1749, %v1789
    %v1836 = vadd.f32 %v1750, %v1828
    %v1837 = vadd.f32 %v1751, %v1830
    %v1838 = vxor.u32 %v1834, 2147483648
    %v1839 = vmul.f32 %v1838, 1.442695
    %v1840 = vpow.pop %v1839
    %v1841 = vadd.f32 %v1840, 1.0
    %v1842 = vrcp.pop %v1841
    %v1843 = vmul.f32 1.0, %v1842
    %v1844 = vxor.u32 %v1835, 2147483648
    %v1845 = vmul.f32 %v1844, 1.442695
    %v1846 = vpow.pop %v1845
    %v1847 = vadd.f32 %v1846, 1.0
    %v1848 = vrcp.pop %v1847
    %v1849 = vmul.f32 1.0, %v1848
    %v1850 = vtanh.pop %v1836
    %v1851 = vxor.u32 %v1837, 2147483648
    %v1852 = vmul.f32 %v1851, 1.442695
    %v1853 = vpow.pop %v1852
    %v1854 = vadd.f32 %v1853, 1.0
    %v1855 = vrcp.pop %v1854
    %v1856 = vmul.f32 1.0, %v1855
    %v1857 = vmul.f32 %v1849, %v1638
    %v1858 = vmul.f32 %v1843, %v1850
    %v1859 = vadd.f32 %v1857, %v1858
    %v1860 = vtanh.pop %v1859
    %v1861 = vmul.f32 %v1856, %v1860
    %v1862 = vpack.c.bf16 %v1861, %v1861
    %s1863 = scalar_lea.vmem [#allocation6], 256
    %v1864 = vld [vmem:[%s1863] sm:$0xf]
    %v1865 = vld [vmem:[%s1863 + $0x4] sm:$0xf]
    %v1866 = vld [vmem:[%s1863 + $0x8] sm:$0xf]
    %v1867 = vld [vmem:[%s1863 + $0xc] sm:$0xf]
    %v1868 = vld [vmem:[%s1863 + $0x10] sm:$0xf]
    %v1869 = vld [vmem:[%s1863 + $0x14] sm:$0xf]
    %v1870 = vld [vmem:[%s1863 + $0x18] sm:$0xf]
    %v1871 = vld [vmem:[%s1863 + $0x1c] sm:$0xf]
    %v1872 = vld [vmem:[%s1863 + $0x20] sm:$0xf]
    %v1873 = vld [vmem:[%s1863 + $0x24] sm:$0xf]
    %v1874 = vld [vmem:[%s1863 + $0x28] sm:$0xf]
    %v1875 = vld [vmem:[%s1863 + $0x2c] sm:$0xf]
    %v1876 = vld [vmem:[%s1863 + $0x30] sm:$0xf]
    %v1877 = vld [vmem:[%s1863 + $0x34] sm:$0xf]
    %v1878 = vld [vmem:[%s1863 + $0x38] sm:$0xf]
    %v1879 = vld [vmem:[%s1863 + $0x3c] sm:$0xf]
    %v1896 = vunpack.c.l.b16 %v1864
    %v1897 = vunpack.c.l.b16 %v1865
    %v1898 = vunpack.c.l.b16 %v1866
    %v1899 = vunpack.c.l.b16 %v1867
    %v1900 = vunpack.c.l.b16 %v1868
    %v1901 = vunpack.c.l.b16 %v1869
    %v1902 = vunpack.c.l.b16 %v1870
    %v1903 = vunpack.c.l.b16 %v1871
    %v1904 = vunpack.c.l.b16 %v1872
    %v1905 = vunpack.c.l.b16 %v1873
    %v1906 = vunpack.c.l.b16 %v1874
    %v1907 = vunpack.c.l.b16 %v1875
    %v1908 = vunpack.c.l.b16 %v1876
    %v1909 = vunpack.c.l.b16 %v1877
    %v1910 = vunpack.c.l.b16 %v1878
    %v1911 = vunpack.c.l.b16 %v1879
    %v1912 = vpack.c.b16 %v1897, %v1896
    %v1913 = vpack.c.b16 %v1899, %v1898
    %v1914 = vpack.c.b16 %v1901, %v1900
    %v1915 = vpack.c.b16 %v1903, %v1902
    %v1916 = vpack.c.b16 %v1905, %v1904
    %v1917 = vpack.c.b16 %v1907, %v1906
    %v1918 = vpack.c.b16 %v1909, %v1908
    %v1919 = vpack.c.b16 %v1911, %v1910
    %1928 = vmatprep.subr.bf16.mxu0 0
    %1929 = vmatpush1.bf16.msra.mxu0 %v1919
    %1930 = vmatprep.subr.bf16.mxu0 0
    %1931 = vmatpush1.bf16.msra.mxu0 %v1918
    %1932 = vmatprep.subr.bf16.mxu0 0
    %1933 = vmatpush1.bf16.msra.mxu0 %v1917
    %1934 = vmatprep.subr.bf16.mxu0 0
    %1935 = vmatpush1.bf16.msra.mxu0 %v1916
    %1936 = vmatprep.subr.bf16.mxu0 0
    %1937 = vmatpush1.bf16.msra.mxu0 %v1915
    %1938 = vmatprep.subr.bf16.mxu0 0
    %1939 = vmatpush1.bf16.msra.mxu0 %v1914
    %1940 = vmatprep.subr.bf16.mxu0 0
    %1941 = vmatpush1.bf16.msra.mxu0 %v1913
    %1942 = vmatprep.subr.bf16.mxu0 0
    %1943 = vmatpush1.bf16.msra.mxu0 %v1912
    %1944 = vmatprep.subr.bf16.mxu0 0
    %1945 = vmatpush2.bf16.msra.mxu0 0
    %1946 = vmatprep.subr.bf16.mxu0 0
    %1947 = vmatpush2.bf16.msra.mxu0 0
    %1948 = vmatprep.subr.bf16.mxu0 0
    %1949 = vmatpush2.bf16.msra.mxu0 0
    %1950 = vmatprep.subr.bf16.mxu0 0
    %1951 = vmatpush2.bf16.msra.mxu0 0
    %1952 = vmatprep.subr.bf16.mxu0 0
    %1953 = vmatpush2.bf16.msra.mxu0 0
    %1954 = vmatprep.subr.bf16.mxu0 0
    %1955 = vmatpush2.bf16.msra.mxu0 0
    %1956 = vmatprep.subr.bf16.mxu0 0
    %1957 = vmatpush2.bf16.msra.mxu0 0
    %1958 = vmatprep.subr.bf16.mxu0 0
    %1959 = vmatpush2.bf16.msra.mxu0 0
    %1960 = vmatprep.mubr.bf16.mxu0 0
    %1961 = vmatmul.mubr.bf16.gmra.mxu0 %v1862
    %v1962 = vpop.f32.mrf.mxu0
    %v1963 = vadd.f32 0.0, %v1962
    %v1964 = vpop.f32.mrf.mxu0
    %v1965 = vpop.f32.mrf.mxu0
    %v1966 = vpop.f32.mrf.mxu0
    %1967 = vdwg.mxu0
    %v1968 = vadd.f32 %v1747, %v1963
    %1969 = vmatprep.subr.bf16.mxu0 %v474
    %1970 = vmatpush1.bf16.msra.mxu0 %v473
    %1971 = vmatprep.subr.bf16.mxu0 %v470
    %1972 = vmatpush1.bf16.msra.mxu0 %v469
    %1973 = vmatprep.subr.bf16.mxu0 %v466
    %1974 = vmatpush1.bf16.msra.mxu0 %v465
    %1975 = vmatprep.subr.bf16.mxu0 %v462
    %1976 = vmatpush1.bf16.msra.mxu0 %v461
    %1977 = vmatprep.subr.bf16.mxu0 %v458
    %1978 = vmatpush1.bf16.msra.mxu0 %v457
    %1979 = vmatprep.subr.bf16.mxu0 %v454
    %1980 = vmatpush1.bf16.msra.mxu0 %v453
    %1981 = vmatprep.subr.bf16.mxu0 %v450
    %1982 = vmatpush1.bf16.msra.mxu0 %v449
    %1983 = vmatprep.subr.bf16.mxu0 %v446
    %1984 = vmatpush1.bf16.msra.mxu0 %v445
    %1985 = vmatprep.subr.bf16.mxu0 0
    %1986 = vmatpush2.bf16.msra.mxu0 0
    %1987 = vmatprep.subr.bf16.mxu0 0
    %1988 = vmatpush2.bf16.msra.mxu0 0
    %1989 = vmatprep.subr.bf16.mxu0 0
    %1990 = vmatpush2.bf16.msra.mxu0 0
    %1991 = vmatprep.subr.bf16.mxu0 0
    %1992 = vmatpush2.bf16.msra.mxu0 0
    %1993 = vmatprep.subr.bf16.mxu0 0
    %1994 = vmatpush2.bf16.msra.mxu0 0
    %1995 = vmatprep.subr.bf16.mxu0 0
    %1996 = vmatpush2.bf16.msra.mxu0 0
    %1997 = vmatprep.subr.bf16.mxu0 0
    %1998 = vmatpush2.bf16.msra.mxu0 0
    %1999 = vmatprep.subr.bf16.mxu0 0
    %2000 = vmatpush2.bf16.msra.mxu0 0
    %2001 = vmatprep.mubr.bf16.mxu0 0
    %2002 = vmatmul.mubr.bf16.gmra.mxu0 %v1862
    %v2003 = vpop.f32.mrf.mxu0
    %v2004 = vadd.f32 0.0, %v2003
    %v2005 = vpop.f32.mrf.mxu0
    %v2006 = vadd.f32 0.0, %v2005
    %v2007 = vpop.f32.mrf.mxu0
    %v2008 = vpop.f32.mrf.mxu0
    %2009 = vdwg.mxu0
    %2010 = vmatprep.subr.bf16.mxu0 %v476
    %2011 = vmatpush1.bf16.msra.mxu0 %v475
    %2012 = vmatprep.subr.bf16.mxu0 %v472
    %2013 = vmatpush1.bf16.msra.mxu0 %v471
    %2014 = vmatprep.subr.bf16.mxu0 %v468
    %2015 = vmatpush1.bf16.msra.mxu0 %v467
    %2016 = vmatprep.subr.bf16.mxu0 %v464
    %2017 = vmatpush1.bf16.msra.mxu0 %v463
    %2018 = vmatprep.subr.bf16.mxu0 %v460
    %2019 = vmatpush1.bf16.msra.mxu0 %v459
    %2020 = vmatprep.subr.bf16.mxu0 %v456
    %2021 = vmatpush1.bf16.msra.mxu0 %v455
    %2022 = vmatprep.subr.bf16.mxu0 %v452
    %2023 = vmatpush1.bf16.msra.mxu0 %v451
    %2024 = vmatprep.subr.bf16.mxu0 %v448
    %2025 = vmatpush1.bf16.msra.mxu0 %v447
    %2026 = vmatprep.subr.bf16.mxu0 0
    %2027 = vmatpush2.bf16.msra.mxu0 0
    %2028 = vmatprep.subr.bf16.mxu0 0
    %2029 = vmatpush2.bf16.msra.mxu0 0
    %2030 = vmatprep.subr.bf16.mxu0 0
    %2031 = vmatpush2.bf16.msra.mxu0 0
    %2032 = vmatprep.subr.bf16.mxu0 0
    %2033 = vmatpush2.bf16.msra.mxu0 0
    %2034 = vmatprep.subr.bf16.mxu0 0
    %2035 = vmatpush2.bf16.msra.mxu0 0
    %2036 = vmatprep.subr.bf16.mxu0 0
    %2037 = vmatpush2.bf16.msra.mxu0 0
    %2038 = vmatprep.subr.bf16.mxu0 0
    %2039 = vmatpush2.bf16.msra.mxu0 0
    %2040 = vmatprep.subr.bf16.mxu0 0
    %2041 = vmatpush2.bf16.msra.mxu0 0
    %2042 = vmatprep.mubr.bf16.mxu0 0
    %2043 = vmatmul.mubr.bf16.gmra.mxu0 %v1862
    %v2044 = vpop.f32.mrf.mxu0
    %v2045 = vadd.f32 0.0, %v2044
    %v2046 = vpop.f32.mrf.mxu0
    %v2047 = vadd.f32 0.0, %v2046
    %v2048 = vpop.f32.mrf.mxu0
    %v2049 = vpop.f32.mrf.mxu0
    %2050 = vdwg.mxu0
    %v2051 = vadd.f32 %v1748, %v2004
    %v2052 = vadd.f32 %v1749, %v2006
    %v2053 = vadd.f32 %v1750, %v2045
    %v2054 = vadd.f32 %v1751, %v2047
    %v2055 = vxor.u32 %v2051, 2147483648
    %v2056 = vmul.f32 %v2055, 1.442695
    %v2057 = vpow.pop %v2056
    %v2058 = vadd.f32 %v2057, 1.0
    %v2059 = vrcp.pop %v2058
    %v2060 = vmul.f32 1.0, %v2059
    %v2061 = vxor.u32 %v2052, 2147483648
    %v2062 = vmul.f32 %v2061, 1.442695
    %v2063 = vpow.pop %v2062
    %v2064 = vadd.f32 %v2063, 1.0
    %v2065 = vrcp.pop %v2064
    %v2066 = vmul.f32 1.0, %v2065
    %v2067 = vtanh.pop %v2053
    %v2068 = vxor.u32 %v2054, 2147483648
    %v2069 = vmul.f32 %v2068, 1.442695
    %v2070 = vpow.pop %v2069
    %v2071 = vadd.f32 %v2070, 1.0
    %v2072 = vrcp.pop %v2071
    %v2073 = vmul.f32 1.0, %v2072
    %v2074 = vmul.f32 %v2066, %v1859
    %v2075 = vmul.f32 %v2060, %v2067
    %v2076 = vadd.f32 %v2074, %v2075
    %v2077 = vtanh.pop %v2076
    %v2078 = vmul.f32 %v2073, %v2077
    %v2079 = vpack.c.bf16 %v2078, %v2078
    %s2080 = scalar_lea.vmem [#allocation6], 320
    %v2081 = vld [vmem:[%s2080] sm:$0xf]
    %v2082 = vld [vmem:[%s2080 + $0x4] sm:$0xf]
    %v2083 = vld [vmem:[%s2080 + $0x8] sm:$0xf]
    %v2084 = vld [vmem:[%s2080 + $0xc] sm:$0xf]
    %v2085 = vld [vmem:[%s2080 + $0x10] sm:$0xf]
    %v2086 = vld [vmem:[%s2080 + $0x14] sm:$0xf]
    %v2087 = vld [vmem:[%s2080 + $0x18] sm:$0xf]
    %v2088 = vld [vmem:[%s2080 + $0x1c] sm:$0xf]
    %v2089 = vld [vmem:[%s2080 + $0x20] sm:$0xf]
    %v2090 = vld [vmem:[%s2080 + $0x24] sm:$0xf]
    %v2091 = vld [vmem:[%s2080 + $0x28] sm:$0xf]
    %v2092 = vld [vmem:[%s2080 + $0x2c] sm:$0xf]
    %v2093 = vld [vmem:[%s2080 + $0x30] sm:$0xf]
    %v2094 = vld [vmem:[%s2080 + $0x34] sm:$0xf]
    %v2095 = vld [vmem:[%s2080 + $0x38] sm:$0xf]
    %v2096 = vld [vmem:[%s2080 + $0x3c] sm:$0xf]
    %v2113 = vunpack.c.l.b16 %v2081
    %v2114 = vunpack.c.l.b16 %v2082
    %v2115 = vunpack.c.l.b16 %v2083
    %v2116 = vunpack.c.l.b16 %v2084
    %v2117 = vunpack.c.l.b16 %v2085
    %v2118 = vunpack.c.l.b16 %v2086
    %v2119 = vunpack.c.l.b16 %v2087
    %v2120 = vunpack.c.l.b16 %v2088
    %v2121 = vunpack.c.l.b16 %v2089
    %v2122 = vunpack.c.l.b16 %v2090
    %v2123 = vunpack.c.l.b16 %v2091
    %v2124 = vunpack.c.l.b16 %v2092
    %v2125 = vunpack.c.l.b16 %v2093
    %v2126 = vunpack.c.l.b16 %v2094
    %v2127 = vunpack.c.l.b16 %v2095
    %v2128 = vunpack.c.l.b16 %v2096
    %v2129 = vpack.c.b16 %v2114, %v2113
    %v2130 = vpack.c.b16 %v2116, %v2115
    %v2131 = vpack.c.b16 %v2118, %v2117
    %v2132 = vpack.c.b16 %v2120, %v2119
    %v2133 = vpack.c.b16 %v2122, %v2121
    %v2134 = vpack.c.b16 %v2124, %v2123
    %v2135 = vpack.c.b16 %v2126, %v2125
    %v2136 = vpack.c.b16 %v2128, %v2127
    %2145 = vmatprep.subr.bf16.mxu0 0
    %2146 = vmatpush1.bf16.msra.mxu0 %v2136
    %2147 = vmatprep.subr.bf16.mxu0 0
    %2148 = vmatpush1.bf16.msra.mxu0 %v2135
    %2149 = vmatprep.subr.bf16.mxu0 0
    %2150 = vmatpush1.bf16.msra.mxu0 %v2134
    %2151 = vmatprep.subr.bf16.mxu0 0
    %2152 = vmatpush1.bf16.msra.mxu0 %v2133
    %2153 = vmatprep.subr.bf16.mxu0 0
    %2154 = vmatpush1.bf16.msra.mxu0 %v2132
    %2155 = vmatprep.subr.bf16.mxu0 0
    %2156 = vmatpush1.bf16.msra.mxu0 %v2131
    %2157 = vmatprep.subr.bf16.mxu0 0
    %2158 = vmatpush1.bf16.msra.mxu0 %v2130
    %2159 = vmatprep.subr.bf16.mxu0 0
    %2160 = vmatpush1.bf16.msra.mxu0 %v2129
    %2161 = vmatprep.subr.bf16.mxu0 0
    %2162 = vmatpush2.bf16.msra.mxu0 0
    %2163 = vmatprep.subr.bf16.mxu0 0
    %2164 = vmatpush2.bf16.msra.mxu0 0
    %2165 = vmatprep.subr.bf16.mxu0 0
    %2166 = vmatpush2.bf16.msra.mxu0 0
    %2167 = vmatprep.subr.bf16.mxu0 0
    %2168 = vmatpush2.bf16.msra.mxu0 0
    %2169 = vmatprep.subr.bf16.mxu0 0
    %2170 = vmatpush2.bf16.msra.mxu0 0
    %2171 = vmatprep.subr.bf16.mxu0 0
    %2172 = vmatpush2.bf16.msra.mxu0 0
    %2173 = vmatprep.subr.bf16.mxu0 0
    %2174 = vmatpush2.bf16.msra.mxu0 0
    %2175 = vmatprep.subr.bf16.mxu0 0
    %2176 = vmatpush2.bf16.msra.mxu0 0
    %2177 = vmatprep.mubr.bf16.mxu0 0
    %2178 = vmatmul.mubr.bf16.gmra.mxu0 %v2079
    %v2179 = vpop.f32.mrf.mxu0
    %v2180 = vadd.f32 0.0, %v2179
    %v2181 = vpop.f32.mrf.mxu0
    %v2182 = vpop.f32.mrf.mxu0
    %v2183 = vpop.f32.mrf.mxu0
    %2184 = vdwg.mxu0
    %v2185 = vadd.f32 %v1968, %v2180
    %2186 = vmatprep.subr.bf16.mxu0 %v474
    %2187 = vmatpush1.bf16.msra.mxu0 %v473
    %2188 = vmatprep.subr.bf16.mxu0 %v470
    %2189 = vmatpush1.bf16.msra.mxu0 %v469
    %2190 = vmatprep.subr.bf16.mxu0 %v466
    %2191 = vmatpush1.bf16.msra.mxu0 %v465
    %2192 = vmatprep.subr.bf16.mxu0 %v462
    %2193 = vmatpush1.bf16.msra.mxu0 %v461
    %2194 = vmatprep.subr.bf16.mxu0 %v458
    %2195 = vmatpush1.bf16.msra.mxu0 %v457
    %2196 = vmatprep.subr.bf16.mxu0 %v454
    %2197 = vmatpush1.bf16.msra.mxu0 %v453
    %2198 = vmatprep.subr.bf16.mxu0 %v450
    %2199 = vmatpush1.bf16.msra.mxu0 %v449
    %2200 = vmatprep.subr.bf16.mxu0 %v446
    %2201 = vmatpush1.bf16.msra.mxu0 %v445
    %2202 = vmatprep.subr.bf16.mxu0 0
    %2203 = vmatpush2.bf16.msra.mxu0 0
    %2204 = vmatprep.subr.bf16.mxu0 0
    %2205 = vmatpush2.bf16.msra.mxu0 0
    %2206 = vmatprep.subr.bf16.mxu0 0
    %2207 = vmatpush2.bf16.msra.mxu0 0
    %2208 = vmatprep.subr.bf16.mxu0 0
    %2209 = vmatpush2.bf16.msra.mxu0 0
    %2210 = vmatprep.subr.bf16.mxu0 0
    %2211 = vmatpush2.bf16.msra.mxu0 0
    %2212 = vmatprep.subr.bf16.mxu0 0
    %2213 = vmatpush2.bf16.msra.mxu0 0
    %2214 = vmatprep.subr.bf16.mxu0 0
    %2215 = vmatpush2.bf16.msra.mxu0 0
    %2216 = vmatprep.subr.bf16.mxu0 0
    %2217 = vmatpush2.bf16.msra.mxu0 0
    %2218 = vmatprep.mubr.bf16.mxu0 0
    %2219 = vmatmul.mubr.bf16.gmra.mxu0 %v2079
    %v2220 = vpop.f32.mrf.mxu0
    %v2221 = vadd.f32 0.0, %v2220
    %v2222 = vpop.f32.mrf.mxu0
    %v2223 = vadd.f32 0.0, %v2222
    %v2224 = vpop.f32.mrf.mxu0
    %v2225 = vpop.f32.mrf.mxu0
    %2226 = vdwg.mxu0
    %2227 = vmatprep.subr.bf16.mxu0 %v476
    %2228 = vmatpush1.bf16.msra.mxu0 %v475
    %2229 = vmatprep.subr.bf16.mxu0 %v472
    %2230 = vmatpush1.bf16.msra.mxu0 %v471
    %2231 = vmatprep.subr.bf16.mxu0 %v468
    %2232 = vmatpush1.bf16.msra.mxu0 %v467
    %2233 = vmatprep.subr.bf16.mxu0 %v464
    %2234 = vmatpush1.bf16.msra.mxu0 %v463
    %2235 = vmatprep.subr.bf16.mxu0 %v460
    %2236 = vmatpush1.bf16.msra.mxu0 %v459
    %2237 = vmatprep.subr.bf16.mxu0 %v456
    %2238 = vmatpush1.bf16.msra.mxu0 %v455
    %2239 = vmatprep.subr.bf16.mxu0 %v452
    %2240 = vmatpush1.bf16.msra.mxu0 %v451
    %2241 = vmatprep.subr.bf16.mxu0 %v448
    %2242 = vmatpush1.bf16.msra.mxu0 %v447
    %2243 = vmatprep.subr.bf16.mxu0 0
    %2244 = vmatpush2.bf16.msra.mxu0 0
    %2245 = vmatprep.subr.bf16.mxu0 0
    %2246 = vmatpush2.bf16.msra.mxu0 0
    %2247 = vmatprep.subr.bf16.mxu0 0
    %2248 = vmatpush2.bf16.msra.mxu0 0
    %2249 = vmatprep.subr.bf16.mxu0 0
    %2250 = vmatpush2.bf16.msra.mxu0 0
    %2251 = vmatprep.subr.bf16.mxu0 0
    %2252 = vmatpush2.bf16.msra.mxu0 0
    %2253 = vmatprep.subr.bf16.mxu0 0
    %2254 = vmatpush2.bf16.msra.mxu0 0
    %2255 = vmatprep.subr.bf16.mxu0 0
    %2256 = vmatpush2.bf16.msra.mxu0 0
    %2257 = vmatprep.subr.bf16.mxu0 0
    %2258 = vmatpush2.bf16.msra.mxu0 0
    %2259 = vmatprep.mubr.bf16.mxu0 0
    %2260 = vmatmul.mubr.bf16.gmra.mxu0 %v2079
    %v2261 = vpop.f32.mrf.mxu0
    %v2262 = vadd.f32 0.0, %v2261
    %v2263 = vpop.f32.mrf.mxu0
    %v2264 = vadd.f32 0.0, %v2263
    %v2265 = vpop.f32.mrf.mxu0
    %v2266 = vpop.f32.mrf.mxu0
    %2267 = vdwg.mxu0
    %v2268 = vadd.f32 %v1748, %v2221
    %v2269 = vadd.f32 %v1749, %v2223
    %v2270 = vadd.f32 %v1750, %v2262
    %v2271 = vadd.f32 %v1751, %v2264
    %v2272 = vxor.u32 %v2268, 2147483648
    %v2273 = vmul.f32 %v2272, 1.442695
    %v2274 = vpow.pop %v2273
    %v2275 = vadd.f32 %v2274, 1.0
    %v2276 = vrcp.pop %v2275
    %v2277 = vmul.f32 1.0, %v2276
    %v2278 = vxor.u32 %v2269, 2147483648
    %v2279 = vmul.f32 %v2278, 1.442695
    %v2280 = vpow.pop %v2279
    %v2281 = vadd.f32 %v2280, 1.0
    %v2282 = vrcp.pop %v2281
    %v2283 = vmul.f32 1.0, %v2282
    %v2284 = vtanh.pop %v2270
    %v2285 = vxor.u32 %v2271, 2147483648
    %v2286 = vmul.f32 %v2285, 1.442695
    %v2287 = vpow.pop %v2286
    %v2288 = vadd.f32 %v2287, 1.0
    %v2289 = vrcp.pop %v2288
    %v2290 = vmul.f32 1.0, %v2289
    %v2291 = vmul.f32 %v2283, %v2076
    %v2292 = vmul.f32 %v2277, %v2284
    %v2293 = vadd.f32 %v2291, %v2292
    %v2294 = vtanh.pop %v2293
    %v2295 = vmul.f32 %v2290, %v2294
    %v2296 = vpack.c.bf16 %v2295, %v2295
    %s2297 = scalar_lea.vmem [#allocation6], 384
    %v2298 = vld [vmem:[%s2297] sm:$0xf]
    %v2299 = vld [vmem:[%s2297 + $0x4] sm:$0xf]
    %v2300 = vld [vmem:[%s2297 + $0x8] sm:$0xf]
    %v2301 = vld [vmem:[%s2297 + $0xc] sm:$0xf]
    %v2302 = vld [vmem:[%s2297 + $0x10] sm:$0xf]
    %v2303 = vld [vmem:[%s2297 + $0x14] sm:$0xf]
    %v2304 = vld [vmem:[%s2297 + $0x18] sm:$0xf]
    %v2305 = vld [vmem:[%s2297 + $0x1c] sm:$0xf]
    %v2306 = vld [vmem:[%s2297 + $0x20] sm:$0xf]
    %v2307 = vld [vmem:[%s2297 + $0x24] sm:$0xf]
    %v2308 = vld [vmem:[%s2297 + $0x28] sm:$0xf]
    %v2309 = vld [vmem:[%s2297 + $0x2c] sm:$0xf]
    %v2310 = vld [vmem:[%s2297 + $0x30] sm:$0xf]
    %v2311 = vld [vmem:[%s2297 + $0x34] sm:$0xf]
    %v2312 = vld [vmem:[%s2297 + $0x38] sm:$0xf]
    %v2313 = vld [vmem:[%s2297 + $0x3c] sm:$0xf]
    %v2330 = vunpack.c.l.b16 %v2298
    %v2331 = vunpack.c.l.b16 %v2299
    %v2332 = vunpack.c.l.b16 %v2300
    %v2333 = vunpack.c.l.b16 %v2301
    %v2334 = vunpack.c.l.b16 %v2302
    %v2335 = vunpack.c.l.b16 %v2303
    %v2336 = vunpack.c.l.b16 %v2304
    %v2337 = vunpack.c.l.b16 %v2305
    %v2338 = vunpack.c.l.b16 %v2306
    %v2339 = vunpack.c.l.b16 %v2307
    %v2340 = vunpack.c.l.b16 %v2308
    %v2341 = vunpack.c.l.b16 %v2309
    %v2342 = vunpack.c.l.b16 %v2310
    %v2343 = vunpack.c.l.b16 %v2311
    %v2344 = vunpack.c.l.b16 %v2312
    %v2345 = vunpack.c.l.b16 %v2313
    %v2346 = vpack.c.b16 %v2331, %v2330
    %v2347 = vpack.c.b16 %v2333, %v2332
    %v2348 = vpack.c.b16 %v2335, %v2334
    %v2349 = vpack.c.b16 %v2337, %v2336
    %v2350 = vpack.c.b16 %v2339, %v2338
    %v2351 = vpack.c.b16 %v2341, %v2340
    %v2352 = vpack.c.b16 %v2343, %v2342
    %v2353 = vpack.c.b16 %v2345, %v2344
    %2362 = vmatprep.subr.bf16.mxu0 0
    %2363 = vmatpush1.bf16.msra.mxu0 %v2353
    %2364 = vmatprep.subr.bf16.mxu0 0
    %2365 = vmatpush1.bf16.msra.mxu0 %v2352
    %2366 = vmatprep.subr.bf16.mxu0 0
    %2367 = vmatpush1.bf16.msra.mxu0 %v2351
    %2368 = vmatprep.subr.bf16.mxu0 0
    %2369 = vmatpush1.bf16.msra.mxu0 %v2350
    %2370 = vmatprep.subr.bf16.mxu0 0
    %2371 = vmatpush1.bf16.msra.mxu0 %v2349
    %2372 = vmatprep.subr.bf16.mxu0 0
    %2373 = vmatpush1.bf16.msra.mxu0 %v2348
    %2374 = vmatprep.subr.bf16.mxu0 0
    %2375 = vmatpush1.bf16.msra.mxu0 %v2347
    %2376 = vmatprep.subr.bf16.mxu0 0
    %2377 = vmatpush1.bf16.msra.mxu0 %v2346
    %2378 = vmatprep.subr.bf16.mxu0 0
    %2379 = vmatpush2.bf16.msra.mxu0 0
    %2380 = vmatprep.subr.bf16.mxu0 0
    %2381 = vmatpush2.bf16.msra.mxu0 0
    %2382 = vmatprep.subr.bf16.mxu0 0
    %2383 = vmatpush2.bf16.msra.mxu0 0
    %2384 = vmatprep.subr.bf16.mxu0 0
    %2385 = vmatpush2.bf16.msra.mxu0 0
    %2386 = vmatprep.subr.bf16.mxu0 0
    %2387 = vmatpush2.bf16.msra.mxu0 0
    %2388 = vmatprep.subr.bf16.mxu0 0
    %2389 = vmatpush2.bf16.msra.mxu0 0
    %2390 = vmatprep.subr.bf16.mxu0 0
    %2391 = vmatpush2.bf16.msra.mxu0 0
    %2392 = vmatprep.subr.bf16.mxu0 0
    %2393 = vmatpush2.bf16.msra.mxu0 0
    %2394 = vmatprep.mubr.bf16.mxu0 0
    %2395 = vmatmul.mubr.bf16.gmra.mxu0 %v2296
    %v2396 = vpop.f32.mrf.mxu0
    %v2397 = vadd.f32 0.0, %v2396
    %v2398 = vpop.f32.mrf.mxu0
    %v2399 = vpop.f32.mrf.mxu0
    %v2400 = vpop.f32.mrf.mxu0
    %2401 = vdwg.mxu0
    %v2402 = vadd.f32 %v2185, %v2397
    %2403 = vmatprep.subr.bf16.mxu0 %v474
    %2404 = vmatpush1.bf16.msra.mxu0 %v473
    %2405 = vmatprep.subr.bf16.mxu0 %v470
    %2406 = vmatpush1.bf16.msra.mxu0 %v469
    %2407 = vmatprep.subr.bf16.mxu0 %v466
    %2408 = vmatpush1.bf16.msra.mxu0 %v465
    %2409 = vmatprep.subr.bf16.mxu0 %v462
    %2410 = vmatpush1.bf16.msra.mxu0 %v461
    %2411 = vmatprep.subr.bf16.mxu0 %v458
    %2412 = vmatpush1.bf16.msra.mxu0 %v457
    %2413 = vmatprep.subr.bf16.mxu0 %v454
    %2414 = vmatpush1.bf16.msra.mxu0 %v453
    %2415 = vmatprep.subr.bf16.mxu0 %v450
    %2416 = vmatpush1.bf16.msra.mxu0 %v449
    %2417 = vmatprep.subr.bf16.mxu0 %v446
    %2418 = vmatpush1.bf16.msra.mxu0 %v445
    %2419 = vmatprep.subr.bf16.mxu0 0
    %2420 = vmatpush2.bf16.msra.mxu0 0
    %2421 = vmatprep.subr.bf16.mxu0 0
    %2422 = vmatpush2.bf16.msra.mxu0 0
    %2423 = vmatprep.subr.bf16.mxu0 0
    %2424 = vmatpush2.bf16.msra.mxu0 0
    %2425 = vmatprep.subr.bf16.mxu0 0
    %2426 = vmatpush2.bf16.msra.mxu0 0
    %2427 = vmatprep.subr.bf16.mxu0 0
    %2428 = vmatpush2.bf16.msra.mxu0 0
    %2429 = vmatprep.subr.bf16.mxu0 0
    %2430 = vmatpush2.bf16.msra.mxu0 0
    %2431 = vmatprep.subr.bf16.mxu0 0
    %2432 = vmatpush2.bf16.msra.mxu0 0
    %2433 = vmatprep.subr.bf16.mxu0 0
    %2434 = vmatpush2.bf16.msra.mxu0 0
    %2435 = vmatprep.mubr.bf16.mxu0 0
    %2436 = vmatmul.mubr.bf16.gmra.mxu0 %v2296
    %v2437 = vpop.f32.mrf.mxu0
    %v2438 = vadd.f32 0.0, %v2437
    %v2439 = vpop.f32.mrf.mxu0
    %v2440 = vadd.f32 0.0, %v2439
    %v2441 = vpop.f32.mrf.mxu0
    %v2442 = vpop.f32.mrf.mxu0
    %2443 = vdwg.mxu0
    %2444 = vmatprep.subr.bf16.mxu0 %v476
    %2445 = vmatpush1.bf16.msra.mxu0 %v475
    %2446 = vmatprep.subr.bf16.mxu0 %v472
    %2447 = vmatpush1.bf16.msra.mxu0 %v471
    %2448 = vmatprep.subr.bf16.mxu0 %v468
    %2449 = vmatpush1.bf16.msra.mxu0 %v467
    %2450 = vmatprep.subr.bf16.mxu0 %v464
    %2451 = vmatpush1.bf16.msra.mxu0 %v463
    %2452 = vmatprep.subr.bf16.mxu0 %v460
    %2453 = vmatpush1.bf16.msra.mxu0 %v459
    %2454 = vmatprep.subr.bf16.mxu0 %v456
    %2455 = vmatpush1.bf16.msra.mxu0 %v455
    %2456 = vmatprep.subr.bf16.mxu0 %v452
    %2457 = vmatpush1.bf16.msra.mxu0 %v451
    %2458 = vmatprep.subr.bf16.mxu0 %v448
    %2459 = vmatpush1.bf16.msra.mxu0 %v447
    %2460 = vmatprep.subr.bf16.mxu0 0
    %2461 = vmatpush2.bf16.msra.mxu0 0
    %2462 = vmatprep.subr.bf16.mxu0 0
    %2463 = vmatpush2.bf16.msra.mxu0 0
    %2464 = vmatprep.subr.bf16.mxu0 0
    %2465 = vmatpush2.bf16.msra.mxu0 0
    %2466 = vmatprep.subr.bf16.mxu0 0
    %2467 = vmatpush2.bf16.msra.mxu0 0
    %2468 = vmatprep.subr.bf16.mxu0 0
    %2469 = vmatpush2.bf16.msra.mxu0 0
    %2470 = vmatprep.subr.bf16.mxu0 0
    %2471 = vmatpush2.bf16.msra.mxu0 0
    %2472 = vmatprep.subr.bf16.mxu0 0
    %2473 = vmatpush2.bf16.msra.mxu0 0
    %2474 = vmatprep.subr.bf16.mxu0 0
    %2475 = vmatpush2.bf16.msra.mxu0 0
    %2476 = vmatprep.mubr.bf16.mxu0 0
    %2477 = vmatmul.mubr.bf16.gmra.mxu0 %v2296
    %v2478 = vpop.f32.mrf.mxu0
    %v2479 = vadd.f32 0.0, %v2478
    %v2480 = vpop.f32.mrf.mxu0
    %v2481 = vadd.f32 0.0, %v2480
    %v2482 = vpop.f32.mrf.mxu0
    %v2483 = vpop.f32.mrf.mxu0
    %2484 = vdwg.mxu0
    %v2485 = vadd.f32 %v1748, %v2438
    %v2486 = vadd.f32 %v1749, %v2440
    %v2487 = vadd.f32 %v1750, %v2479
    %v2488 = vadd.f32 %v1751, %v2481
    %v2489 = vxor.u32 %v2485, 2147483648
    %v2490 = vmul.f32 %v2489, 1.442695
    %v2491 = vpow.pop %v2490
    %v2492 = vadd.f32 %v2491, 1.0
    %v2493 = vrcp.pop %v2492
    %v2494 = vmul.f32 1.0, %v2493
    %v2495 = vxor.u32 %v2486, 2147483648
    %v2496 = vmul.f32 %v2495, 1.442695
    %v2497 = vpow.pop %v2496
    %v2498 = vadd.f32 %v2497, 1.0
    %v2499 = vrcp.pop %v2498
    %v2500 = vmul.f32 1.0, %v2499
    %v2501 = vtanh.pop %v2487
    %v2502 = vxor.u32 %v2488, 2147483648
    %v2503 = vmul.f32 %v2502, 1.442695
    %v2504 = vpow.pop %v2503
    %v2505 = vadd.f32 %v2504, 1.0
    %v2506 = vrcp.pop %v2505
    %v2507 = vmul.f32 1.0, %v2506
    %v2508 = vmul.f32 %v2500, %v2293
    %v2509 = vmul.f32 %v2494, %v2501
    %v2510 = vadd.f32 %v2508, %v2509
    %v2511 = vtanh.pop %v2510
    %v2512 = vmul.f32 %v2507, %v2511
    %v2513 = vpack.c.bf16 %v2512, %v2512
    %s2514 = scalar_lea.vmem [#allocation6], 448
    %v2515 = vld [vmem:[%s2514] sm:$0xf]
    %v2516 = vld [vmem:[%s2514 + $0x4] sm:$0xf]
    %v2517 = vld [vmem:[%s2514 + $0x8] sm:$0xf]
    %v2518 = vld [vmem:[%s2514 + $0xc] sm:$0xf]
    %v2519 = vld [vmem:[%s2514 + $0x10] sm:$0xf]
    %v2520 = vld [vmem:[%s2514 + $0x14] sm:$0xf]
    %v2521 = vld [vmem:[%s2514 + $0x18] sm:$0xf]
    %v2522 = vld [vmem:[%s2514 + $0x1c] sm:$0xf]
    %v2523 = vld [vmem:[%s2514 + $0x20] sm:$0xf]
    %v2524 = vld [vmem:[%s2514 + $0x24] sm:$0xf]
    %v2525 = vld [vmem:[%s2514 + $0x28] sm:$0xf]
    %v2526 = vld [vmem:[%s2514 + $0x2c] sm:$0xf]
    %v2527 = vld [vmem:[%s2514 + $0x30] sm:$0xf]
    %v2528 = vld [vmem:[%s2514 + $0x34] sm:$0xf]
    %v2529 = vld [vmem:[%s2514 + $0x38] sm:$0xf]
    %v2530 = vld [vmem:[%s2514 + $0x3c] sm:$0xf]
    %v2547 = vunpack.c.l.b16 %v2515
    %v2548 = vunpack.c.l.b16 %v2516
    %v2549 = vunpack.c.l.b16 %v2517
    %v2550 = vunpack.c.l.b16 %v2518
    %v2551 = vunpack.c.l.b16 %v2519
    %v2552 = vunpack.c.l.b16 %v2520
    %v2553 = vunpack.c.l.b16 %v2521
    %v2554 = vunpack.c.l.b16 %v2522
    %v2555 = vunpack.c.l.b16 %v2523
    %v2556 = vunpack.c.l.b16 %v2524
    %v2557 = vunpack.c.l.b16 %v2525
    %v2558 = vunpack.c.l.b16 %v2526
    %v2559 = vunpack.c.l.b16 %v2527
    %v2560 = vunpack.c.l.b16 %v2528
    %v2561 = vunpack.c.l.b16 %v2529
    %v2562 = vunpack.c.l.b16 %v2530
    %v2563 = vpack.c.b16 %v2548, %v2547
    %v2564 = vpack.c.b16 %v2550, %v2549
    %v2565 = vpack.c.b16 %v2552, %v2551
    %v2566 = vpack.c.b16 %v2554, %v2553
    %v2567 = vpack.c.b16 %v2556, %v2555
    %v2568 = vpack.c.b16 %v2558, %v2557
    %v2569 = vpack.c.b16 %v2560, %v2559
    %v2570 = vpack.c.b16 %v2562, %v2561
    %2579 = vmatprep.subr.bf16.mxu0 0
    %2580 = vmatpush1.bf16.msra.mxu0 %v2570
    %2581 = vmatprep.subr.bf16.mxu0 0
    %2582 = vmatpush1.bf16.msra.mxu0 %v2569
    %2583 = vmatprep.subr.bf16.mxu0 0
    %2584 = vmatpush1.bf16.msra.mxu0 %v2568
    %2585 = vmatprep.subr.bf16.mxu0 0
    %2586 = vmatpush1.bf16.msra.mxu0 %v2567
    %2587 = vmatprep.subr.bf16.mxu0 0
    %2588 = vmatpush1.bf16.msra.mxu0 %v2566
    %2589 = vmatprep.subr.bf16.mxu0 0
    %2590 = vmatpush1.bf16.msra.mxu0 %v2565
    %2591 = vmatprep.subr.bf16.mxu0 0
    %2592 = vmatpush1.bf16.msra.mxu0 %v2564
    %2593 = vmatprep.subr.bf16.mxu0 0
    %2594 = vmatpush1.bf16.msra.mxu0 %v2563
    %2595 = vmatprep.subr.bf16.mxu0 0
    %2596 = vmatpush2.bf16.msra.mxu0 0
    %2597 = vmatprep.subr.bf16.mxu0 0
    %2598 = vmatpush2.bf16.msra.mxu0 0
    %2599 = vmatprep.subr.bf16.mxu0 0
    %2600 = vmatpush2.bf16.msra.mxu0 0
    %2601 = vmatprep.subr.bf16.mxu0 0
    %2602 = vmatpush2.bf16.msra.mxu0 0
    %2603 = vmatprep.subr.bf16.mxu0 0
    %2604 = vmatpush2.bf16.msra.mxu0 0
    %2605 = vmatprep.subr.bf16.mxu0 0
    %2606 = vmatpush2.bf16.msra.mxu0 0
    %2607 = vmatprep.subr.bf16.mxu0 0
    %2608 = vmatpush2.bf16.msra.mxu0 0
    %2609 = vmatprep.subr.bf16.mxu0 0
    %2610 = vmatpush2.bf16.msra.mxu0 0
    %2611 = vmatprep.mubr.bf16.mxu0 0
    %2612 = vmatmul.mubr.bf16.gmra.mxu0 %v2513
    %v2613 = vpop.f32.mrf.mxu0
    %v2614 = vadd.f32 0.0, %v2613
    %v2615 = vpop.f32.mrf.mxu0
    %v2616 = vpop.f32.mrf.mxu0
    %v2617 = vpop.f32.mrf.mxu0
    %2618 = vdwg.mxu0
    %v2619 = vadd.f32 %v2402, %v2614
    %v2620 = vxor.u32 %v2619, 2147483648
    %v2621 = vmul.f32 %v2620, 1.442695
    %v2622 = vpow.pop %v2621
    %v2623 = vadd.f32 %v2622, 1.0
    %v2624 = vrcp.pop %v2623
    %v2625 = vmul.f32 1.0, %v2624
    %2626 = vst [vmem:[#allocation8] sm:$0xff] %v2625
    // Predicated region
    $region34: #{mv_lstm_forward.1} parent=1 // pred_check
      _
    $region35: #{mv_lstm_forward.1} parent=1 // pred_check_branch
      %2628 = sbr.rel (0) target = $region37
    $region36: #{mv_lstm_forward.1} parent=1 // pred_region
      %s2630 = ssub.s32 128, 128
      %2631 = vsyncadd [#allocation5], %s2630
      %s2633 = sshll.u32 [#allocation8], 4
      %s2634 = int_to_ptr.vmem [resolvable:$true] %s2633
      %2636 = dma.vmem_to_hbm [thread:$0]  %s2634, 128, %s6, [#allocation5]
    $region37: #{mv_lstm_forward.1} parent=1 // pred_fallthru
      _
    // Predicated region
    $region38: #{mv_lstm_forward.1} parent=1 // pred_check
      _
    $region39: #{mv_lstm_forward.1} parent=1 // pred_check_branch
      %2638 = sbr.rel (0) target = $region41
    $region40: #{mv_lstm_forward.1} parent=1 // pred_region
      %2639 = dma.done [#allocation5], 128
    $region41: #{mv_lstm_forward.1} parent=1 // pred_fallthru
      _
    %2640 = vsyncpa [#allocation4], 1
    %2641 = vsyncpa [#allocation7], 1
    %2642 = vsyncpa [#allocation5], 1

</llo_original>
